<compile_context>
chip_gen: v7x
topology: tpu7x:2x2x1
jax: 0.10.0
libtpu: 0.0.40
codegen_flags: <defaults>
</compile_context>

<pallas_src>
import jax
import jax.numpy as jnp
from jax import lax
from jax.experimental import pallas as pl
from jax.experimental.pallas import tpu as pltpu

HIDDEN = 64


def node_kernel(t_sm, y0_ref, w1_ref, b1_ref, w2_ref, b2_ref, w3_ref, b3_ref,
                out_ref):
    """One batch chunk: in-kernel RK4 time loop.

    t_sm      : (T,) f32 time points in SMEM (scalar prefetch)
    y0_ref    : (BC, D) initial state chunk (VMEM)
    w*/b*_ref : MLP weights/biases (VMEM, full blocks)
    out_ref   : (T, BC, D) trajectory for this chunk (single HBM writeback)
    """
    T = out_ref.shape[0]
    BC, D = y0_ref.shape
    H = w1_ref.shape[1]

    # ---- hoisted, loop-invariant values (vreg-resident) --------------------
    w1 = w1_ref[...]                                   # (D, H) f32 (VPU path)
    w2 = w2_ref[...].astype(jnp.bfloat16)              # (H, H) bf16 MXU operand
    w3 = w3_ref[...].astype(jnp.bfloat16)              # (H, D) bf16 MXU operand
    b1b = jnp.broadcast_to(b1_ref[...], (BC, H))       # pre-broadcast biases
    b2b = jnp.broadcast_to(b2_ref[...], (BC, H))       # (broadcast_in_dim is
    b3b = jnp.broadcast_to(b3_ref[...], (BC, D))       #  not CSE'd by JAX)

    vpu_layer1 = D <= 8                                # tiny K: skip the MXU
    if vpu_layer1:
        w1_rows = [jnp.broadcast_to(w1[k:k + 1, :], (BC, H)) for k in range(D)]
    else:
        w1_bf = w1.astype(jnp.bfloat16)

    def silu(x):
        # x * sigmoid(x) == 0.5 * x * (1 + tanh(x/2)): one EUP transcendental
        # on the critical path, exact (no approx reciprocal).
        return (0.5 * x) * (1.0 + jnp.tanh(0.5 * x))

    def f(y):                                          # odefunc (ignores t)
        if vpu_layer1:
            h = b1b
            for k in range(D):                         # D lane-broadcast mul/adds
                h = h + y[:, k:k + 1] * w1_rows[k]
        else:
            h = jnp.dot(y.astype(jnp.bfloat16), w1_bf,
                        preferred_element_type=jnp.float32) + b1b
        h = silu(h)
        h = jnp.dot(h.astype(jnp.bfloat16), w2,
                    preferred_element_type=jnp.float32) + b2b
        h = silu(h)
        return jnp.dot(h.astype(jnp.bfloat16), w3,
                       preferred_element_type=jnp.float32) + b3b

    y0 = y0_ref[...]
    out_ref[0] = y0

    def body(i, y):
        dt = t_sm[i] - t_sm[i - 1]
        half_dt = 0.5 * dt
        k1 = f(y)
        k2 = f(y + half_dt * k1)
        k3 = f(y + half_dt * k2)
        k4 = f(y + dt * k3)
        y_new = y + (dt / 6.0) * (k1 + 2.0 * (k2 + k3) + k4)
        out_ref[i] = y_new            # VMEM store; HBM writeback once at end
        return y_new

    # Full unroll only for small static T: cross-step scheduling visibility
    # without code-size / vreg-spill blowup once T grows.
    unroll = True if T <= 32 else 4
    lax.fori_loop(1, T, body, y0, unroll=unroll)


def neural_ode_forward(t, y0, params, *, batch_chunk=None):
    """t: (T,) f32 time points; y0: (B, D) f32 initial state -> (T, B, D)."""
    w1, b1, w2, b2, w3, b3 = params
    T = t.shape[0]
    B, D = y0.shape
    H = w1.shape[1]

    # Batch-chunk grid axis ("parallel"): v7x megacore sharding for large B,
    # and bounds the resident (T, BC, D) output block.
    if batch_chunk is None:
        batch_chunk = B if B <= 128 else 128
    if B % batch_chunk != 0 or (batch_chunk != B and batch_chunk % 8 != 0):
        batch_chunk = B
    n_chunks = B // batch_chunk

    def full(shape):
        # full-array block; index_map gets (grid_i, t_prefetch_ref)
        return pl.BlockSpec(shape, lambda i, t_ref, _n=len(shape): (0,) * _n)

    grid_spec = pltpu.PrefetchScalarGridSpec(
        num_scalar_prefetch=1,                 # t lands in SMEM
        grid=(n_chunks,),
        in_specs=[
            pl.BlockSpec((batch_chunk, D), lambda i, t_ref: (i, 0)),   # y0
            full((D, H)), full((1, H)),        # W1, b1
            full((H, H)), full((1, H)),        # W2, b2
            full((H, D)), full((1, D)),        # W3, b3
        ],
        out_specs=pl.BlockSpec((T, batch_chunk, D),
                               lambda i, t_ref: (0, i, 0)),
    )

    return pl.pallas_call(
        node_kernel,
        out_shape=jax.ShapeDtypeStruct((T, B, D), jnp.float32),
        grid_spec=grid_spec,
        compiler_params=pltpu.CompilerParams(
            dimension_semantics=("parallel",)),
    )(t, y0,
      w1, b1.reshape(1, H),
      w2, b2.reshape(1, H),
      w3, b3.reshape(1, D))


def init_params(key, data_dim, hidden=HIDDEN):
    """PyTorch-style uniform(-1/sqrt(fan_in), 1/sqrt(fan_in)) init, deterministic."""
    ks = jax.random.split(key, 6)

    def lin(kw, kb, fan_in, fan_out):
        bound = 1.0 / jnp.sqrt(jnp.float32(fan_in))
        w = jax.random.uniform(kw, (fan_in, fan_out), jnp.float32, -bound, bound)
        b = jax.random.uniform(kb, (fan_out,), jnp.float32, -bound, bound)
        return w, b

    w1, b1 = lin(ks[0], ks[1], data_dim, hidden)
    w2, b2 = lin(ks[2], ks[3], hidden, hidden)
    w3, b3 = lin(ks[4], ks[5], hidden, data_dim)
    return (w1, b1, w2, b2, w3, b3)


def _reference_rk4(t, y0, params):
    """Pure-JAX f32 RK4 on the same time grid (correctness oracle)."""
    w1, b1, w2, b2, w3, b3 = params

    def f(y):
        h = jax.nn.silu(y @ w1 + b1)
        h = jax.nn.silu(h @ w2 + b2)
        return h @ w3 + b3

    def step(y, ts):
        t0, t1 = ts
        dt = t1 - t0
        k1 = f(y)
        k2 = f(y + 0.5 * dt * k1)
        k3 = f(y + 0.5 * dt * k2)
        k4 = f(y + dt * k3)
        y_new = y + (dt / 6.0) * (k1 + 2.0 * k2 + 2.0 * k3 + k4)
        return y_new, y_new

    _, traj = lax.scan(step, y0, (t[:-1], t[1:]))
    return jnp.concatenate([y0[None], traj], axis=0)


if __name__ == "__main__":
    key = jax.random.PRNGKey(0)
    k_par, k_y0 = jax.random.split(key)

    DATA_DIM = 4
    BATCH = 8
    T_STEPS = 8

    params = init_params(k_par, DATA_DIM)
    y0 = jax.random.normal(k_y0, (BATCH, DATA_DIM), jnp.float32)
    t = jnp.linspace(0.0, 1.0, T_STEPS, dtype=jnp.float32)

    ys = neural_ode_forward(t, y0, params)
    ys = jax.block_until_ready(ys)

    # sanity: shape (T, B, D), first slice equals y0, all finite
    assert ys.shape == (T_STEPS, BATCH, DATA_DIM)
    assert bool(jnp.allclose(ys[0], y0))
    assert bool(jnp.all(jnp.isfinite(ys)))

    # bf16 MXU operands on layers 2/3 -> compare loosely to the f32 reference.
    ref = _reference_rk4(t, y0, params)
    max_err = float(jnp.max(jnp.abs(ys - ref)))
    assert max_err < 5e-2, f"max abs error vs f32 RK4 reference: {max_err}"

    print("KERNEL_OK")
</pallas_src>

<mosaic_0001>
module attributes {stable_mosaic.version = 11 : i64} {
  func.func @node_kernel(%arg0: i32, %arg1: memref<8xf32, #tpu.memory_space<smem>>, %arg2: memref<8x4xf32, #tpu.memory_space<vmem>>, %arg3: memref<4x64xf32, #tpu.memory_space<vmem>>, %arg4: memref<1x64xf32, #tpu.memory_space<vmem>>, %arg5: memref<64x64xf32, #tpu.memory_space<vmem>>, %arg6: memref<1x64xf32, #tpu.memory_space<vmem>>, %arg7: memref<64x4xf32, #tpu.memory_space<vmem>>, %arg8: memref<1x4xf32, #tpu.memory_space<vmem>>, %arg9: memref<8x8x4xf32, #tpu.memory_space<vmem>>) attributes {dimension_semantics = [#tpu.dimension_semantics<parallel>], iteration_bounds = array<i64: 1>, scalar_prefetch = 1 : i64, scratch_operands = 0 : i64, tpu.core_type = #tpu.core_type<tc>, window_params = [{transform_indices = @transform_0, window_bounds = array<i64: 8, 4>}, {pipeline_mode = #tpu.pipeline_mode<synchronous>, transform_indices = @transform_1, window_bounds = array<i64: 4, 64>}, {pipeline_mode = #tpu.pipeline_mode<synchronous>, transform_indices = @transform_2, window_bounds = array<i64: 1, 64>}, {pipeline_mode = #tpu.pipeline_mode<synchronous>, transform_indices = @transform_3, window_bounds = array<i64: 64, 64>}, {pipeline_mode = #tpu.pipeline_mode<synchronous>, transform_indices = @transform_4, window_bounds = array<i64: 1, 64>}, {pipeline_mode = #tpu.pipeline_mode<synchronous>, transform_indices = @transform_5, window_bounds = array<i64: 64, 4>}, {pipeline_mode = #tpu.pipeline_mode<synchronous>, transform_indices = @transform_6, window_bounds = array<i64: 1, 4>}, {transform_indices = @transform_7, window_bounds = array<i64: 8, 8, 4>}]} {
    %c0 = arith.constant 0 : index
    %c0_0 = arith.constant 0 : index
    %0 = vector.load %arg3[%c0, %c0_0] : memref<4x64xf32, #tpu.memory_space<vmem>>, vector<4x64xf32>
    %c0_1 = arith.constant 0 : index
    %c0_2 = arith.constant 0 : index
    %1 = vector.load %arg5[%c0_1, %c0_2] : memref<64x64xf32, #tpu.memory_space<vmem>>, vector<64x64xf32>
    %2 = arith.truncf %1 : vector<64x64xf32> to vector<64x64xbf16>
    %c0_3 = arith.constant 0 : index
    %c0_4 = arith.constant 0 : index
    %3 = vector.load %arg7[%c0_3, %c0_4] : memref<64x4xf32, #tpu.memory_space<vmem>>, vector<64x4xf32>
    %4 = arith.truncf %3 : vector<64x4xf32> to vector<64x4xbf16>
    %c0_5 = arith.constant 0 : index
    %c0_6 = arith.constant 0 : index
    %5 = vector.load %arg4[%c0_5, %c0_6] : memref<1x64xf32, #tpu.memory_space<vmem>>, vector<1x64xf32>
    %6 = vector.shape_cast %5 : vector<1x64xf32> to vector<1x64xf32>
    %7 = vector.broadcast %6 : vector<1x64xf32> to vector<8x64xf32>
    %c0_7 = arith.constant 0 : index
    %c0_8 = arith.constant 0 : index
    %8 = vector.load %arg6[%c0_7, %c0_8] : memref<1x64xf32, #tpu.memory_space<vmem>>, vector<1x64xf32>
    %9 = vector.shape_cast %8 : vector<1x64xf32> to vector<1x64xf32>
    %10 = vector.broadcast %9 : vector<1x64xf32> to vector<8x64xf32>
    %c0_9 = arith.constant 0 : index
    %c0_10 = arith.constant 0 : index
    %11 = vector.load %arg8[%c0_9, %c0_10] : memref<1x4xf32, #tpu.memory_space<vmem>>, vector<1x4xf32>
    %12 = vector.shape_cast %11 : vector<1x4xf32> to vector<1x4xf32>
    %13 = vector.broadcast %12 : vector<1x4xf32> to vector<8x4xf32>
    %14 = vector.extract_strided_slice %0 {offsets = [0, 0], sizes = [1, 64], strides = [1, 1]} : vector<4x64xf32> to vector<1x64xf32>
    %15 = vector.shape_cast %14 : vector<1x64xf32> to vector<1x64xf32>
    %16 = vector.broadcast %15 : vector<1x64xf32> to vector<8x64xf32>
    %17 = vector.extract_strided_slice %0 {offsets = [1, 0], sizes = [1, 64], strides = [1, 1]} : vector<4x64xf32> to vector<1x64xf32>
    %18 = vector.shape_cast %17 : vector<1x64xf32> to vector<1x64xf32>
    %19 = vector.broadcast %18 : vector<1x64xf32> to vector<8x64xf32>
    %20 = vector.extract_strided_slice %0 {offsets = [2, 0], sizes = [1, 64], strides = [1, 1]} : vector<4x64xf32> to vector<1x64xf32>
    %21 = vector.shape_cast %20 : vector<1x64xf32> to vector<1x64xf32>
    %22 = vector.broadcast %21 : vector<1x64xf32> to vector<8x64xf32>
    %23 = vector.extract_strided_slice %0 {offsets = [3, 0], sizes = [1, 64], strides = [1, 1]} : vector<4x64xf32> to vector<1x64xf32>
    %24 = vector.shape_cast %23 : vector<1x64xf32> to vector<1x64xf32>
    %25 = vector.broadcast %24 : vector<1x64xf32> to vector<8x64xf32>
    %c0_11 = arith.constant 0 : index
    %c0_12 = arith.constant 0 : index
    %26 = vector.load %arg2[%c0_11, %c0_12] : memref<8x4xf32, #tpu.memory_space<vmem>>, vector<8x4xf32>
    %c0_13 = arith.constant 0 : index
    %c0_14 = arith.constant 0 : index
    %c0_15 = arith.constant 0 : index
    %27 = vector.load %arg9[%c0_13, %c0_14, %c0_15] : memref<8x8x4xf32, #tpu.memory_space<vmem>>, vector<1x8x4xf32>
    %28 = vector.shape_cast %27 : vector<1x8x4xf32> to vector<8x4xf32>
    %29 = vector.shape_cast %26 : vector<8x4xf32> to vector<1x8x4xf32>
    tpu.vector_store %arg9[%c0_13, %c0_14, %c0_15], %29 {strides = array<i32>} : memref<8x8x4xf32, #tpu.memory_space<vmem>>, vector<1x8x4xf32>,
    %c1_i32 = arith.constant 1 : i32
    %30 = arith.index_cast %c1_i32 : i32 to index
    %31 = memref.load %arg1[%30] : memref<8xf32, #tpu.memory_space<smem>>
    %c1_i32_16 = arith.constant 1 : i32
    %32 = arith.subi %c1_i32, %c1_i32_16 : i32
    %33 = arith.index_cast %32 : i32 to index
    %34 = memref.load %arg1[%33] : memref<8xf32, #tpu.memory_space<smem>>
    %35 = arith.subf %31, %34 : f32
    %cst = arith.constant 5.000000e-01 : f32
    %36 = arith.mulf %cst, %35 : f32
    %37 = vector.extract_strided_slice %26 {offsets = [0, 0], sizes = [8, 1], strides = [1, 1]} : vector<8x4xf32> to vector<8x1xf32>
    %38 = vector.broadcast %37 : vector<8x1xf32> to vector<8x64xf32>
    %39 = arith.mulf %38, %16 : vector<8x64xf32>
    %40 = arith.addf %7, %39 : vector<8x64xf32>
    %41 = vector.extract_strided_slice %26 {offsets = [0, 1], sizes = [8, 1], strides = [1, 1]} : vector<8x4xf32> to vector<8x1xf32>
    %42 = vector.broadcast %41 : vector<8x1xf32> to vector<8x64xf32>
    %43 = arith.mulf %42, %19 : vector<8x64xf32>
    %44 = arith.addf %40, %43 : vector<8x64xf32>
    %45 = vector.extract_strided_slice %26 {offsets = [0, 2], sizes = [8, 1], strides = [1, 1]} : vector<8x4xf32> to vector<8x1xf32>
    %46 = vector.broadcast %45 : vector<8x1xf32> to vector<8x64xf32>
    %47 = arith.mulf %46, %22 : vector<8x64xf32>
    %48 = arith.addf %44, %47 : vector<8x64xf32>
    %49 = vector.extract_strided_slice %26 {offsets = [0, 3], sizes = [8, 1], strides = [1, 1]} : vector<8x4xf32> to vector<8x1xf32>
    %50 = vector.broadcast %49 : vector<8x1xf32> to vector<8x64xf32>
    %51 = arith.mulf %50, %25 : vector<8x64xf32>
    %52 = arith.addf %48, %51 : vector<8x64xf32>
    %cst_17 = arith.constant 5.000000e-01 : f32
    %53 = vector.broadcast %cst_17 : f32 to vector<8x64xf32>
    %54 = arith.mulf %53, %52 : vector<8x64xf32>
    %cst_18 = arith.constant 5.000000e-01 : f32
    %55 = vector.broadcast %cst_18 : f32 to vector<8x64xf32>
    %56 = arith.mulf %55, %52 : vector<8x64xf32>
    %57 = math.tanh %56 : vector<8x64xf32>
    %cst_19 = arith.constant 1.000000e+00 : f32
    %58 = vector.broadcast %cst_19 : f32 to vector<8x64xf32>
    %59 = arith.addf %58, %57 : vector<8x64xf32>
    %60 = arith.mulf %54, %59 : vector<8x64xf32>
    %61 = arith.truncf %60 : vector<8x64xf32> to vector<8x64xbf16>
    %cst_20 = arith.constant dense<0.000000e+00> : vector<8x64xf32>
    %62 = tpu.matmul %61, %2, %cst_20 {dimension_numbers = #tpu.dot_dimension_numbers<[1], [0], [0], [1], [0, 0, 1, 1], [], []>} : vector<8x64xbf16>, vector<64x64xbf16>, vector<8x64xf32> -> vector<8x64xf32>
    %63 = arith.addf %62, %10 : vector<8x64xf32>
    %cst_21 = arith.constant 5.000000e-01 : f32
    %64 = vector.broadcast %cst_21 : f32 to vector<8x64xf32>
    %65 = arith.mulf %64, %63 : vector<8x64xf32>
    %cst_22 = arith.constant 5.000000e-01 : f32
    %66 = vector.broadcast %cst_22 : f32 to vector<8x64xf32>
    %67 = arith.mulf %66, %63 : vector<8x64xf32>
    %68 = math.tanh %67 : vector<8x64xf32>
    %cst_23 = arith.constant 1.000000e+00 : f32
    %69 = vector.broadcast %cst_23 : f32 to vector<8x64xf32>
    %70 = arith.addf %69, %68 : vector<8x64xf32>
    %71 = arith.mulf %65, %70 : vector<8x64xf32>
    %72 = arith.truncf %71 : vector<8x64xf32> to vector<8x64xbf16>
    %cst_24 = arith.constant dense<0.000000e+00> : vector<8x4xf32>
    %73 = tpu.matmul %72, %4, %cst_24 {dimension_numbers = #tpu.dot_dimension_numbers<[1], [0], [0], [1], [0, 0, 1, 1], [], []>} : vector<8x64xbf16>, vector<64x4xbf16>, vector<8x4xf32> -> vector<8x4xf32>
    %74 = arith.addf %73, %13 : vector<8x4xf32>
    %75 = vector.broadcast %36 : f32 to vector<8x4xf32>
    %76 = arith.mulf %75, %74 : vector<8x4xf32>
    %77 = arith.addf %26, %76 : vector<8x4xf32>
    %78 = vector.extract_strided_slice %77 {offsets = [0, 0], sizes = [8, 1], strides = [1, 1]} : vector<8x4xf32> to vector<8x1xf32>
    %79 = vector.broadcast %78 : vector<8x1xf32> to vector<8x64xf32>
    %80 = arith.mulf %79, %16 : vector<8x64xf32>
    %81 = arith.addf %7, %80 : vector<8x64xf32>
    %82 = vector.extract_strided_slice %77 {offsets = [0, 1], sizes = [8, 1], strides = [1, 1]} : vector<8x4xf32> to vector<8x1xf32>
    %83 = vector.broadcast %82 : vector<8x1xf32> to vector<8x64xf32>
    %84 = arith.mulf %83, %19 : vector<8x64xf32>
    %85 = arith.addf %81, %84 : vector<8x64xf32>
    %86 = vector.extract_strided_slice %77 {offsets = [0, 2], sizes = [8, 1], strides = [1, 1]} : vector<8x4xf32> to vector<8x1xf32>
    %87 = vector.broadcast %86 : vector<8x1xf32> to vector<8x64xf32>
    %88 = arith.mulf %87, %22 : vector<8x64xf32>
    %89 = arith.addf %85, %88 : vector<8x64xf32>
    %90 = vector.extract_strided_slice %77 {offsets = [0, 3], sizes = [8, 1], strides = [1, 1]} : vector<8x4xf32> to vector<8x1xf32>
    %91 = vector.broadcast %90 : vector<8x1xf32> to vector<8x64xf32>
    %92 = arith.mulf %91, %25 : vector<8x64xf32>
    %93 = arith.addf %89, %92 : vector<8x64xf32>
    %cst_25 = arith.constant 5.000000e-01 : f32
    %94 = vector.broadcast %cst_25 : f32 to vector<8x64xf32>
    %95 = arith.mulf %94, %93 : vector<8x64xf32>
    %cst_26 = arith.constant 5.000000e-01 : f32
    %96 = vector.broadcast %cst_26 : f32 to vector<8x64xf32>
    %97 = arith.mulf %96, %93 : vector<8x64xf32>
    %98 = math.tanh %97 : vector<8x64xf32>
    %cst_27 = arith.constant 1.000000e+00 : f32
    %99 = vector.broadcast %cst_27 : f32 to vector<8x64xf32>
    %100 = arith.addf %99, %98 : vector<8x64xf32>
    %101 = arith.mulf %95, %100 : vector<8x64xf32>
    %102 = arith.truncf %101 : vector<8x64xf32> to vector<8x64xbf16>
    %cst_28 = arith.constant dense<0.000000e+00> : vector<8x64xf32>
    %103 = tpu.matmul %102, %2, %cst_28 {dimension_numbers = #tpu.dot_dimension_numbers<[1], [0], [0], [1], [0, 0, 1, 1], [], []>} : vector<8x64xbf16>, vector<64x64xbf16>, vector<8x64xf32> -> vector<8x64xf32>
    %104 = arith.addf %103, %10 : vector<8x64xf32>
    %cst_29 = arith.constant 5.000000e-01 : f32
    %105 = vector.broadcast %cst_29 : f32 to vector<8x64xf32>
    %106 = arith.mulf %105, %104 : vector<8x64xf32>
    %cst_30 = arith.constant 5.000000e-01 : f32
    %107 = vector.broadcast %cst_30 : f32 to vector<8x64xf32>
    %108 = arith.mulf %107, %104 : vector<8x64xf32>
    %109 = math.tanh %108 : vector<8x64xf32>
    %cst_31 = arith.constant 1.000000e+00 : f32
    %110 = vector.broadcast %cst_31 : f32 to vector<8x64xf32>
    %111 = arith.addf %110, %109 : vector<8x64xf32>
    %112 = arith.mulf %106, %111 : vector<8x64xf32>
    %113 = arith.truncf %112 : vector<8x64xf32> to vector<8x64xbf16>
    %cst_32 = arith.constant dense<0.000000e+00> : vector<8x4xf32>
    %114 = tpu.matmul %113, %4, %cst_32 {dimension_numbers = #tpu.dot_dimension_numbers<[1], [0], [0], [1], [0, 0, 1, 1], [], []>} : vector<8x64xbf16>, vector<64x4xbf16>, vector<8x4xf32> -> vector<8x4xf32>
    %115 = arith.addf %114, %13 : vector<8x4xf32>
    %116 = vector.broadcast %36 : f32 to vector<8x4xf32>
    %117 = arith.mulf %116, %115 : vector<8x4xf32>
    %118 = arith.addf %26, %117 : vector<8x4xf32>
    %119 = vector.extract_strided_slice %118 {offsets = [0, 0], sizes = [8, 1], strides = [1, 1]} : vector<8x4xf32> to vector<8x1xf32>
    %120 = vector.broadcast %119 : vector<8x1xf32> to vector<8x64xf32>
    %121 = arith.mulf %120, %16 : vector<8x64xf32>
    %122 = arith.addf %7, %121 : vector<8x64xf32>
    %123 = vector.extract_strided_slice %118 {offsets = [0, 1], sizes = [8, 1], strides = [1, 1]} : vector<8x4xf32> to vector<8x1xf32>
    %124 = vector.broadcast %123 : vector<8x1xf32> to vector<8x64xf32>
    %125 = arith.mulf %124, %19 : vector<8x64xf32>
    %126 = arith.addf %122, %125 : vector<8x64xf32>
    %127 = vector.extract_strided_slice %118 {offsets = [0, 2], sizes = [8, 1], strides = [1, 1]} : vector<8x4xf32> to vector<8x1xf32>
    %128 = vector.broadcast %127 : vector<8x1xf32> to vector<8x64xf32>
    %129 = arith.mulf %128, %22 : vector<8x64xf32>
    %130 = arith.addf %126, %129 : vector<8x64xf32>
    %131 = vector.extract_strided_slice %118 {offsets = [0, 3], sizes = [8, 1], strides = [1, 1]} : vector<8x4xf32> to vector<8x1xf32>
    %132 = vector.broadcast %131 : vector<8x1xf32> to vector<8x64xf32>
    %133 = arith.mulf %132, %25 : vector<8x64xf32>
    %134 = arith.addf %130, %133 : vector<8x64xf32>
    %cst_33 = arith.constant 5.000000e-01 : f32
    %135 = vector.broadcast %cst_33 : f32 to vector<8x64xf32>
    %136 = arith.mulf %135, %134 : vector<8x64xf32>
    %cst_34 = arith.constant 5.000000e-01 : f32
    %137 = vector.broadcast %cst_34 : f32 to vector<8x64xf32>
    %138 = arith.mulf %137, %134 : vector<8x64xf32>
    %139 = math.tanh %138 : vector<8x64xf32>
    %cst_35 = arith.constant 1.000000e+00 : f32
    %140 = vector.broadcast %cst_35 : f32 to vector<8x64xf32>
    %141 = arith.addf %140, %139 : vector<8x64xf32>
    %142 = arith.mulf %136, %141 : vector<8x64xf32>
    %143 = arith.truncf %142 : vector<8x64xf32> to vector<8x64xbf16>
    %cst_36 = arith.constant dense<0.000000e+00> : vector<8x64xf32>
    %144 = tpu.matmul %143, %2, %cst_36 {dimension_numbers = #tpu.dot_dimension_numbers<[1], [0], [0], [1], [0, 0, 1, 1], [], []>} : vector<8x64xbf16>, vector<64x64xbf16>, vector<8x64xf32> -> vector<8x64xf32>
    %145 = arith.addf %144, %10 : vector<8x64xf32>
    %cst_37 = arith.constant 5.000000e-01 : f32
    %146 = vector.broadcast %cst_37 : f32 to vector<8x64xf32>
    %147 = arith.mulf %146, %145 : vector<8x64xf32>
    %cst_38 = arith.constant 5.000000e-01 : f32
    %148 = vector.broadcast %cst_38 : f32 to vector<8x64xf32>
    %149 = arith.mulf %148, %145 : vector<8x64xf32>
    %150 = math.tanh %149 : vector<8x64xf32>
    %cst_39 = arith.constant 1.000000e+00 : f32
    %151 = vector.broadcast %cst_39 : f32 to vector<8x64xf32>
    %152 = arith.addf %151, %150 : vector<8x64xf32>
    %153 = arith.mulf %147, %152 : vector<8x64xf32>
    %154 = arith.truncf %153 : vector<8x64xf32> to vector<8x64xbf16>
    %cst_40 = arith.constant dense<0.000000e+00> : vector<8x4xf32>
    %155 = tpu.matmul %154, %4, %cst_40 {dimension_numbers = #tpu.dot_dimension_numbers<[1], [0], [0], [1], [0, 0, 1, 1], [], []>} : vector<8x64xbf16>, vector<64x4xbf16>, vector<8x4xf32> -> vector<8x4xf32>
    %156 = arith.addf %155, %13 : vector<8x4xf32>
    %157 = vector.broadcast %35 : f32 to vector<8x4xf32>
    %158 = arith.mulf %157, %156 : vector<8x4xf32>
    %159 = arith.addf %26, %158 : vector<8x4xf32>
    %160 = vector.extract_strided_slice %159 {offsets = [0, 0], sizes = [8, 1], strides = [1, 1]} : vector<8x4xf32> to vector<8x1xf32>
    %161 = vector.broadcast %160 : vector<8x1xf32> to vector<8x64xf32>
    %162 = arith.mulf %161, %16 : vector<8x64xf32>
    %163 = arith.addf %7, %162 : vector<8x64xf32>
    %164 = vector.extract_strided_slice %159 {offsets = [0, 1], sizes = [8, 1], strides = [1, 1]} : vector<8x4xf32> to vector<8x1xf32>
    %165 = vector.broadcast %164 : vector<8x1xf32> to vector<8x64xf32>
    %166 = arith.mulf %165, %19 : vector<8x64xf32>
    %167 = arith.addf %163, %166 : vector<8x64xf32>
    %168 = vector.extract_strided_slice %159 {offsets = [0, 2], sizes = [8, 1], strides = [1, 1]} : vector<8x4xf32> to vector<8x1xf32>
    %169 = vector.broadcast %168 : vector<8x1xf32> to vector<8x64xf32>
    %170 = arith.mulf %169, %22 : vector<8x64xf32>
    %171 = arith.addf %167, %170 : vector<8x64xf32>
    %172 = vector.extract_strided_slice %159 {offsets = [0, 3], sizes = [8, 1], strides = [1, 1]} : vector<8x4xf32> to vector<8x1xf32>
    %173 = vector.broadcast %172 : vector<8x1xf32> to vector<8x64xf32>
    %174 = arith.mulf %173, %25 : vector<8x64xf32>
    %175 = arith.addf %171, %174 : vector<8x64xf32>
    %cst_41 = arith.constant 5.000000e-01 : f32
    %176 = vector.broadcast %cst_41 : f32 to vector<8x64xf32>
    %177 = arith.mulf %176, %175 : vector<8x64xf32>
    %cst_42 = arith.constant 5.000000e-01 : f32
    %178 = vector.broadcast %cst_42 : f32 to vector<8x64xf32>
    %179 = arith.mulf %178, %175 : vector<8x64xf32>
    %180 = math.tanh %179 : vector<8x64xf32>
    %cst_43 = arith.constant 1.000000e+00 : f32
    %181 = vector.broadcast %cst_43 : f32 to vector<8x64xf32>
    %182 = arith.addf %181, %180 : vector<8x64xf32>
    %183 = arith.mulf %177, %182 : vector<8x64xf32>
    %184 = arith.truncf %183 : vector<8x64xf32> to vector<8x64xbf16>
    %cst_44 = arith.constant dense<0.000000e+00> : vector<8x64xf32>
    %185 = tpu.matmul %184, %2, %cst_44 {dimension_numbers = #tpu.dot_dimension_numbers<[1], [0], [0], [1], [0, 0, 1, 1], [], []>} : vector<8x64xbf16>, vector<64x64xbf16>, vector<8x64xf32> -> vector<8x64xf32>
    %186 = arith.addf %185, %10 : vector<8x64xf32>
    %cst_45 = arith.constant 5.000000e-01 : f32
    %187 = vector.broadcast %cst_45 : f32 to vector<8x64xf32>
    %188 = arith.mulf %187, %186 : vector<8x64xf32>
    %cst_46 = arith.constant 5.000000e-01 : f32
    %189 = vector.broadcast %cst_46 : f32 to vector<8x64xf32>
    %190 = arith.mulf %189, %186 : vector<8x64xf32>
    %191 = math.tanh %190 : vector<8x64xf32>
    %cst_47 = arith.constant 1.000000e+00 : f32
    %192 = vector.broadcast %cst_47 : f32 to vector<8x64xf32>
    %193 = arith.addf %192, %191 : vector<8x64xf32>
    %194 = arith.mulf %188, %193 : vector<8x64xf32>
    %195 = arith.truncf %194 : vector<8x64xf32> to vector<8x64xbf16>
    %cst_48 = arith.constant dense<0.000000e+00> : vector<8x4xf32>
    %196 = tpu.matmul %195, %4, %cst_48 {dimension_numbers = #tpu.dot_dimension_numbers<[1], [0], [0], [1], [0, 0, 1, 1], [], []>} : vector<8x64xbf16>, vector<64x4xbf16>, vector<8x4xf32> -> vector<8x4xf32>
    %197 = arith.addf %196, %13 : vector<8x4xf32>
    %cst_49 = arith.constant 6.000000e+00 : f32
    %198 = arith.divf %35, %cst_49 : f32
    %199 = arith.addf %115, %156 : vector<8x4xf32>
    %cst_50 = arith.constant 2.000000e+00 : f32
    %200 = vector.broadcast %cst_50 : f32 to vector<8x4xf32>
    %201 = arith.mulf %200, %199 : vector<8x4xf32>
    %202 = arith.addf %74, %201 : vector<8x4xf32>
    %203 = arith.addf %202, %197 : vector<8x4xf32>
    %204 = vector.broadcast %198 : f32 to vector<8x4xf32>
    %205 = arith.mulf %204, %203 : vector<8x4xf32>
    %206 = arith.addf %26, %205 : vector<8x4xf32>
    %207 = arith.index_cast %c1_i32 : i32 to index
    %c0_51 = arith.constant 0 : index
    %c0_52 = arith.constant 0 : index
    %208 = vector.load %arg9[%207, %c0_51, %c0_52] : memref<8x8x4xf32, #tpu.memory_space<vmem>>, vector<1x8x4xf32>
    %209 = vector.shape_cast %208 : vector<1x8x4xf32> to vector<8x4xf32>
    %210 = vector.shape_cast %206 : vector<8x4xf32> to vector<1x8x4xf32>
    tpu.vector_store %arg9[%207, %c0_51, %c0_52], %210 {strides = array<i32>} : memref<8x8x4xf32, #tpu.memory_space<vmem>>, vector<1x8x4xf32>,
    %c2_i32 = arith.constant 2 : i32
    %211 = arith.index_cast %c2_i32 : i32 to index
    %212 = memref.load %arg1[%211] : memref<8xf32, #tpu.memory_space<smem>>
    %c1_i32_53 = arith.constant 1 : i32
    %213 = arith.subi %c2_i32, %c1_i32_53 : i32
    %214 = arith.index_cast %213 : i32 to index
    %215 = memref.load %arg1[%214] : memref<8xf32, #tpu.memory_space<smem>>
    %216 = arith.subf %212, %215 : f32
    %cst_54 = arith.constant 5.000000e-01 : f32
    %217 = arith.mulf %cst_54, %216 : f32
    %218 = vector.extract_strided_slice %206 {offsets = [0, 0], sizes = [8, 1], strides = [1, 1]} : vector<8x4xf32> to vector<8x1xf32>
    %219 = vector.broadcast %218 : vector<8x1xf32> to vector<8x64xf32>
    %220 = arith.mulf %219, %16 : vector<8x64xf32>
    %221 = arith.addf %7, %220 : vector<8x64xf32>
    %222 = vector.extract_strided_slice %206 {offsets = [0, 1], sizes = [8, 1], strides = [1, 1]} : vector<8x4xf32> to vector<8x1xf32>
    %223 = vector.broadcast %222 : vector<8x1xf32> to vector<8x64xf32>
    %224 = arith.mulf %223, %19 : vector<8x64xf32>
    %225 = arith.addf %221, %224 : vector<8x64xf32>
    %226 = vector.extract_strided_slice %206 {offsets = [0, 2], sizes = [8, 1], strides = [1, 1]} : vector<8x4xf32> to vector<8x1xf32>
    %227 = vector.broadcast %226 : vector<8x1xf32> to vector<8x64xf32>
    %228 = arith.mulf %227, %22 : vector<8x64xf32>
    %229 = arith.addf %225, %228 : vector<8x64xf32>
    %230 = vector.extract_strided_slice %206 {offsets = [0, 3], sizes = [8, 1], strides = [1, 1]} : vector<8x4xf32> to vector<8x1xf32>
    %231 = vector.broadcast %230 : vector<8x1xf32> to vector<8x64xf32>
    %232 = arith.mulf %231, %25 : vector<8x64xf32>
    %233 = arith.addf %229, %232 : vector<8x64xf32>
    %cst_55 = arith.constant 5.000000e-01 : f32
    %234 = vector.broadcast %cst_55 : f32 to vector<8x64xf32>
    %235 = arith.mulf %234, %233 : vector<8x64xf32>
    %cst_56 = arith.constant 5.000000e-01 : f32
    %236 = vector.broadcast %cst_56 : f32 to vector<8x64xf32>
    %237 = arith.mulf %236, %233 : vector<8x64xf32>
    %238 = math.tanh %237 : vector<8x64xf32>
    %cst_57 = arith.constant 1.000000e+00 : f32
    %239 = vector.broadcast %cst_57 : f32 to vector<8x64xf32>
    %240 = arith.addf %239, %238 : vector<8x64xf32>
    %241 = arith.mulf %235, %240 : vector<8x64xf32>
    %242 = arith.truncf %241 : vector<8x64xf32> to vector<8x64xbf16>
    %cst_58 = arith.constant dense<0.000000e+00> : vector<8x64xf32>
    %243 = tpu.matmul %242, %2, %cst_58 {dimension_numbers = #tpu.dot_dimension_numbers<[1], [0], [0], [1], [0, 0, 1, 1], [], []>} : vector<8x64xbf16>, vector<64x64xbf16>, vector<8x64xf32> -> vector<8x64xf32>
    %244 = arith.addf %243, %10 : vector<8x64xf32>
    %cst_59 = arith.constant 5.000000e-01 : f32
    %245 = vector.broadcast %cst_59 : f32 to vector<8x64xf32>
    %246 = arith.mulf %245, %244 : vector<8x64xf32>
    %cst_60 = arith.constant 5.000000e-01 : f32
    %247 = vector.broadcast %cst_60 : f32 to vector<8x64xf32>
    %248 = arith.mulf %247, %244 : vector<8x64xf32>
    %249 = math.tanh %248 : vector<8x64xf32>
    %cst_61 = arith.constant 1.000000e+00 : f32
    %250 = vector.broadcast %cst_61 : f32 to vector<8x64xf32>
    %251 = arith.addf %250, %249 : vector<8x64xf32>
    %252 = arith.mulf %246, %251 : vector<8x64xf32>
    %253 = arith.truncf %252 : vector<8x64xf32> to vector<8x64xbf16>
    %cst_62 = arith.constant dense<0.000000e+00> : vector<8x4xf32>
    %254 = tpu.matmul %253, %4, %cst_62 {dimension_numbers = #tpu.dot_dimension_numbers<[1], [0], [0], [1], [0, 0, 1, 1], [], []>} : vector<8x64xbf16>, vector<64x4xbf16>, vector<8x4xf32> -> vector<8x4xf32>
    %255 = arith.addf %254, %13 : vector<8x4xf32>
    %256 = vector.broadcast %217 : f32 to vector<8x4xf32>
    %257 = arith.mulf %256, %255 : vector<8x4xf32>
    %258 = arith.addf %206, %257 : vector<8x4xf32>
    %259 = vector.extract_strided_slice %258 {offsets = [0, 0], sizes = [8, 1], strides = [1, 1]} : vector<8x4xf32> to vector<8x1xf32>
    %260 = vector.broadcast %259 : vector<8x1xf32> to vector<8x64xf32>
    %261 = arith.mulf %260, %16 : vector<8x64xf32>
    %262 = arith.addf %7, %261 : vector<8x64xf32>
    %263 = vector.extract_strided_slice %258 {offsets = [0, 1], sizes = [8, 1], strides = [1, 1]} : vector<8x4xf32> to vector<8x1xf32>
    %264 = vector.broadcast %263 : vector<8x1xf32> to vector<8x64xf32>
    %265 = arith.mulf %264, %19 : vector<8x64xf32>
    %266 = arith.addf %262, %265 : vector<8x64xf32>
    %267 = vector.extract_strided_slice %258 {offsets = [0, 2], sizes = [8, 1], strides = [1, 1]} : vector<8x4xf32> to vector<8x1xf32>
    %268 = vector.broadcast %267 : vector<8x1xf32> to vector<8x64xf32>
    %269 = arith.mulf %268, %22 : vector<8x64xf32>
    %270 = arith.addf %266, %269 : vector<8x64xf32>
    %271 = vector.extract_strided_slice %258 {offsets = [0, 3], sizes = [8, 1], strides = [1, 1]} : vector<8x4xf32> to vector<8x1xf32>
    %272 = vector.broadcast %271 : vector<8x1xf32> to vector<8x64xf32>
    %273 = arith.mulf %272, %25 : vector<8x64xf32>
    %274 = arith.addf %270, %273 : vector<8x64xf32>
    %cst_63 = arith.constant 5.000000e-01 : f32
    %275 = vector.broadcast %cst_63 : f32 to vector<8x64xf32>
    %276 = arith.mulf %275, %274 : vector<8x64xf32>
    %cst_64 = arith.constant 5.000000e-01 : f32
    %277 = vector.broadcast %cst_64 : f32 to vector<8x64xf32>
    %278 = arith.mulf %277, %274 : vector<8x64xf32>
    %279 = math.tanh %278 : vector<8x64xf32>
    %cst_65 = arith.constant 1.000000e+00 : f32
    %280 = vector.broadcast %cst_65 : f32 to vector<8x64xf32>
    %281 = arith.addf %280, %279 : vector<8x64xf32>
    %282 = arith.mulf %276, %281 : vector<8x64xf32>
    %283 = arith.truncf %282 : vector<8x64xf32> to vector<8x64xbf16>
    %cst_66 = arith.constant dense<0.000000e+00> : vector<8x64xf32>
    %284 = tpu.matmul %283, %2, %cst_66 {dimension_numbers = #tpu.dot_dimension_numbers<[1], [0], [0], [1], [0, 0, 1, 1], [], []>} : vector<8x64xbf16>, vector<64x64xbf16>, vector<8x64xf32> -> vector<8x64xf32>
    %285 = arith.addf %284, %10 : vector<8x64xf32>
    %cst_67 = arith.constant 5.000000e-01 : f32
    %286 = vector.broadcast %cst_67 : f32 to vector<8x64xf32>
    %287 = arith.mulf %286, %285 : vector<8x64xf32>
    %cst_68 = arith.constant 5.000000e-01 : f32
    %288 = vector.broadcast %cst_68 : f32 to vector<8x64xf32>
    %289 = arith.mulf %288, %285 : vector<8x64xf32>
    %290 = math.tanh %289 : vector<8x64xf32>
    %cst_69 = arith.constant 1.000000e+00 : f32
    %291 = vector.broadcast %cst_69 : f32 to vector<8x64xf32>
    %292 = arith.addf %291, %290 : vector<8x64xf32>
    %293 = arith.mulf %287, %292 : vector<8x64xf32>
    %294 = arith.truncf %293 : vector<8x64xf32> to vector<8x64xbf16>
    %cst_70 = arith.constant dense<0.000000e+00> : vector<8x4xf32>
    %295 = tpu.matmul %294, %4, %cst_70 {dimension_numbers = #tpu.dot_dimension_numbers<[1], [0], [0], [1], [0, 0, 1, 1], [], []>} : vector<8x64xbf16>, vector<64x4xbf16>, vector<8x4xf32> -> vector<8x4xf32>
    %296 = arith.addf %295, %13 : vector<8x4xf32>
    %297 = vector.broadcast %217 : f32 to vector<8x4xf32>
    %298 = arith.mulf %297, %296 : vector<8x4xf32>
    %299 = arith.addf %206, %298 : vector<8x4xf32>
    %300 = vector.extract_strided_slice %299 {offsets = [0, 0], sizes = [8, 1], strides = [1, 1]} : vector<8x4xf32> to vector<8x1xf32>
    %301 = vector.broadcast %300 : vector<8x1xf32> to vector<8x64xf32>
    %302 = arith.mulf %301, %16 : vector<8x64xf32>
    %303 = arith.addf %7, %302 : vector<8x64xf32>
    %304 = vector.extract_strided_slice %299 {offsets = [0, 1], sizes = [8, 1], strides = [1, 1]} : vector<8x4xf32> to vector<8x1xf32>
    %305 = vector.broadcast %304 : vector<8x1xf32> to vector<8x64xf32>
    %306 = arith.mulf %305, %19 : vector<8x64xf32>
    %307 = arith.addf %303, %306 : vector<8x64xf32>
    %308 = vector.extract_strided_slice %299 {offsets = [0, 2], sizes = [8, 1], strides = [1, 1]} : vector<8x4xf32> to vector<8x1xf32>
    %309 = vector.broadcast %308 : vector<8x1xf32> to vector<8x64xf32>
    %310 = arith.mulf %309, %22 : vector<8x64xf32>
    %311 = arith.addf %307, %310 : vector<8x64xf32>
    %312 = vector.extract_strided_slice %299 {offsets = [0, 3], sizes = [8, 1], strides = [1, 1]} : vector<8x4xf32> to vector<8x1xf32>
    %313 = vector.broadcast %312 : vector<8x1xf32> to vector<8x64xf32>
    %314 = arith.mulf %313, %25 : vector<8x64xf32>
    %315 = arith.addf %311, %314 : vector<8x64xf32>
    %cst_71 = arith.constant 5.000000e-01 : f32
    %316 = vector.broadcast %cst_71 : f32 to vector<8x64xf32>
    %317 = arith.mulf %316, %315 : vector<8x64xf32>
    %cst_72 = arith.constant 5.000000e-01 : f32
    %318 = vector.broadcast %cst_72 : f32 to vector<8x64xf32>
    %319 = arith.mulf %318, %315 : vector<8x64xf32>
    %320 = math.tanh %319 : vector<8x64xf32>
    %cst_73 = arith.constant 1.000000e+00 : f32
    %321 = vector.broadcast %cst_73 : f32 to vector<8x64xf32>
    %322 = arith.addf %321, %320 : vector<8x64xf32>
    %323 = arith.mulf %317, %322 : vector<8x64xf32>
    %324 = arith.truncf %323 : vector<8x64xf32> to vector<8x64xbf16>
    %cst_74 = arith.constant dense<0.000000e+00> : vector<8x64xf32>
    %325 = tpu.matmul %324, %2, %cst_74 {dimension_numbers = #tpu.dot_dimension_numbers<[1], [0], [0], [1], [0, 0, 1, 1], [], []>} : vector<8x64xbf16>, vector<64x64xbf16>, vector<8x64xf32> -> vector<8x64xf32>
    %326 = arith.addf %325, %10 : vector<8x64xf32>
    %cst_75 = arith.constant 5.000000e-01 : f32
    %327 = vector.broadcast %cst_75 : f32 to vector<8x64xf32>
    %328 = arith.mulf %327, %326 : vector<8x64xf32>
    %cst_76 = arith.constant 5.000000e-01 : f32
    %329 = vector.broadcast %cst_76 : f32 to vector<8x64xf32>
    %330 = arith.mulf %329, %326 : vector<8x64xf32>
    %331 = math.tanh %330 : vector<8x64xf32>
    %cst_77 = arith.constant 1.000000e+00 : f32
    %332 = vector.broadcast %cst_77 : f32 to vector<8x64xf32>
    %333 = arith.addf %332, %331 : vector<8x64xf32>
    %334 = arith.mulf %328, %333 : vector<8x64xf32>
    %335 = arith.truncf %334 : vector<8x64xf32> to vector<8x64xbf16>
    %cst_78 = arith.constant dense<0.000000e+00> : vector<8x4xf32>
    %336 = tpu.matmul %335, %4, %cst_78 {dimension_numbers = #tpu.dot_dimension_numbers<[1], [0], [0], [1], [0, 0, 1, 1], [], []>} : vector<8x64xbf16>, vector<64x4xbf16>, vector<8x4xf32> -> vector<8x4xf32>
    %337 = arith.addf %336, %13 : vector<8x4xf32>
    %338 = vector.broadcast %216 : f32 to vector<8x4xf32>
    %339 = arith.mulf %338, %337 : vector<8x4xf32>
    %340 = arith.addf %206, %339 : vector<8x4xf32>
    %341 = vector.extract_strided_slice %340 {offsets = [0, 0], sizes = [8, 1], strides = [1, 1]} : vector<8x4xf32> to vector<8x1xf32>
    %342 = vector.broadcast %341 : vector<8x1xf32> to vector<8x64xf32>
    %343 = arith.mulf %342, %16 : vector<8x64xf32>
    %344 = arith.addf %7, %343 : vector<8x64xf32>
    %345 = vector.extract_strided_slice %340 {offsets = [0, 1], sizes = [8, 1], strides = [1, 1]} : vector<8x4xf32> to vector<8x1xf32>
    %346 = vector.broadcast %345 : vector<8x1xf32> to vector<8x64xf32>
    %347 = arith.mulf %346, %19 : vector<8x64xf32>
    %348 = arith.addf %344, %347 : vector<8x64xf32>
    %349 = vector.extract_strided_slice %340 {offsets = [0, 2], sizes = [8, 1], strides = [1, 1]} : vector<8x4xf32> to vector<8x1xf32>
    %350 = vector.broadcast %349 : vector<8x1xf32> to vector<8x64xf32>
    %351 = arith.mulf %350, %22 : vector<8x64xf32>
    %352 = arith.addf %348, %351 : vector<8x64xf32>
    %353 = vector.extract_strided_slice %340 {offsets = [0, 3], sizes = [8, 1], strides = [1, 1]} : vector<8x4xf32> to vector<8x1xf32>
    %354 = vector.broadcast %353 : vector<8x1xf32> to vector<8x64xf32>
    %355 = arith.mulf %354, %25 : vector<8x64xf32>
    %356 = arith.addf %352, %355 : vector<8x64xf32>
    %cst_79 = arith.constant 5.000000e-01 : f32
    %357 = vector.broadcast %cst_79 : f32 to vector<8x64xf32>
    %358 = arith.mulf %357, %356 : vector<8x64xf32>
    %cst_80 = arith.constant 5.000000e-01 : f32
    %359 = vector.broadcast %cst_80 : f32 to vector<8x64xf32>
    %360 = arith.mulf %359, %356 : vector<8x64xf32>
    %361 = math.tanh %360 : vector<8x64xf32>
    %cst_81 = arith.constant 1.000000e+00 : f32
    %362 = vector.broadcast %cst_81 : f32 to vector<8x64xf32>
    %363 = arith.addf %362, %361 : vector<8x64xf32>
    %364 = arith.mulf %358, %363 : vector<8x64xf32>
    %365 = arith.truncf %364 : vector<8x64xf32> to vector<8x64xbf16>
    %cst_82 = arith.constant dense<0.000000e+00> : vector<8x64xf32>
    %366 = tpu.matmul %365, %2, %cst_82 {dimension_numbers = #tpu.dot_dimension_numbers<[1], [0], [0], [1], [0, 0, 1, 1], [], []>} : vector<8x64xbf16>, vector<64x64xbf16>, vector<8x64xf32> -> vector<8x64xf32>
    %367 = arith.addf %366, %10 : vector<8x64xf32>
    %cst_83 = arith.constant 5.000000e-01 : f32
    %368 = vector.broadcast %cst_83 : f32 to vector<8x64xf32>
    %369 = arith.mulf %368, %367 : vector<8x64xf32>
    %cst_84 = arith.constant 5.000000e-01 : f32
    %370 = vector.broadcast %cst_84 : f32 to vector<8x64xf32>
    %371 = arith.mulf %370, %367 : vector<8x64xf32>
    %372 = math.tanh %371 : vector<8x64xf32>
    %cst_85 = arith.constant 1.000000e+00 : f32
    %373 = vector.broadcast %cst_85 : f32 to vector<8x64xf32>
    %374 = arith.addf %373, %372 : vector<8x64xf32>
    %375 = arith.mulf %369, %374 : vector<8x64xf32>
    %376 = arith.truncf %375 : vector<8x64xf32> to vector<8x64xbf16>
    %cst_86 = arith.constant dense<0.000000e+00> : vector<8x4xf32>
    %377 = tpu.matmul %376, %4, %cst_86 {dimension_numbers = #tpu.dot_dimension_numbers<[1], [0], [0], [1], [0, 0, 1, 1], [], []>} : vector<8x64xbf16>, vector<64x4xbf16>, vector<8x4xf32> -> vector<8x4xf32>
    %378 = arith.addf %377, %13 : vector<8x4xf32>
    %cst_87 = arith.constant 6.000000e+00 : f32
    %379 = arith.divf %216, %cst_87 : f32
    %380 = arith.addf %296, %337 : vector<8x4xf32>
    %cst_88 = arith.constant 2.000000e+00 : f32
    %381 = vector.broadcast %cst_88 : f32 to vector<8x4xf32>
    %382 = arith.mulf %381, %380 : vector<8x4xf32>
    %383 = arith.addf %255, %382 : vector<8x4xf32>
    %384 = arith.addf %383, %378 : vector<8x4xf32>
    %385 = vector.broadcast %379 : f32 to vector<8x4xf32>
    %386 = arith.mulf %385, %384 : vector<8x4xf32>
    %387 = arith.addf %206, %386 : vector<8x4xf32>
    %388 = arith.index_cast %c2_i32 : i32 to index
    %c0_89 = arith.constant 0 : index
    %c0_90 = arith.constant 0 : index
    %389 = vector.load %arg9[%388, %c0_89, %c0_90] : memref<8x8x4xf32, #tpu.memory_space<vmem>>, vector<1x8x4xf32>
    %390 = vector.shape_cast %389 : vector<1x8x4xf32> to vector<8x4xf32>
    %391 = vector.shape_cast %387 : vector<8x4xf32> to vector<1x8x4xf32>
    tpu.vector_store %arg9[%388, %c0_89, %c0_90], %391 {strides = array<i32>} : memref<8x8x4xf32, #tpu.memory_space<vmem>>, vector<1x8x4xf32>,
    %c3_i32 = arith.constant 3 : i32
    %392 = arith.index_cast %c3_i32 : i32 to index
    %393 = memref.load %arg1[%392] : memref<8xf32, #tpu.memory_space<smem>>
    %c1_i32_91 = arith.constant 1 : i32
    %394 = arith.subi %c3_i32, %c1_i32_91 : i32
    %395 = arith.index_cast %394 : i32 to index
    %396 = memref.load %arg1[%395] : memref<8xf32, #tpu.memory_space<smem>>
    %397 = arith.subf %393, %396 : f32
    %cst_92 = arith.constant 5.000000e-01 : f32
    %398 = arith.mulf %cst_92, %397 : f32
    %399 = vector.extract_strided_slice %387 {offsets = [0, 0], sizes = [8, 1], strides = [1, 1]} : vector<8x4xf32> to vector<8x1xf32>
    %400 = vector.broadcast %399 : vector<8x1xf32> to vector<8x64xf32>
    %401 = arith.mulf %400, %16 : vector<8x64xf32>
    %402 = arith.addf %7, %401 : vector<8x64xf32>
    %403 = vector.extract_strided_slice %387 {offsets = [0, 1], sizes = [8, 1], strides = [1, 1]} : vector<8x4xf32> to vector<8x1xf32>
    %404 = vector.broadcast %403 : vector<8x1xf32> to vector<8x64xf32>
    %405 = arith.mulf %404, %19 : vector<8x64xf32>
    %406 = arith.addf %402, %405 : vector<8x64xf32>
    %407 = vector.extract_strided_slice %387 {offsets = [0, 2], sizes = [8, 1], strides = [1, 1]} : vector<8x4xf32> to vector<8x1xf32>
    %408 = vector.broadcast %407 : vector<8x1xf32> to vector<8x64xf32>
    %409 = arith.mulf %408, %22 : vector<8x64xf32>
    %410 = arith.addf %406, %409 : vector<8x64xf32>
    %411 = vector.extract_strided_slice %387 {offsets = [0, 3], sizes = [8, 1], strides = [1, 1]} : vector<8x4xf32> to vector<8x1xf32>
    %412 = vector.broadcast %411 : vector<8x1xf32> to vector<8x64xf32>
    %413 = arith.mulf %412, %25 : vector<8x64xf32>
    %414 = arith.addf %410, %413 : vector<8x64xf32>
    %cst_93 = arith.constant 5.000000e-01 : f32
    %415 = vector.broadcast %cst_93 : f32 to vector<8x64xf32>
    %416 = arith.mulf %415, %414 : vector<8x64xf32>
    %cst_94 = arith.constant 5.000000e-01 : f32
    %417 = vector.broadcast %cst_94 : f32 to vector<8x64xf32>
    %418 = arith.mulf %417, %414 : vector<8x64xf32>
    %419 = math.tanh %418 : vector<8x64xf32>
    %cst_95 = arith.constant 1.000000e+00 : f32
    %420 = vector.broadcast %cst_95 : f32 to vector<8x64xf32>
    %421 = arith.addf %420, %419 : vector<8x64xf32>
    %422 = arith.mulf %416, %421 : vector<8x64xf32>
    %423 = arith.truncf %422 : vector<8x64xf32> to vector<8x64xbf16>
    %cst_96 = arith.constant dense<0.000000e+00> : vector<8x64xf32>
    %424 = tpu.matmul %423, %2, %cst_96 {dimension_numbers = #tpu.dot_dimension_numbers<[1], [0], [0], [1], [0, 0, 1, 1], [], []>} : vector<8x64xbf16>, vector<64x64xbf16>, vector<8x64xf32> -> vector<8x64xf32>
    %425 = arith.addf %424, %10 : vector<8x64xf32>
    %cst_97 = arith.constant 5.000000e-01 : f32
    %426 = vector.broadcast %cst_97 : f32 to vector<8x64xf32>
    %427 = arith.mulf %426, %425 : vector<8x64xf32>
    %cst_98 = arith.constant 5.000000e-01 : f32
    %428 = vector.broadcast %cst_98 : f32 to vector<8x64xf32>
    %429 = arith.mulf %428, %425 : vector<8x64xf32>
    %430 = math.tanh %429 : vector<8x64xf32>
    %cst_99 = arith.constant 1.000000e+00 : f32
    %431 = vector.broadcast %cst_99 : f32 to vector<8x64xf32>
    %432 = arith.addf %431, %430 : vector<8x64xf32>
    %433 = arith.mulf %427, %432 : vector<8x64xf32>
    %434 = arith.truncf %433 : vector<8x64xf32> to vector<8x64xbf16>
    %cst_100 = arith.constant dense<0.000000e+00> : vector<8x4xf32>
    %435 = tpu.matmul %434, %4, %cst_100 {dimension_numbers = #tpu.dot_dimension_numbers<[1], [0], [0], [1], [0, 0, 1, 1], [], []>} : vector<8x64xbf16>, vector<64x4xbf16>, vector<8x4xf32> -> vector<8x4xf32>
    %436 = arith.addf %435, %13 : vector<8x4xf32>
    %437 = vector.broadcast %398 : f32 to vector<8x4xf32>
    %438 = arith.mulf %437, %436 : vector<8x4xf32>
    %439 = arith.addf %387, %438 : vector<8x4xf32>
    %440 = vector.extract_strided_slice %439 {offsets = [0, 0], sizes = [8, 1], strides = [1, 1]} : vector<8x4xf32> to vector<8x1xf32>
    %441 = vector.broadcast %440 : vector<8x1xf32> to vector<8x64xf32>
    %442 = arith.mulf %441, %16 : vector<8x64xf32>
    %443 = arith.addf %7, %442 : vector<8x64xf32>
    %444 = vector.extract_strided_slice %439 {offsets = [0, 1], sizes = [8, 1], strides = [1, 1]} : vector<8x4xf32> to vector<8x1xf32>
    %445 = vector.broadcast %444 : vector<8x1xf32> to vector<8x64xf32>
    %446 = arith.mulf %445, %19 : vector<8x64xf32>
    %447 = arith.addf %443, %446 : vector<8x64xf32>
    %448 = vector.extract_strided_slice %439 {offsets = [0, 2], sizes = [8, 1], strides = [1, 1]} : vector<8x4xf32> to vector<8x1xf32>
    %449 = vector.broadcast %448 : vector<8x1xf32> to vector<8x64xf32>
    %450 = arith.mulf %449, %22 : vector<8x64xf32>
    %451 = arith.addf %447, %450 : vector<8x64xf32>
    %452 = vector.extract_strided_slice %439 {offsets = [0, 3], sizes = [8, 1], strides = [1, 1]} : vector<8x4xf32> to vector<8x1xf32>
    %453 = vector.broadcast %452 : vector<8x1xf32> to vector<8x64xf32>
    %454 = arith.mulf %453, %25 : vector<8x64xf32>
    %455 = arith.addf %451, %454 : vector<8x64xf32>
    %cst_101 = arith.constant 5.000000e-01 : f32
    %456 = vector.broadcast %cst_101 : f32 to vector<8x64xf32>
    %457 = arith.mulf %456, %455 : vector<8x64xf32>
    %cst_102 = arith.constant 5.000000e-01 : f32
    %458 = vector.broadcast %cst_102 : f32 to vector<8x64xf32>
    %459 = arith.mulf %458, %455 : vector<8x64xf32>
    %460 = math.tanh %459 : vector<8x64xf32>
    %cst_103 = arith.constant 1.000000e+00 : f32
    %461 = vector.broadcast %cst_103 : f32 to vector<8x64xf32>
    %462 = arith.addf %461, %460 : vector<8x64xf32>
    %463 = arith.mulf %457, %462 : vector<8x64xf32>
    %464 = arith.truncf %463 : vector<8x64xf32> to vector<8x64xbf16>
    %cst_104 = arith.constant dense<0.000000e+00> : vector<8x64xf32>
    %465 = tpu.matmul %464, %2, %cst_104 {dimension_numbers = #tpu.dot_dimension_numbers<[1], [0], [0], [1], [0, 0, 1, 1], [], []>} : vector<8x64xbf16>, vector<64x64xbf16>, vector<8x64xf32> -> vector<8x64xf32>
    %466 = arith.addf %465, %10 : vector<8x64xf32>
    %cst_105 = arith.constant 5.000000e-01 : f32
    %467 = vector.broadcast %cst_105 : f32 to vector<8x64xf32>
    %468 = arith.mulf %467, %466 : vector<8x64xf32>
    %cst_106 = arith.constant 5.000000e-01 : f32
    %469 = vector.broadcast %cst_106 : f32 to vector<8x64xf32>
    %470 = arith.mulf %469, %466 : vector<8x64xf32>
    %471 = math.tanh %470 : vector<8x64xf32>
    %cst_107 = arith.constant 1.000000e+00 : f32
    %472 = vector.broadcast %cst_107 : f32 to vector<8x64xf32>
    %473 = arith.addf %472, %471 : vector<8x64xf32>
    %474 = arith.mulf %468, %473 : vector<8x64xf32>
    %475 = arith.truncf %474 : vector<8x64xf32> to vector<8x64xbf16>
    %cst_108 = arith.constant dense<0.000000e+00> : vector<8x4xf32>
    %476 = tpu.matmul %475, %4, %cst_108 {dimension_numbers = #tpu.dot_dimension_numbers<[1], [0], [0], [1], [0, 0, 1, 1], [], []>} : vector<8x64xbf16>, vector<64x4xbf16>, vector<8x4xf32> -> vector<8x4xf32>
    %477 = arith.addf %476, %13 : vector<8x4xf32>
    %478 = vector.broadcast %398 : f32 to vector<8x4xf32>
    %479 = arith.mulf %478, %477 : vector<8x4xf32>
    %480 = arith.addf %387, %479 : vector<8x4xf32>
    %481 = vector.extract_strided_slice %480 {offsets = [0, 0], sizes = [8, 1], strides = [1, 1]} : vector<8x4xf32> to vector<8x1xf32>
    %482 = vector.broadcast %481 : vector<8x1xf32> to vector<8x64xf32>
    %483 = arith.mulf %482, %16 : vector<8x64xf32>
    %484 = arith.addf %7, %483 : vector<8x64xf32>
    %485 = vector.extract_strided_slice %480 {offsets = [0, 1], sizes = [8, 1], strides = [1, 1]} : vector<8x4xf32> to vector<8x1xf32>
    %486 = vector.broadcast %485 : vector<8x1xf32> to vector<8x64xf32>
    %487 = arith.mulf %486, %19 : vector<8x64xf32>
    %488 = arith.addf %484, %487 : vector<8x64xf32>
    %489 = vector.extract_strided_slice %480 {offsets = [0, 2], sizes = [8, 1], strides = [1, 1]} : vector<8x4xf32> to vector<8x1xf32>
    %490 = vector.broadcast %489 : vector<8x1xf32> to vector<8x64xf32>
    %491 = arith.mulf %490, %22 : vector<8x64xf32>
    %492 = arith.addf %488, %491 : vector<8x64xf32>
    %493 = vector.extract_strided_slice %480 {offsets = [0, 3], sizes = [8, 1], strides = [1, 1]} : vector<8x4xf32> to vector<8x1xf32>
    %494 = vector.broadcast %493 : vector<8x1xf32> to vector<8x64xf32>
    %495 = arith.mulf %494, %25 : vector<8x64xf32>
    %496 = arith.addf %492, %495 : vector<8x64xf32>
    %cst_109 = arith.constant 5.000000e-01 : f32
    %497 = vector.broadcast %cst_109 : f32 to vector<8x64xf32>
    %498 = arith.mulf %497, %496 : vector<8x64xf32>
    %cst_110 = arith.constant 5.000000e-01 : f32
    %499 = vector.broadcast %cst_110 : f32 to vector<8x64xf32>
    %500 = arith.mulf %499, %496 : vector<8x64xf32>
    %501 = math.tanh %500 : vector<8x64xf32>
    %cst_111 = arith.constant 1.000000e+00 : f32
    %502 = vector.broadcast %cst_111 : f32 to vector<8x64xf32>
    %503 = arith.addf %502, %501 : vector<8x64xf32>
    %504 = arith.mulf %498, %503 : vector<8x64xf32>
    %505 = arith.truncf %504 : vector<8x64xf32> to vector<8x64xbf16>
    %cst_112 = arith.constant dense<0.000000e+00> : vector<8x64xf32>
    %506 = tpu.matmul %505, %2, %cst_112 {dimension_numbers = #tpu.dot_dimension_numbers<[1], [0], [0], [1], [0, 0, 1, 1], [], []>} : vector<8x64xbf16>, vector<64x64xbf16>, vector<8x64xf32> -> vector<8x64xf32>
    %507 = arith.addf %506, %10 : vector<8x64xf32>
    %cst_113 = arith.constant 5.000000e-01 : f32
    %508 = vector.broadcast %cst_113 : f32 to vector<8x64xf32>
    %509 = arith.mulf %508, %507 : vector<8x64xf32>
    %cst_114 = arith.constant 5.000000e-01 : f32
    %510 = vector.broadcast %cst_114 : f32 to vector<8x64xf32>
    %511 = arith.mulf %510, %507 : vector<8x64xf32>
    %512 = math.tanh %511 : vector<8x64xf32>
    %cst_115 = arith.constant 1.000000e+00 : f32
    %513 = vector.broadcast %cst_115 : f32 to vector<8x64xf32>
    %514 = arith.addf %513, %512 : vector<8x64xf32>
    %515 = arith.mulf %509, %514 : vector<8x64xf32>
    %516 = arith.truncf %515 : vector<8x64xf32> to vector<8x64xbf16>
    %cst_116 = arith.constant dense<0.000000e+00> : vector<8x4xf32>
    %517 = tpu.matmul %516, %4, %cst_116 {dimension_numbers = #tpu.dot_dimension_numbers<[1], [0], [0], [1], [0, 0, 1, 1], [], []>} : vector<8x64xbf16>, vector<64x4xbf16>, vector<8x4xf32> -> vector<8x4xf32>
    %518 = arith.addf %517, %13 : vector<8x4xf32>
    %519 = vector.broadcast %397 : f32 to vector<8x4xf32>
    %520 = arith.mulf %519, %518 : vector<8x4xf32>
    %521 = arith.addf %387, %520 : vector<8x4xf32>
    %522 = vector.extract_strided_slice %521 {offsets = [0, 0], sizes = [8, 1], strides = [1, 1]} : vector<8x4xf32> to vector<8x1xf32>
    %523 = vector.broadcast %522 : vector<8x1xf32> to vector<8x64xf32>
    %524 = arith.mulf %523, %16 : vector<8x64xf32>
    %525 = arith.addf %7, %524 : vector<8x64xf32>
    %526 = vector.extract_strided_slice %521 {offsets = [0, 1], sizes = [8, 1], strides = [1, 1]} : vector<8x4xf32> to vector<8x1xf32>
    %527 = vector.broadcast %526 : vector<8x1xf32> to vector<8x64xf32>
    %528 = arith.mulf %527, %19 : vector<8x64xf32>
    %529 = arith.addf %525, %528 : vector<8x64xf32>
    %530 = vector.extract_strided_slice %521 {offsets = [0, 2], sizes = [8, 1], strides = [1, 1]} : vector<8x4xf32> to vector<8x1xf32>
    %531 = vector.broadcast %530 : vector<8x1xf32> to vector<8x64xf32>
    %532 = arith.mulf %531, %22 : vector<8x64xf32>
    %533 = arith.addf %529, %532 : vector<8x64xf32>
    %534 = vector.extract_strided_slice %521 {offsets = [0, 3], sizes = [8, 1], strides = [1, 1]} : vector<8x4xf32> to vector<8x1xf32>
    %535 = vector.broadcast %534 : vector<8x1xf32> to vector<8x64xf32>
    %536 = arith.mulf %535, %25 : vector<8x64xf32>
    %537 = arith.addf %533, %536 : vector<8x64xf32>
    %cst_117 = arith.constant 5.000000e-01 : f32
    %538 = vector.broadcast %cst_117 : f32 to vector<8x64xf32>
    %539 = arith.mulf %538, %537 : vector<8x64xf32>
    %cst_118 = arith.constant 5.000000e-01 : f32
    %540 = vector.broadcast %cst_118 : f32 to vector<8x64xf32>
    %541 = arith.mulf %540, %537 : vector<8x64xf32>
    %542 = math.tanh %541 : vector<8x64xf32>
    %cst_119 = arith.constant 1.000000e+00 : f32
    %543 = vector.broadcast %cst_119 : f32 to vector<8x64xf32>
    %544 = arith.addf %543, %542 : vector<8x64xf32>
    %545 = arith.mulf %539, %544 : vector<8x64xf32>
    %546 = arith.truncf %545 : vector<8x64xf32> to vector<8x64xbf16>
    %cst_120 = arith.constant dense<0.000000e+00> : vector<8x64xf32>
    %547 = tpu.matmul %546, %2, %cst_120 {dimension_numbers = #tpu.dot_dimension_numbers<[1], [0], [0], [1], [0, 0, 1, 1], [], []>} : vector<8x64xbf16>, vector<64x64xbf16>, vector<8x64xf32> -> vector<8x64xf32>
    %548 = arith.addf %547, %10 : vector<8x64xf32>
    %cst_121 = arith.constant 5.000000e-01 : f32
    %549 = vector.broadcast %cst_121 : f32 to vector<8x64xf32>
    %550 = arith.mulf %549, %548 : vector<8x64xf32>
    %cst_122 = arith.constant 5.000000e-01 : f32
    %551 = vector.broadcast %cst_122 : f32 to vector<8x64xf32>
    %552 = arith.mulf %551, %548 : vector<8x64xf32>
    %553 = math.tanh %552 : vector<8x64xf32>
    %cst_123 = arith.constant 1.000000e+00 : f32
    %554 = vector.broadcast %cst_123 : f32 to vector<8x64xf32>
    %555 = arith.addf %554, %553 : vector<8x64xf32>
    %556 = arith.mulf %550, %555 : vector<8x64xf32>
    %557 = arith.truncf %556 : vector<8x64xf32> to vector<8x64xbf16>
    %cst_124 = arith.constant dense<0.000000e+00> : vector<8x4xf32>
    %558 = tpu.matmul %557, %4, %cst_124 {dimension_numbers = #tpu.dot_dimension_numbers<[1], [0], [0], [1], [0, 0, 1, 1], [], []>} : vector<8x64xbf16>, vector<64x4xbf16>, vector<8x4xf32> -> vector<8x4xf32>
    %559 = arith.addf %558, %13 : vector<8x4xf32>
    %cst_125 = arith.constant 6.000000e+00 : f32
    %560 = arith.divf %397, %cst_125 : f32
    %561 = arith.addf %477, %518 : vector<8x4xf32>
    %cst_126 = arith.constant 2.000000e+00 : f32
    %562 = vector.broadcast %cst_126 : f32 to vector<8x4xf32>
    %563 = arith.mulf %562, %561 : vector<8x4xf32>
    %564 = arith.addf %436, %563 : vector<8x4xf32>
    %565 = arith.addf %564, %559 : vector<8x4xf32>
    %566 = vector.broadcast %560 : f32 to vector<8x4xf32>
    %567 = arith.mulf %566, %565 : vector<8x4xf32>
    %568 = arith.addf %387, %567 : vector<8x4xf32>
    %569 = arith.index_cast %c3_i32 : i32 to index
    %c0_127 = arith.constant 0 : index
    %c0_128 = arith.constant 0 : index
    %570 = vector.load %arg9[%569, %c0_127, %c0_128] : memref<8x8x4xf32, #tpu.memory_space<vmem>>, vector<1x8x4xf32>
    %571 = vector.shape_cast %570 : vector<1x8x4xf32> to vector<8x4xf32>
    %572 = vector.shape_cast %568 : vector<8x4xf32> to vector<1x8x4xf32>
    tpu.vector_store %arg9[%569, %c0_127, %c0_128], %572 {strides = array<i32>} : memref<8x8x4xf32, #tpu.memory_space<vmem>>, vector<1x8x4xf32>,
    %c4_i32 = arith.constant 4 : i32
    %573 = arith.index_cast %c4_i32 : i32 to index
    %574 = memref.load %arg1[%573] : memref<8xf32, #tpu.memory_space<smem>>
    %c1_i32_129 = arith.constant 1 : i32
    %575 = arith.subi %c4_i32, %c1_i32_129 : i32
    %576 = arith.index_cast %575 : i32 to index
    %577 = memref.load %arg1[%576] : memref<8xf32, #tpu.memory_space<smem>>
    %578 = arith.subf %574, %577 : f32
    %cst_130 = arith.constant 5.000000e-01 : f32
    %579 = arith.mulf %cst_130, %578 : f32
    %580 = vector.extract_strided_slice %568 {offsets = [0, 0], sizes = [8, 1], strides = [1, 1]} : vector<8x4xf32> to vector<8x1xf32>
    %581 = vector.broadcast %580 : vector<8x1xf32> to vector<8x64xf32>
    %582 = arith.mulf %581, %16 : vector<8x64xf32>
    %583 = arith.addf %7, %582 : vector<8x64xf32>
    %584 = vector.extract_strided_slice %568 {offsets = [0, 1], sizes = [8, 1], strides = [1, 1]} : vector<8x4xf32> to vector<8x1xf32>
    %585 = vector.broadcast %584 : vector<8x1xf32> to vector<8x64xf32>
    %586 = arith.mulf %585, %19 : vector<8x64xf32>
    %587 = arith.addf %583, %586 : vector<8x64xf32>
    %588 = vector.extract_strided_slice %568 {offsets = [0, 2], sizes = [8, 1], strides = [1, 1]} : vector<8x4xf32> to vector<8x1xf32>
    %589 = vector.broadcast %588 : vector<8x1xf32> to vector<8x64xf32>
    %590 = arith.mulf %589, %22 : vector<8x64xf32>
    %591 = arith.addf %587, %590 : vector<8x64xf32>
    %592 = vector.extract_strided_slice %568 {offsets = [0, 3], sizes = [8, 1], strides = [1, 1]} : vector<8x4xf32> to vector<8x1xf32>
    %593 = vector.broadcast %592 : vector<8x1xf32> to vector<8x64xf32>
    %594 = arith.mulf %593, %25 : vector<8x64xf32>
    %595 = arith.addf %591, %594 : vector<8x64xf32>
    %cst_131 = arith.constant 5.000000e-01 : f32
    %596 = vector.broadcast %cst_131 : f32 to vector<8x64xf32>
    %597 = arith.mulf %596, %595 : vector<8x64xf32>
    %cst_132 = arith.constant 5.000000e-01 : f32
    %598 = vector.broadcast %cst_132 : f32 to vector<8x64xf32>
    %599 = arith.mulf %598, %595 : vector<8x64xf32>
    %600 = math.tanh %599 : vector<8x64xf32>
    %cst_133 = arith.constant 1.000000e+00 : f32
    %601 = vector.broadcast %cst_133 : f32 to vector<8x64xf32>
    %602 = arith.addf %601, %600 : vector<8x64xf32>
    %603 = arith.mulf %597, %602 : vector<8x64xf32>
    %604 = arith.truncf %603 : vector<8x64xf32> to vector<8x64xbf16>
    %cst_134 = arith.constant dense<0.000000e+00> : vector<8x64xf32>
    %605 = tpu.matmul %604, %2, %cst_134 {dimension_numbers = #tpu.dot_dimension_numbers<[1], [0], [0], [1], [0, 0, 1, 1], [], []>} : vector<8x64xbf16>, vector<64x64xbf16>, vector<8x64xf32> -> vector<8x64xf32>
    %606 = arith.addf %605, %10 : vector<8x64xf32>
    %cst_135 = arith.constant 5.000000e-01 : f32
    %607 = vector.broadcast %cst_135 : f32 to vector<8x64xf32>
    %608 = arith.mulf %607, %606 : vector<8x64xf32>
    %cst_136 = arith.constant 5.000000e-01 : f32
    %609 = vector.broadcast %cst_136 : f32 to vector<8x64xf32>
    %610 = arith.mulf %609, %606 : vector<8x64xf32>
    %611 = math.tanh %610 : vector<8x64xf32>
    %cst_137 = arith.constant 1.000000e+00 : f32
    %612 = vector.broadcast %cst_137 : f32 to vector<8x64xf32>
    %613 = arith.addf %612, %611 : vector<8x64xf32>
    %614 = arith.mulf %608, %613 : vector<8x64xf32>
    %615 = arith.truncf %614 : vector<8x64xf32> to vector<8x64xbf16>
    %cst_138 = arith.constant dense<0.000000e+00> : vector<8x4xf32>
    %616 = tpu.matmul %615, %4, %cst_138 {dimension_numbers = #tpu.dot_dimension_numbers<[1], [0], [0], [1], [0, 0, 1, 1], [], []>} : vector<8x64xbf16>, vector<64x4xbf16>, vector<8x4xf32> -> vector<8x4xf32>
    %617 = arith.addf %616, %13 : vector<8x4xf32>
    %618 = vector.broadcast %579 : f32 to vector<8x4xf32>
    %619 = arith.mulf %618, %617 : vector<8x4xf32>
    %620 = arith.addf %568, %619 : vector<8x4xf32>
    %621 = vector.extract_strided_slice %620 {offsets = [0, 0], sizes = [8, 1], strides = [1, 1]} : vector<8x4xf32> to vector<8x1xf32>
    %622 = vector.broadcast %621 : vector<8x1xf32> to vector<8x64xf32>
    %623 = arith.mulf %622, %16 : vector<8x64xf32>
    %624 = arith.addf %7, %623 : vector<8x64xf32>
    %625 = vector.extract_strided_slice %620 {offsets = [0, 1], sizes = [8, 1], strides = [1, 1]} : vector<8x4xf32> to vector<8x1xf32>
    %626 = vector.broadcast %625 : vector<8x1xf32> to vector<8x64xf32>
    %627 = arith.mulf %626, %19 : vector<8x64xf32>
    %628 = arith.addf %624, %627 : vector<8x64xf32>
    %629 = vector.extract_strided_slice %620 {offsets = [0, 2], sizes = [8, 1], strides = [1, 1]} : vector<8x4xf32> to vector<8x1xf32>
    %630 = vector.broadcast %629 : vector<8x1xf32> to vector<8x64xf32>
    %631 = arith.mulf %630, %22 : vector<8x64xf32>
    %632 = arith.addf %628, %631 : vector<8x64xf32>
    %633 = vector.extract_strided_slice %620 {offsets = [0, 3], sizes = [8, 1], strides = [1, 1]} : vector<8x4xf32> to vector<8x1xf32>
    %634 = vector.broadcast %633 : vector<8x1xf32> to vector<8x64xf32>
    %635 = arith.mulf %634, %25 : vector<8x64xf32>
    %636 = arith.addf %632, %635 : vector<8x64xf32>
    %cst_139 = arith.constant 5.000000e-01 : f32
    %637 = vector.broadcast %cst_139 : f32 to vector<8x64xf32>
    %638 = arith.mulf %637, %636 : vector<8x64xf32>
    %cst_140 = arith.constant 5.000000e-01 : f32
    %639 = vector.broadcast %cst_140 : f32 to vector<8x64xf32>
    %640 = arith.mulf %639, %636 : vector<8x64xf32>
    %641 = math.tanh %640 : vector<8x64xf32>
    %cst_141 = arith.constant 1.000000e+00 : f32
    %642 = vector.broadcast %cst_141 : f32 to vector<8x64xf32>
    %643 = arith.addf %642, %641 : vector<8x64xf32>
    %644 = arith.mulf %638, %643 : vector<8x64xf32>
    %645 = arith.truncf %644 : vector<8x64xf32> to vector<8x64xbf16>
    %cst_142 = arith.constant dense<0.000000e+00> : vector<8x64xf32>
    %646 = tpu.matmul %645, %2, %cst_142 {dimension_numbers = #tpu.dot_dimension_numbers<[1], [0], [0], [1], [0, 0, 1, 1], [], []>} : vector<8x64xbf16>, vector<64x64xbf16>, vector<8x64xf32> -> vector<8x64xf32>
    %647 = arith.addf %646, %10 : vector<8x64xf32>
    %cst_143 = arith.constant 5.000000e-01 : f32
    %648 = vector.broadcast %cst_143 : f32 to vector<8x64xf32>
    %649 = arith.mulf %648, %647 : vector<8x64xf32>
    %cst_144 = arith.constant 5.000000e-01 : f32
    %650 = vector.broadcast %cst_144 : f32 to vector<8x64xf32>
    %651 = arith.mulf %650, %647 : vector<8x64xf32>
    %652 = math.tanh %651 : vector<8x64xf32>
    %cst_145 = arith.constant 1.000000e+00 : f32
    %653 = vector.broadcast %cst_145 : f32 to vector<8x64xf32>
    %654 = arith.addf %653, %652 : vector<8x64xf32>
    %655 = arith.mulf %649, %654 : vector<8x64xf32>
    %656 = arith.truncf %655 : vector<8x64xf32> to vector<8x64xbf16>
    %cst_146 = arith.constant dense<0.000000e+00> : vector<8x4xf32>
    %657 = tpu.matmul %656, %4, %cst_146 {dimension_numbers = #tpu.dot_dimension_numbers<[1], [0], [0], [1], [0, 0, 1, 1], [], []>} : vector<8x64xbf16>, vector<64x4xbf16>, vector<8x4xf32> -> vector<8x4xf32>
    %658 = arith.addf %657, %13 : vector<8x4xf32>
    %659 = vector.broadcast %579 : f32 to vector<8x4xf32>
    %660 = arith.mulf %659, %658 : vector<8x4xf32>
    %661 = arith.addf %568, %660 : vector<8x4xf32>
    %662 = vector.extract_strided_slice %661 {offsets = [0, 0], sizes = [8, 1], strides = [1, 1]} : vector<8x4xf32> to vector<8x1xf32>
    %663 = vector.broadcast %662 : vector<8x1xf32> to vector<8x64xf32>
    %664 = arith.mulf %663, %16 : vector<8x64xf32>
    %665 = arith.addf %7, %664 : vector<8x64xf32>
    %666 = vector.extract_strided_slice %661 {offsets = [0, 1], sizes = [8, 1], strides = [1, 1]} : vector<8x4xf32> to vector<8x1xf32>
    %667 = vector.broadcast %666 : vector<8x1xf32> to vector<8x64xf32>
    %668 = arith.mulf %667, %19 : vector<8x64xf32>
    %669 = arith.addf %665, %668 : vector<8x64xf32>
    %670 = vector.extract_strided_slice %661 {offsets = [0, 2], sizes = [8, 1], strides = [1, 1]} : vector<8x4xf32> to vector<8x1xf32>
    %671 = vector.broadcast %670 : vector<8x1xf32> to vector<8x64xf32>
    %672 = arith.mulf %671, %22 : vector<8x64xf32>
    %673 = arith.addf %669, %672 : vector<8x64xf32>
    %674 = vector.extract_strided_slice %661 {offsets = [0, 3], sizes = [8, 1], strides = [1, 1]} : vector<8x4xf32> to vector<8x1xf32>
    %675 = vector.broadcast %674 : vector<8x1xf32> to vector<8x64xf32>
    %676 = arith.mulf %675, %25 : vector<8x64xf32>
    %677 = arith.addf %673, %676 : vector<8x64xf32>
    %cst_147 = arith.constant 5.000000e-01 : f32
    %678 = vector.broadcast %cst_147 : f32 to vector<8x64xf32>
    %679 = arith.mulf %678, %677 : vector<8x64xf32>
    %cst_148 = arith.constant 5.000000e-01 : f32
    %680 = vector.broadcast %cst_148 : f32 to vector<8x64xf32>
    %681 = arith.mulf %680, %677 : vector<8x64xf32>
    %682 = math.tanh %681 : vector<8x64xf32>
    %cst_149 = arith.constant 1.000000e+00 : f32
    %683 = vector.broadcast %cst_149 : f32 to vector<8x64xf32>
    %684 = arith.addf %683, %682 : vector<8x64xf32>
    %685 = arith.mulf %679, %684 : vector<8x64xf32>
    %686 = arith.truncf %685 : vector<8x64xf32> to vector<8x64xbf16>
    %cst_150 = arith.constant dense<0.000000e+00> : vector<8x64xf32>
    %687 = tpu.matmul %686, %2, %cst_150 {dimension_numbers = #tpu.dot_dimension_numbers<[1], [0], [0], [1], [0, 0, 1, 1], [], []>} : vector<8x64xbf16>, vector<64x64xbf16>, vector<8x64xf32> -> vector<8x64xf32>
    %688 = arith.addf %687, %10 : vector<8x64xf32>
    %cst_151 = arith.constant 5.000000e-01 : f32
    %689 = vector.broadcast %cst_151 : f32 to vector<8x64xf32>
    %690 = arith.mulf %689, %688 : vector<8x64xf32>
    %cst_152 = arith.constant 5.000000e-01 : f32
    %691 = vector.broadcast %cst_152 : f32 to vector<8x64xf32>
    %692 = arith.mulf %691, %688 : vector<8x64xf32>
    %693 = math.tanh %692 : vector<8x64xf32>
    %cst_153 = arith.constant 1.000000e+00 : f32
    %694 = vector.broadcast %cst_153 : f32 to vector<8x64xf32>
    %695 = arith.addf %694, %693 : vector<8x64xf32>
    %696 = arith.mulf %690, %695 : vector<8x64xf32>
    %697 = arith.truncf %696 : vector<8x64xf32> to vector<8x64xbf16>
    %cst_154 = arith.constant dense<0.000000e+00> : vector<8x4xf32>
    %698 = tpu.matmul %697, %4, %cst_154 {dimension_numbers = #tpu.dot_dimension_numbers<[1], [0], [0], [1], [0, 0, 1, 1], [], []>} : vector<8x64xbf16>, vector<64x4xbf16>, vector<8x4xf32> -> vector<8x4xf32>
    %699 = arith.addf %698, %13 : vector<8x4xf32>
    %700 = vector.broadcast %578 : f32 to vector<8x4xf32>
    %701 = arith.mulf %700, %699 : vector<8x4xf32>
    %702 = arith.addf %568, %701 : vector<8x4xf32>
    %703 = vector.extract_strided_slice %702 {offsets = [0, 0], sizes = [8, 1], strides = [1, 1]} : vector<8x4xf32> to vector<8x1xf32>
    %704 = vector.broadcast %703 : vector<8x1xf32> to vector<8x64xf32>
    %705 = arith.mulf %704, %16 : vector<8x64xf32>
    %706 = arith.addf %7, %705 : vector<8x64xf32>
    %707 = vector.extract_strided_slice %702 {offsets = [0, 1], sizes = [8, 1], strides = [1, 1]} : vector<8x4xf32> to vector<8x1xf32>
    %708 = vector.broadcast %707 : vector<8x1xf32> to vector<8x64xf32>
    %709 = arith.mulf %708, %19 : vector<8x64xf32>
    %710 = arith.addf %706, %709 : vector<8x64xf32>
    %711 = vector.extract_strided_slice %702 {offsets = [0, 2], sizes = [8, 1], strides = [1, 1]} : vector<8x4xf32> to vector<8x1xf32>
    %712 = vector.broadcast %711 : vector<8x1xf32> to vector<8x64xf32>
    %713 = arith.mulf %712, %22 : vector<8x64xf32>
    %714 = arith.addf %710, %713 : vector<8x64xf32>
    %715 = vector.extract_strided_slice %702 {offsets = [0, 3], sizes = [8, 1], strides = [1, 1]} : vector<8x4xf32> to vector<8x1xf32>
    %716 = vector.broadcast %715 : vector<8x1xf32> to vector<8x64xf32>
    %717 = arith.mulf %716, %25 : vector<8x64xf32>
    %718 = arith.addf %714, %717 : vector<8x64xf32>
    %cst_155 = arith.constant 5.000000e-01 : f32
    %719 = vector.broadcast %cst_155 : f32 to vector<8x64xf32>
    %720 = arith.mulf %719, %718 : vector<8x64xf32>
    %cst_156 = arith.constant 5.000000e-01 : f32
    %721 = vector.broadcast %cst_156 : f32 to vector<8x64xf32>
    %722 = arith.mulf %721, %718 : vector<8x64xf32>
    %723 = math.tanh %722 : vector<8x64xf32>
    %cst_157 = arith.constant 1.000000e+00 : f32
    %724 = vector.broadcast %cst_157 : f32 to vector<8x64xf32>
    %725 = arith.addf %724, %723 : vector<8x64xf32>
    %726 = arith.mulf %720, %725 : vector<8x64xf32>
    %727 = arith.truncf %726 : vector<8x64xf32> to vector<8x64xbf16>
    %cst_158 = arith.constant dense<0.000000e+00> : vector<8x64xf32>
    %728 = tpu.matmul %727, %2, %cst_158 {dimension_numbers = #tpu.dot_dimension_numbers<[1], [0], [0], [1], [0, 0, 1, 1], [], []>} : vector<8x64xbf16>, vector<64x64xbf16>, vector<8x64xf32> -> vector<8x64xf32>
    %729 = arith.addf %728, %10 : vector<8x64xf32>
    %cst_159 = arith.constant 5.000000e-01 : f32
    %730 = vector.broadcast %cst_159 : f32 to vector<8x64xf32>
    %731 = arith.mulf %730, %729 : vector<8x64xf32>
    %cst_160 = arith.constant 5.000000e-01 : f32
    %732 = vector.broadcast %cst_160 : f32 to vector<8x64xf32>
    %733 = arith.mulf %732, %729 : vector<8x64xf32>
    %734 = math.tanh %733 : vector<8x64xf32>
    %cst_161 = arith.constant 1.000000e+00 : f32
    %735 = vector.broadcast %cst_161 : f32 to vector<8x64xf32>
    %736 = arith.addf %735, %734 : vector<8x64xf32>
    %737 = arith.mulf %731, %736 : vector<8x64xf32>
    %738 = arith.truncf %737 : vector<8x64xf32> to vector<8x64xbf16>
    %cst_162 = arith.constant dense<0.000000e+00> : vector<8x4xf32>
    %739 = tpu.matmul %738, %4, %cst_162 {dimension_numbers = #tpu.dot_dimension_numbers<[1], [0], [0], [1], [0, 0, 1, 1], [], []>} : vector<8x64xbf16>, vector<64x4xbf16>, vector<8x4xf32> -> vector<8x4xf32>
    %740 = arith.addf %739, %13 : vector<8x4xf32>
    %cst_163 = arith.constant 6.000000e+00 : f32
    %741 = arith.divf %578, %cst_163 : f32
    %742 = arith.addf %658, %699 : vector<8x4xf32>
    %cst_164 = arith.constant 2.000000e+00 : f32
    %743 = vector.broadcast %cst_164 : f32 to vector<8x4xf32>
    %744 = arith.mulf %743, %742 : vector<8x4xf32>
    %745 = arith.addf %617, %744 : vector<8x4xf32>
    %746 = arith.addf %745, %740 : vector<8x4xf32>
    %747 = vector.broadcast %741 : f32 to vector<8x4xf32>
    %748 = arith.mulf %747, %746 : vector<8x4xf32>
    %749 = arith.addf %568, %748 : vector<8x4xf32>
    %750 = arith.index_cast %c4_i32 : i32 to index
    %c0_165 = arith.constant 0 : index
    %c0_166 = arith.constant 0 : index
    %751 = vector.load %arg9[%750, %c0_165, %c0_166] : memref<8x8x4xf32, #tpu.memory_space<vmem>>, vector<1x8x4xf32>
    %752 = vector.shape_cast %751 : vector<1x8x4xf32> to vector<8x4xf32>
    %753 = vector.shape_cast %749 : vector<8x4xf32> to vector<1x8x4xf32>
    tpu.vector_store %arg9[%750, %c0_165, %c0_166], %753 {strides = array<i32>} : memref<8x8x4xf32, #tpu.memory_space<vmem>>, vector<1x8x4xf32>,
    %c5_i32 = arith.constant 5 : i32
    %754 = arith.index_cast %c5_i32 : i32 to index
    %755 = memref.load %arg1[%754] : memref<8xf32, #tpu.memory_space<smem>>
    %c1_i32_167 = arith.constant 1 : i32
    %756 = arith.subi %c5_i32, %c1_i32_167 : i32
    %757 = arith.index_cast %756 : i32 to index
    %758 = memref.load %arg1[%757] : memref<8xf32, #tpu.memory_space<smem>>
    %759 = arith.subf %755, %758 : f32
    %cst_168 = arith.constant 5.000000e-01 : f32
    %760 = arith.mulf %cst_168, %759 : f32
    %761 = vector.extract_strided_slice %749 {offsets = [0, 0], sizes = [8, 1], strides = [1, 1]} : vector<8x4xf32> to vector<8x1xf32>
    %762 = vector.broadcast %761 : vector<8x1xf32> to vector<8x64xf32>
    %763 = arith.mulf %762, %16 : vector<8x64xf32>
    %764 = arith.addf %7, %763 : vector<8x64xf32>
    %765 = vector.extract_strided_slice %749 {offsets = [0, 1], sizes = [8, 1], strides = [1, 1]} : vector<8x4xf32> to vector<8x1xf32>
    %766 = vector.broadcast %765 : vector<8x1xf32> to vector<8x64xf32>
    %767 = arith.mulf %766, %19 : vector<8x64xf32>
    %768 = arith.addf %764, %767 : vector<8x64xf32>
    %769 = vector.extract_strided_slice %749 {offsets = [0, 2], sizes = [8, 1], strides = [1, 1]} : vector<8x4xf32> to vector<8x1xf32>
    %770 = vector.broadcast %769 : vector<8x1xf32> to vector<8x64xf32>
    %771 = arith.mulf %770, %22 : vector<8x64xf32>
    %772 = arith.addf %768, %771 : vector<8x64xf32>
    %773 = vector.extract_strided_slice %749 {offsets = [0, 3], sizes = [8, 1], strides = [1, 1]} : vector<8x4xf32> to vector<8x1xf32>
    %774 = vector.broadcast %773 : vector<8x1xf32> to vector<8x64xf32>
    %775 = arith.mulf %774, %25 : vector<8x64xf32>
    %776 = arith.addf %772, %775 : vector<8x64xf32>
    %cst_169 = arith.constant 5.000000e-01 : f32
    %777 = vector.broadcast %cst_169 : f32 to vector<8x64xf32>
    %778 = arith.mulf %777, %776 : vector<8x64xf32>
    %cst_170 = arith.constant 5.000000e-01 : f32
    %779 = vector.broadcast %cst_170 : f32 to vector<8x64xf32>
    %780 = arith.mulf %779, %776 : vector<8x64xf32>
    %781 = math.tanh %780 : vector<8x64xf32>
    %cst_171 = arith.constant 1.000000e+00 : f32
    %782 = vector.broadcast %cst_171 : f32 to vector<8x64xf32>
    %783 = arith.addf %782, %781 : vector<8x64xf32>
    %784 = arith.mulf %778, %783 : vector<8x64xf32>
    %785 = arith.truncf %784 : vector<8x64xf32> to vector<8x64xbf16>
    %cst_172 = arith.constant dense<0.000000e+00> : vector<8x64xf32>
    %786 = tpu.matmul %785, %2, %cst_172 {dimension_numbers = #tpu.dot_dimension_numbers<[1], [0], [0], [1], [0, 0, 1, 1], [], []>} : vector<8x64xbf16>, vector<64x64xbf16>, vector<8x64xf32> -> vector<8x64xf32>
    %787 = arith.addf %786, %10 : vector<8x64xf32>
    %cst_173 = arith.constant 5.000000e-01 : f32
    %788 = vector.broadcast %cst_173 : f32 to vector<8x64xf32>
    %789 = arith.mulf %788, %787 : vector<8x64xf32>
    %cst_174 = arith.constant 5.000000e-01 : f32
    %790 = vector.broadcast %cst_174 : f32 to vector<8x64xf32>
    %791 = arith.mulf %790, %787 : vector<8x64xf32>
    %792 = math.tanh %791 : vector<8x64xf32>
    %cst_175 = arith.constant 1.000000e+00 : f32
    %793 = vector.broadcast %cst_175 : f32 to vector<8x64xf32>
    %794 = arith.addf %793, %792 : vector<8x64xf32>
    %795 = arith.mulf %789, %794 : vector<8x64xf32>
    %796 = arith.truncf %795 : vector<8x64xf32> to vector<8x64xbf16>
    %cst_176 = arith.constant dense<0.000000e+00> : vector<8x4xf32>
    %797 = tpu.matmul %796, %4, %cst_176 {dimension_numbers = #tpu.dot_dimension_numbers<[1], [0], [0], [1], [0, 0, 1, 1], [], []>} : vector<8x64xbf16>, vector<64x4xbf16>, vector<8x4xf32> -> vector<8x4xf32>
    %798 = arith.addf %797, %13 : vector<8x4xf32>
    %799 = vector.broadcast %760 : f32 to vector<8x4xf32>
    %800 = arith.mulf %799, %798 : vector<8x4xf32>
    %801 = arith.addf %749, %800 : vector<8x4xf32>
    %802 = vector.extract_strided_slice %801 {offsets = [0, 0], sizes = [8, 1], strides = [1, 1]} : vector<8x4xf32> to vector<8x1xf32>
    %803 = vector.broadcast %802 : vector<8x1xf32> to vector<8x64xf32>
    %804 = arith.mulf %803, %16 : vector<8x64xf32>
    %805 = arith.addf %7, %804 : vector<8x64xf32>
    %806 = vector.extract_strided_slice %801 {offsets = [0, 1], sizes = [8, 1], strides = [1, 1]} : vector<8x4xf32> to vector<8x1xf32>
    %807 = vector.broadcast %806 : vector<8x1xf32> to vector<8x64xf32>
    %808 = arith.mulf %807, %19 : vector<8x64xf32>
    %809 = arith.addf %805, %808 : vector<8x64xf32>
    %810 = vector.extract_strided_slice %801 {offsets = [0, 2], sizes = [8, 1], strides = [1, 1]} : vector<8x4xf32> to vector<8x1xf32>
    %811 = vector.broadcast %810 : vector<8x1xf32> to vector<8x64xf32>
    %812 = arith.mulf %811, %22 : vector<8x64xf32>
    %813 = arith.addf %809, %812 : vector<8x64xf32>
    %814 = vector.extract_strided_slice %801 {offsets = [0, 3], sizes = [8, 1], strides = [1, 1]} : vector<8x4xf32> to vector<8x1xf32>
    %815 = vector.broadcast %814 : vector<8x1xf32> to vector<8x64xf32>
    %816 = arith.mulf %815, %25 : vector<8x64xf32>
    %817 = arith.addf %813, %816 : vector<8x64xf32>
    %cst_177 = arith.constant 5.000000e-01 : f32
    %818 = vector.broadcast %cst_177 : f32 to vector<8x64xf32>
    %819 = arith.mulf %818, %817 : vector<8x64xf32>
    %cst_178 = arith.constant 5.000000e-01 : f32
    %820 = vector.broadcast %cst_178 : f32 to vector<8x64xf32>
    %821 = arith.mulf %820, %817 : vector<8x64xf32>
    %822 = math.tanh %821 : vector<8x64xf32>
    %cst_179 = arith.constant 1.000000e+00 : f32
    %823 = vector.broadcast %cst_179 : f32 to vector<8x64xf32>
    %824 = arith.addf %823, %822 : vector<8x64xf32>
    %825 = arith.mulf %819, %824 : vector<8x64xf32>
    %826 = arith.truncf %825 : vector<8x64xf32> to vector<8x64xbf16>
    %cst_180 = arith.constant dense<0.000000e+00> : vector<8x64xf32>
    %827 = tpu.matmul %826, %2, %cst_180 {dimension_numbers = #tpu.dot_dimension_numbers<[1], [0], [0], [1], [0, 0, 1, 1], [], []>} : vector<8x64xbf16>, vector<64x64xbf16>, vector<8x64xf32> -> vector<8x64xf32>
    %828 = arith.addf %827, %10 : vector<8x64xf32>
    %cst_181 = arith.constant 5.000000e-01 : f32
    %829 = vector.broadcast %cst_181 : f32 to vector<8x64xf32>
    %830 = arith.mulf %829, %828 : vector<8x64xf32>
    %cst_182 = arith.constant 5.000000e-01 : f32
    %831 = vector.broadcast %cst_182 : f32 to vector<8x64xf32>
    %832 = arith.mulf %831, %828 : vector<8x64xf32>
    %833 = math.tanh %832 : vector<8x64xf32>
    %cst_183 = arith.constant 1.000000e+00 : f32
    %834 = vector.broadcast %cst_183 : f32 to vector<8x64xf32>
    %835 = arith.addf %834, %833 : vector<8x64xf32>
    %836 = arith.mulf %830, %835 : vector<8x64xf32>
    %837 = arith.truncf %836 : vector<8x64xf32> to vector<8x64xbf16>
    %cst_184 = arith.constant dense<0.000000e+00> : vector<8x4xf32>
    %838 = tpu.matmul %837, %4, %cst_184 {dimension_numbers = #tpu.dot_dimension_numbers<[1], [0], [0], [1], [0, 0, 1, 1], [], []>} : vector<8x64xbf16>, vector<64x4xbf16>, vector<8x4xf32> -> vector<8x4xf32>
    %839 = arith.addf %838, %13 : vector<8x4xf32>
    %840 = vector.broadcast %760 : f32 to vector<8x4xf32>
    %841 = arith.mulf %840, %839 : vector<8x4xf32>
    %842 = arith.addf %749, %841 : vector<8x4xf32>
    %843 = vector.extract_strided_slice %842 {offsets = [0, 0], sizes = [8, 1], strides = [1, 1]} : vector<8x4xf32> to vector<8x1xf32>
    %844 = vector.broadcast %843 : vector<8x1xf32> to vector<8x64xf32>
    %845 = arith.mulf %844, %16 : vector<8x64xf32>
    %846 = arith.addf %7, %845 : vector<8x64xf32>
    %847 = vector.extract_strided_slice %842 {offsets = [0, 1], sizes = [8, 1], strides = [1, 1]} : vector<8x4xf32> to vector<8x1xf32>
    %848 = vector.broadcast %847 : vector<8x1xf32> to vector<8x64xf32>
    %849 = arith.mulf %848, %19 : vector<8x64xf32>
    %850 = arith.addf %846, %849 : vector<8x64xf32>
    %851 = vector.extract_strided_slice %842 {offsets = [0, 2], sizes = [8, 1], strides = [1, 1]} : vector<8x4xf32> to vector<8x1xf32>
    %852 = vector.broadcast %851 : vector<8x1xf32> to vector<8x64xf32>
    %853 = arith.mulf %852, %22 : vector<8x64xf32>
    %854 = arith.addf %850, %853 : vector<8x64xf32>
    %855 = vector.extract_strided_slice %842 {offsets = [0, 3], sizes = [8, 1], strides = [1, 1]} : vector<8x4xf32> to vector<8x1xf32>
    %856 = vector.broadcast %855 : vector<8x1xf32> to vector<8x64xf32>
    %857 = arith.mulf %856, %25 : vector<8x64xf32>
    %858 = arith.addf %854, %857 : vector<8x64xf32>
    %cst_185 = arith.constant 5.000000e-01 : f32
    %859 = vector.broadcast %cst_185 : f32 to vector<8x64xf32>
    %860 = arith.mulf %859, %858 : vector<8x64xf32>
    %cst_186 = arith.constant 5.000000e-01 : f32
    %861 = vector.broadcast %cst_186 : f32 to vector<8x64xf32>
    %862 = arith.mulf %861, %858 : vector<8x64xf32>
    %863 = math.tanh %862 : vector<8x64xf32>
    %cst_187 = arith.constant 1.000000e+00 : f32
    %864 = vector.broadcast %cst_187 : f32 to vector<8x64xf32>
    %865 = arith.addf %864, %863 : vector<8x64xf32>
    %866 = arith.mulf %860, %865 : vector<8x64xf32>
    %867 = arith.truncf %866 : vector<8x64xf32> to vector<8x64xbf16>
    %cst_188 = arith.constant dense<0.000000e+00> : vector<8x64xf32>
    %868 = tpu.matmul %867, %2, %cst_188 {dimension_numbers = #tpu.dot_dimension_numbers<[1], [0], [0], [1], [0, 0, 1, 1], [], []>} : vector<8x64xbf16>, vector<64x64xbf16>, vector<8x64xf32> -> vector<8x64xf32>
    %869 = arith.addf %868, %10 : vector<8x64xf32>
    %cst_189 = arith.constant 5.000000e-01 : f32
    %870 = vector.broadcast %cst_189 : f32 to vector<8x64xf32>
    %871 = arith.mulf %870, %869 : vector<8x64xf32>
    %cst_190 = arith.constant 5.000000e-01 : f32
    %872 = vector.broadcast %cst_190 : f32 to vector<8x64xf32>
    %873 = arith.mulf %872, %869 : vector<8x64xf32>
    %874 = math.tanh %873 : vector<8x64xf32>
    %cst_191 = arith.constant 1.000000e+00 : f32
    %875 = vector.broadcast %cst_191 : f32 to vector<8x64xf32>
    %876 = arith.addf %875, %874 : vector<8x64xf32>
    %877 = arith.mulf %871, %876 : vector<8x64xf32>
    %878 = arith.truncf %877 : vector<8x64xf32> to vector<8x64xbf16>
    %cst_192 = arith.constant dense<0.000000e+00> : vector<8x4xf32>
    %879 = tpu.matmul %878, %4, %cst_192 {dimension_numbers = #tpu.dot_dimension_numbers<[1], [0], [0], [1], [0, 0, 1, 1], [], []>} : vector<8x64xbf16>, vector<64x4xbf16>, vector<8x4xf32> -> vector<8x4xf32>
    %880 = arith.addf %879, %13 : vector<8x4xf32>
    %881 = vector.broadcast %759 : f32 to vector<8x4xf32>
    %882 = arith.mulf %881, %880 : vector<8x4xf32>
    %883 = arith.addf %749, %882 : vector<8x4xf32>
    %884 = vector.extract_strided_slice %883 {offsets = [0, 0], sizes = [8, 1], strides = [1, 1]} : vector<8x4xf32> to vector<8x1xf32>
    %885 = vector.broadcast %884 : vector<8x1xf32> to vector<8x64xf32>
    %886 = arith.mulf %885, %16 : vector<8x64xf32>
    %887 = arith.addf %7, %886 : vector<8x64xf32>
    %888 = vector.extract_strided_slice %883 {offsets = [0, 1], sizes = [8, 1], strides = [1, 1]} : vector<8x4xf32> to vector<8x1xf32>
    %889 = vector.broadcast %888 : vector<8x1xf32> to vector<8x64xf32>
    %890 = arith.mulf %889, %19 : vector<8x64xf32>
    %891 = arith.addf %887, %890 : vector<8x64xf32>
    %892 = vector.extract_strided_slice %883 {offsets = [0, 2], sizes = [8, 1], strides = [1, 1]} : vector<8x4xf32> to vector<8x1xf32>
    %893 = vector.broadcast %892 : vector<8x1xf32> to vector<8x64xf32>
    %894 = arith.mulf %893, %22 : vector<8x64xf32>
    %895 = arith.addf %891, %894 : vector<8x64xf32>
    %896 = vector.extract_strided_slice %883 {offsets = [0, 3], sizes = [8, 1], strides = [1, 1]} : vector<8x4xf32> to vector<8x1xf32>
    %897 = vector.broadcast %896 : vector<8x1xf32> to vector<8x64xf32>
    %898 = arith.mulf %897, %25 : vector<8x64xf32>
    %899 = arith.addf %895, %898 : vector<8x64xf32>
    %cst_193 = arith.constant 5.000000e-01 : f32
    %900 = vector.broadcast %cst_193 : f32 to vector<8x64xf32>
    %901 = arith.mulf %900, %899 : vector<8x64xf32>
    %cst_194 = arith.constant 5.000000e-01 : f32
    %902 = vector.broadcast %cst_194 : f32 to vector<8x64xf32>
    %903 = arith.mulf %902, %899 : vector<8x64xf32>
    %904 = math.tanh %903 : vector<8x64xf32>
    %cst_195 = arith.constant 1.000000e+00 : f32
    %905 = vector.broadcast %cst_195 : f32 to vector<8x64xf32>
    %906 = arith.addf %905, %904 : vector<8x64xf32>
    %907 = arith.mulf %901, %906 : vector<8x64xf32>
    %908 = arith.truncf %907 : vector<8x64xf32> to vector<8x64xbf16>
    %cst_196 = arith.constant dense<0.000000e+00> : vector<8x64xf32>
    %909 = tpu.matmul %908, %2, %cst_196 {dimension_numbers = #tpu.dot_dimension_numbers<[1], [0], [0], [1], [0, 0, 1, 1], [], []>} : vector<8x64xbf16>, vector<64x64xbf16>, vector<8x64xf32> -> vector<8x64xf32>
    %910 = arith.addf %909, %10 : vector<8x64xf32>
    %cst_197 = arith.constant 5.000000e-01 : f32
    %911 = vector.broadcast %cst_197 : f32 to vector<8x64xf32>
    %912 = arith.mulf %911, %910 : vector<8x64xf32>
    %cst_198 = arith.constant 5.000000e-01 : f32
    %913 = vector.broadcast %cst_198 : f32 to vector<8x64xf32>
    %914 = arith.mulf %913, %910 : vector<8x64xf32>
    %915 = math.tanh %914 : vector<8x64xf32>
    %cst_199 = arith.constant 1.000000e+00 : f32
    %916 = vector.broadcast %cst_199 : f32 to vector<8x64xf32>
    %917 = arith.addf %916, %915 : vector<8x64xf32>
    %918 = arith.mulf %912, %917 : vector<8x64xf32>
    %919 = arith.truncf %918 : vector<8x64xf32> to vector<8x64xbf16>
    %cst_200 = arith.constant dense<0.000000e+00> : vector<8x4xf32>
    %920 = tpu.matmul %919, %4, %cst_200 {dimension_numbers = #tpu.dot_dimension_numbers<[1], [0], [0], [1], [0, 0, 1, 1], [], []>} : vector<8x64xbf16>, vector<64x4xbf16>, vector<8x4xf32> -> vector<8x4xf32>
    %921 = arith.addf %920, %13 : vector<8x4xf32>
    %cst_201 = arith.constant 6.000000e+00 : f32
    %922 = arith.divf %759, %cst_201 : f32
    %923 = arith.addf %839, %880 : vector<8x4xf32>
    %cst_202 = arith.constant 2.000000e+00 : f32
    %924 = vector.broadcast %cst_202 : f32 to vector<8x4xf32>
    %925 = arith.mulf %924, %923 : vector<8x4xf32>
    %926 = arith.addf %798, %925 : vector<8x4xf32>
    %927 = arith.addf %926, %921 : vector<8x4xf32>
    %928 = vector.broadcast %922 : f32 to vector<8x4xf32>
    %929 = arith.mulf %928, %927 : vector<8x4xf32>
    %930 = arith.addf %749, %929 : vector<8x4xf32>
    %931 = arith.index_cast %c5_i32 : i32 to index
    %c0_203 = arith.constant 0 : index
    %c0_204 = arith.constant 0 : index
    %932 = vector.load %arg9[%931, %c0_203, %c0_204] : memref<8x8x4xf32, #tpu.memory_space<vmem>>, vector<1x8x4xf32>
    %933 = vector.shape_cast %932 : vector<1x8x4xf32> to vector<8x4xf32>
    %934 = vector.shape_cast %930 : vector<8x4xf32> to vector<1x8x4xf32>
    tpu.vector_store %arg9[%931, %c0_203, %c0_204], %934 {strides = array<i32>} : memref<8x8x4xf32, #tpu.memory_space<vmem>>, vector<1x8x4xf32>,
    %c6_i32 = arith.constant 6 : i32
    %935 = arith.index_cast %c6_i32 : i32 to index
    %936 = memref.load %arg1[%935] : memref<8xf32, #tpu.memory_space<smem>>
    %c1_i32_205 = arith.constant 1 : i32
    %937 = arith.subi %c6_i32, %c1_i32_205 : i32
    %938 = arith.index_cast %937 : i32 to index
    %939 = memref.load %arg1[%938] : memref<8xf32, #tpu.memory_space<smem>>
    %940 = arith.subf %936, %939 : f32
    %cst_206 = arith.constant 5.000000e-01 : f32
    %941 = arith.mulf %cst_206, %940 : f32
    %942 = vector.extract_strided_slice %930 {offsets = [0, 0], sizes = [8, 1], strides = [1, 1]} : vector<8x4xf32> to vector<8x1xf32>
    %943 = vector.broadcast %942 : vector<8x1xf32> to vector<8x64xf32>
    %944 = arith.mulf %943, %16 : vector<8x64xf32>
    %945 = arith.addf %7, %944 : vector<8x64xf32>
    %946 = vector.extract_strided_slice %930 {offsets = [0, 1], sizes = [8, 1], strides = [1, 1]} : vector<8x4xf32> to vector<8x1xf32>
    %947 = vector.broadcast %946 : vector<8x1xf32> to vector<8x64xf32>
    %948 = arith.mulf %947, %19 : vector<8x64xf32>
    %949 = arith.addf %945, %948 : vector<8x64xf32>
    %950 = vector.extract_strided_slice %930 {offsets = [0, 2], sizes = [8, 1], strides = [1, 1]} : vector<8x4xf32> to vector<8x1xf32>
    %951 = vector.broadcast %950 : vector<8x1xf32> to vector<8x64xf32>
    %952 = arith.mulf %951, %22 : vector<8x64xf32>
    %953 = arith.addf %949, %952 : vector<8x64xf32>
    %954 = vector.extract_strided_slice %930 {offsets = [0, 3], sizes = [8, 1], strides = [1, 1]} : vector<8x4xf32> to vector<8x1xf32>
    %955 = vector.broadcast %954 : vector<8x1xf32> to vector<8x64xf32>
    %956 = arith.mulf %955, %25 : vector<8x64xf32>
    %957 = arith.addf %953, %956 : vector<8x64xf32>
    %cst_207 = arith.constant 5.000000e-01 : f32
    %958 = vector.broadcast %cst_207 : f32 to vector<8x64xf32>
    %959 = arith.mulf %958, %957 : vector<8x64xf32>
    %cst_208 = arith.constant 5.000000e-01 : f32
    %960 = vector.broadcast %cst_208 : f32 to vector<8x64xf32>
    %961 = arith.mulf %960, %957 : vector<8x64xf32>
    %962 = math.tanh %961 : vector<8x64xf32>
    %cst_209 = arith.constant 1.000000e+00 : f32
    %963 = vector.broadcast %cst_209 : f32 to vector<8x64xf32>
    %964 = arith.addf %963, %962 : vector<8x64xf32>
    %965 = arith.mulf %959, %964 : vector<8x64xf32>
    %966 = arith.truncf %965 : vector<8x64xf32> to vector<8x64xbf16>
    %cst_210 = arith.constant dense<0.000000e+00> : vector<8x64xf32>
    %967 = tpu.matmul %966, %2, %cst_210 {dimension_numbers = #tpu.dot_dimension_numbers<[1], [0], [0], [1], [0, 0, 1, 1], [], []>} : vector<8x64xbf16>, vector<64x64xbf16>, vector<8x64xf32> -> vector<8x64xf32>
    %968 = arith.addf %967, %10 : vector<8x64xf32>
    %cst_211 = arith.constant 5.000000e-01 : f32
    %969 = vector.broadcast %cst_211 : f32 to vector<8x64xf32>
    %970 = arith.mulf %969, %968 : vector<8x64xf32>
    %cst_212 = arith.constant 5.000000e-01 : f32
    %971 = vector.broadcast %cst_212 : f32 to vector<8x64xf32>
    %972 = arith.mulf %971, %968 : vector<8x64xf32>
    %973 = math.tanh %972 : vector<8x64xf32>
    %cst_213 = arith.constant 1.000000e+00 : f32
    %974 = vector.broadcast %cst_213 : f32 to vector<8x64xf32>
    %975 = arith.addf %974, %973 : vector<8x64xf32>
    %976 = arith.mulf %970, %975 : vector<8x64xf32>
    %977 = arith.truncf %976 : vector<8x64xf32> to vector<8x64xbf16>
    %cst_214 = arith.constant dense<0.000000e+00> : vector<8x4xf32>
    %978 = tpu.matmul %977, %4, %cst_214 {dimension_numbers = #tpu.dot_dimension_numbers<[1], [0], [0], [1], [0, 0, 1, 1], [], []>} : vector<8x64xbf16>, vector<64x4xbf16>, vector<8x4xf32> -> vector<8x4xf32>
    %979 = arith.addf %978, %13 : vector<8x4xf32>
    %980 = vector.broadcast %941 : f32 to vector<8x4xf32>
    %981 = arith.mulf %980, %979 : vector<8x4xf32>
    %982 = arith.addf %930, %981 : vector<8x4xf32>
    %983 = vector.extract_strided_slice %982 {offsets = [0, 0], sizes = [8, 1], strides = [1, 1]} : vector<8x4xf32> to vector<8x1xf32>
    %984 = vector.broadcast %983 : vector<8x1xf32> to vector<8x64xf32>
    %985 = arith.mulf %984, %16 : vector<8x64xf32>
    %986 = arith.addf %7, %985 : vector<8x64xf32>
    %987 = vector.extract_strided_slice %982 {offsets = [0, 1], sizes = [8, 1], strides = [1, 1]} : vector<8x4xf32> to vector<8x1xf32>
    %988 = vector.broadcast %987 : vector<8x1xf32> to vector<8x64xf32>
    %989 = arith.mulf %988, %19 : vector<8x64xf32>
    %990 = arith.addf %986, %989 : vector<8x64xf32>
    %991 = vector.extract_strided_slice %982 {offsets = [0, 2], sizes = [8, 1], strides = [1, 1]} : vector<8x4xf32> to vector<8x1xf32>
    %992 = vector.broadcast %991 : vector<8x1xf32> to vector<8x64xf32>
    %993 = arith.mulf %992, %22 : vector<8x64xf32>
    %994 = arith.addf %990, %993 : vector<8x64xf32>
    %995 = vector.extract_strided_slice %982 {offsets = [0, 3], sizes = [8, 1], strides = [1, 1]} : vector<8x4xf32> to vector<8x1xf32>
    %996 = vector.broadcast %995 : vector<8x1xf32> to vector<8x64xf32>
    %997 = arith.mulf %996, %25 : vector<8x64xf32>
    %998 = arith.addf %994, %997 : vector<8x64xf32>
    %cst_215 = arith.constant 5.000000e-01 : f32
    %999 = vector.broadcast %cst_215 : f32 to vector<8x64xf32>
    %1000 = arith.mulf %999, %998 : vector<8x64xf32>
    %cst_216 = arith.constant 5.000000e-01 : f32
    %1001 = vector.broadcast %cst_216 : f32 to vector<8x64xf32>
    %1002 = arith.mulf %1001, %998 : vector<8x64xf32>
    %1003 = math.tanh %1002 : vector<8x64xf32>
    %cst_217 = arith.constant 1.000000e+00 : f32
    %1004 = vector.broadcast %cst_217 : f32 to vector<8x64xf32>
    %1005 = arith.addf %1004, %1003 : vector<8x64xf32>
    %1006 = arith.mulf %1000, %1005 : vector<8x64xf32>
    %1007 = arith.truncf %1006 : vector<8x64xf32> to vector<8x64xbf16>
    %cst_218 = arith.constant dense<0.000000e+00> : vector<8x64xf32>
    %1008 = tpu.matmul %1007, %2, %cst_218 {dimension_numbers = #tpu.dot_dimension_numbers<[1], [0], [0], [1], [0, 0, 1, 1], [], []>} : vector<8x64xbf16>, vector<64x64xbf16>, vector<8x64xf32> -> vector<8x64xf32>
    %1009 = arith.addf %1008, %10 : vector<8x64xf32>
    %cst_219 = arith.constant 5.000000e-01 : f32
    %1010 = vector.broadcast %cst_219 : f32 to vector<8x64xf32>
    %1011 = arith.mulf %1010, %1009 : vector<8x64xf32>
    %cst_220 = arith.constant 5.000000e-01 : f32
    %1012 = vector.broadcast %cst_220 : f32 to vector<8x64xf32>
    %1013 = arith.mulf %1012, %1009 : vector<8x64xf32>
    %1014 = math.tanh %1013 : vector<8x64xf32>
    %cst_221 = arith.constant 1.000000e+00 : f32
    %1015 = vector.broadcast %cst_221 : f32 to vector<8x64xf32>
    %1016 = arith.addf %1015, %1014 : vector<8x64xf32>
    %1017 = arith.mulf %1011, %1016 : vector<8x64xf32>
    %1018 = arith.truncf %1017 : vector<8x64xf32> to vector<8x64xbf16>
    %cst_222 = arith.constant dense<0.000000e+00> : vector<8x4xf32>
    %1019 = tpu.matmul %1018, %4, %cst_222 {dimension_numbers = #tpu.dot_dimension_numbers<[1], [0], [0], [1], [0, 0, 1, 1], [], []>} : vector<8x64xbf16>, vector<64x4xbf16>, vector<8x4xf32> -> vector<8x4xf32>
    %1020 = arith.addf %1019, %13 : vector<8x4xf32>
    %1021 = vector.broadcast %941 : f32 to vector<8x4xf32>
    %1022 = arith.mulf %1021, %1020 : vector<8x4xf32>
    %1023 = arith.addf %930, %1022 : vector<8x4xf32>
    %1024 = vector.extract_strided_slice %1023 {offsets = [0, 0], sizes = [8, 1], strides = [1, 1]} : vector<8x4xf32> to vector<8x1xf32>
    %1025 = vector.broadcast %1024 : vector<8x1xf32> to vector<8x64xf32>
    %1026 = arith.mulf %1025, %16 : vector<8x64xf32>
    %1027 = arith.addf %7, %1026 : vector<8x64xf32>
    %1028 = vector.extract_strided_slice %1023 {offsets = [0, 1], sizes = [8, 1], strides = [1, 1]} : vector<8x4xf32> to vector<8x1xf32>
    %1029 = vector.broadcast %1028 : vector<8x1xf32> to vector<8x64xf32>
    %1030 = arith.mulf %1029, %19 : vector<8x64xf32>
    %1031 = arith.addf %1027, %1030 : vector<8x64xf32>
    %1032 = vector.extract_strided_slice %1023 {offsets = [0, 2], sizes = [8, 1], strides = [1, 1]} : vector<8x4xf32> to vector<8x1xf32>
    %1033 = vector.broadcast %1032 : vector<8x1xf32> to vector<8x64xf32>
    %1034 = arith.mulf %1033, %22 : vector<8x64xf32>
    %1035 = arith.addf %1031, %1034 : vector<8x64xf32>
    %1036 = vector.extract_strided_slice %1023 {offsets = [0, 3], sizes = [8, 1], strides = [1, 1]} : vector<8x4xf32> to vector<8x1xf32>
    %1037 = vector.broadcast %1036 : vector<8x1xf32> to vector<8x64xf32>
    %1038 = arith.mulf %1037, %25 : vector<8x64xf32>
    %1039 = arith.addf %1035, %1038 : vector<8x64xf32>
    %cst_223 = arith.constant 5.000000e-01 : f32
    %1040 = vector.broadcast %cst_223 : f32 to vector<8x64xf32>
    %1041 = arith.mulf %1040, %1039 : vector<8x64xf32>
    %cst_224 = arith.constant 5.000000e-01 : f32
    %1042 = vector.broadcast %cst_224 : f32 to vector<8x64xf32>
    %1043 = arith.mulf %1042, %1039 : vector<8x64xf32>
    %1044 = math.tanh %1043 : vector<8x64xf32>
    %cst_225 = arith.constant 1.000000e+00 : f32
    %1045 = vector.broadcast %cst_225 : f32 to vector<8x64xf32>
    %1046 = arith.addf %1045, %1044 : vector<8x64xf32>
    %1047 = arith.mulf %1041, %1046 : vector<8x64xf32>
    %1048 = arith.truncf %1047 : vector<8x64xf32> to vector<8x64xbf16>
    %cst_226 = arith.constant dense<0.000000e+00> : vector<8x64xf32>
    %1049 = tpu.matmul %1048, %2, %cst_226 {dimension_numbers = #tpu.dot_dimension_numbers<[1], [0], [0], [1], [0, 0, 1, 1], [], []>} : vector<8x64xbf16>, vector<64x64xbf16>, vector<8x64xf32> -> vector<8x64xf32>
    %1050 = arith.addf %1049, %10 : vector<8x64xf32>
    %cst_227 = arith.constant 5.000000e-01 : f32
    %1051 = vector.broadcast %cst_227 : f32 to vector<8x64xf32>
    %1052 = arith.mulf %1051, %1050 : vector<8x64xf32>
    %cst_228 = arith.constant 5.000000e-01 : f32
    %1053 = vector.broadcast %cst_228 : f32 to vector<8x64xf32>
    %1054 = arith.mulf %1053, %1050 : vector<8x64xf32>
    %1055 = math.tanh %1054 : vector<8x64xf32>
    %cst_229 = arith.constant 1.000000e+00 : f32
    %1056 = vector.broadcast %cst_229 : f32 to vector<8x64xf32>
    %1057 = arith.addf %1056, %1055 : vector<8x64xf32>
    %1058 = arith.mulf %1052, %1057 : vector<8x64xf32>
    %1059 = arith.truncf %1058 : vector<8x64xf32> to vector<8x64xbf16>
    %cst_230 = arith.constant dense<0.000000e+00> : vector<8x4xf32>
    %1060 = tpu.matmul %1059, %4, %cst_230 {dimension_numbers = #tpu.dot_dimension_numbers<[1], [0], [0], [1], [0, 0, 1, 1], [], []>} : vector<8x64xbf16>, vector<64x4xbf16>, vector<8x4xf32> -> vector<8x4xf32>
    %1061 = arith.addf %1060, %13 : vector<8x4xf32>
    %1062 = vector.broadcast %940 : f32 to vector<8x4xf32>
    %1063 = arith.mulf %1062, %1061 : vector<8x4xf32>
    %1064 = arith.addf %930, %1063 : vector<8x4xf32>
    %1065 = vector.extract_strided_slice %1064 {offsets = [0, 0], sizes = [8, 1], strides = [1, 1]} : vector<8x4xf32> to vector<8x1xf32>
    %1066 = vector.broadcast %1065 : vector<8x1xf32> to vector<8x64xf32>
    %1067 = arith.mulf %1066, %16 : vector<8x64xf32>
    %1068 = arith.addf %7, %1067 : vector<8x64xf32>
    %1069 = vector.extract_strided_slice %1064 {offsets = [0, 1], sizes = [8, 1], strides = [1, 1]} : vector<8x4xf32> to vector<8x1xf32>
    %1070 = vector.broadcast %1069 : vector<8x1xf32> to vector<8x64xf32>
    %1071 = arith.mulf %1070, %19 : vector<8x64xf32>
    %1072 = arith.addf %1068, %1071 : vector<8x64xf32>
    %1073 = vector.extract_strided_slice %1064 {offsets = [0, 2], sizes = [8, 1], strides = [1, 1]} : vector<8x4xf32> to vector<8x1xf32>
    %1074 = vector.broadcast %1073 : vector<8x1xf32> to vector<8x64xf32>
    %1075 = arith.mulf %1074, %22 : vector<8x64xf32>
    %1076 = arith.addf %1072, %1075 : vector<8x64xf32>
    %1077 = vector.extract_strided_slice %1064 {offsets = [0, 3], sizes = [8, 1], strides = [1, 1]} : vector<8x4xf32> to vector<8x1xf32>
    %1078 = vector.broadcast %1077 : vector<8x1xf32> to vector<8x64xf32>
    %1079 = arith.mulf %1078, %25 : vector<8x64xf32>
    %1080 = arith.addf %1076, %1079 : vector<8x64xf32>
    %cst_231 = arith.constant 5.000000e-01 : f32
    %1081 = vector.broadcast %cst_231 : f32 to vector<8x64xf32>
    %1082 = arith.mulf %1081, %1080 : vector<8x64xf32>
    %cst_232 = arith.constant 5.000000e-01 : f32
    %1083 = vector.broadcast %cst_232 : f32 to vector<8x64xf32>
    %1084 = arith.mulf %1083, %1080 : vector<8x64xf32>
    %1085 = math.tanh %1084 : vector<8x64xf32>
    %cst_233 = arith.constant 1.000000e+00 : f32
    %1086 = vector.broadcast %cst_233 : f32 to vector<8x64xf32>
    %1087 = arith.addf %1086, %1085 : vector<8x64xf32>
    %1088 = arith.mulf %1082, %1087 : vector<8x64xf32>
    %1089 = arith.truncf %1088 : vector<8x64xf32> to vector<8x64xbf16>
    %cst_234 = arith.constant dense<0.000000e+00> : vector<8x64xf32>
    %1090 = tpu.matmul %1089, %2, %cst_234 {dimension_numbers = #tpu.dot_dimension_numbers<[1], [0], [0], [1], [0, 0, 1, 1], [], []>} : vector<8x64xbf16>, vector<64x64xbf16>, vector<8x64xf32> -> vector<8x64xf32>
    %1091 = arith.addf %1090, %10 : vector<8x64xf32>
    %cst_235 = arith.constant 5.000000e-01 : f32
    %1092 = vector.broadcast %cst_235 : f32 to vector<8x64xf32>
    %1093 = arith.mulf %1092, %1091 : vector<8x64xf32>
    %cst_236 = arith.constant 5.000000e-01 : f32
    %1094 = vector.broadcast %cst_236 : f32 to vector<8x64xf32>
    %1095 = arith.mulf %1094, %1091 : vector<8x64xf32>
    %1096 = math.tanh %1095 : vector<8x64xf32>
    %cst_237 = arith.constant 1.000000e+00 : f32
    %1097 = vector.broadcast %cst_237 : f32 to vector<8x64xf32>
    %1098 = arith.addf %1097, %1096 : vector<8x64xf32>
    %1099 = arith.mulf %1093, %1098 : vector<8x64xf32>
    %1100 = arith.truncf %1099 : vector<8x64xf32> to vector<8x64xbf16>
    %cst_238 = arith.constant dense<0.000000e+00> : vector<8x4xf32>
    %1101 = tpu.matmul %1100, %4, %cst_238 {dimension_numbers = #tpu.dot_dimension_numbers<[1], [0], [0], [1], [0, 0, 1, 1], [], []>} : vector<8x64xbf16>, vector<64x4xbf16>, vector<8x4xf32> -> vector<8x4xf32>
    %1102 = arith.addf %1101, %13 : vector<8x4xf32>
    %cst_239 = arith.constant 6.000000e+00 : f32
    %1103 = arith.divf %940, %cst_239 : f32
    %1104 = arith.addf %1020, %1061 : vector<8x4xf32>
    %cst_240 = arith.constant 2.000000e+00 : f32
    %1105 = vector.broadcast %cst_240 : f32 to vector<8x4xf32>
    %1106 = arith.mulf %1105, %1104 : vector<8x4xf32>
    %1107 = arith.addf %979, %1106 : vector<8x4xf32>
    %1108 = arith.addf %1107, %1102 : vector<8x4xf32>
    %1109 = vector.broadcast %1103 : f32 to vector<8x4xf32>
    %1110 = arith.mulf %1109, %1108 : vector<8x4xf32>
    %1111 = arith.addf %930, %1110 : vector<8x4xf32>
    %1112 = arith.index_cast %c6_i32 : i32 to index
    %c0_241 = arith.constant 0 : index
    %c0_242 = arith.constant 0 : index
    %1113 = vector.load %arg9[%1112, %c0_241, %c0_242] : memref<8x8x4xf32, #tpu.memory_space<vmem>>, vector<1x8x4xf32>
    %1114 = vector.shape_cast %1113 : vector<1x8x4xf32> to vector<8x4xf32>
    %1115 = vector.shape_cast %1111 : vector<8x4xf32> to vector<1x8x4xf32>
    tpu.vector_store %arg9[%1112, %c0_241, %c0_242], %1115 {strides = array<i32>} : memref<8x8x4xf32, #tpu.memory_space<vmem>>, vector<1x8x4xf32>,
    %c7_i32 = arith.constant 7 : i32
    %1116 = arith.index_cast %c7_i32 : i32 to index
    %1117 = memref.load %arg1[%1116] : memref<8xf32, #tpu.memory_space<smem>>
    %c1_i32_243 = arith.constant 1 : i32
    %1118 = arith.subi %c7_i32, %c1_i32_243 : i32
    %1119 = arith.index_cast %1118 : i32 to index
    %1120 = memref.load %arg1[%1119] : memref<8xf32, #tpu.memory_space<smem>>
    %1121 = arith.subf %1117, %1120 : f32
    %cst_244 = arith.constant 5.000000e-01 : f32
    %1122 = arith.mulf %cst_244, %1121 : f32
    %1123 = vector.extract_strided_slice %1111 {offsets = [0, 0], sizes = [8, 1], strides = [1, 1]} : vector<8x4xf32> to vector<8x1xf32>
    %1124 = vector.broadcast %1123 : vector<8x1xf32> to vector<8x64xf32>
    %1125 = arith.mulf %1124, %16 : vector<8x64xf32>
    %1126 = arith.addf %7, %1125 : vector<8x64xf32>
    %1127 = vector.extract_strided_slice %1111 {offsets = [0, 1], sizes = [8, 1], strides = [1, 1]} : vector<8x4xf32> to vector<8x1xf32>
    %1128 = vector.broadcast %1127 : vector<8x1xf32> to vector<8x64xf32>
    %1129 = arith.mulf %1128, %19 : vector<8x64xf32>
    %1130 = arith.addf %1126, %1129 : vector<8x64xf32>
    %1131 = vector.extract_strided_slice %1111 {offsets = [0, 2], sizes = [8, 1], strides = [1, 1]} : vector<8x4xf32> to vector<8x1xf32>
    %1132 = vector.broadcast %1131 : vector<8x1xf32> to vector<8x64xf32>
    %1133 = arith.mulf %1132, %22 : vector<8x64xf32>
    %1134 = arith.addf %1130, %1133 : vector<8x64xf32>
    %1135 = vector.extract_strided_slice %1111 {offsets = [0, 3], sizes = [8, 1], strides = [1, 1]} : vector<8x4xf32> to vector<8x1xf32>
    %1136 = vector.broadcast %1135 : vector<8x1xf32> to vector<8x64xf32>
    %1137 = arith.mulf %1136, %25 : vector<8x64xf32>
    %1138 = arith.addf %1134, %1137 : vector<8x64xf32>
    %cst_245 = arith.constant 5.000000e-01 : f32
    %1139 = vector.broadcast %cst_245 : f32 to vector<8x64xf32>
    %1140 = arith.mulf %1139, %1138 : vector<8x64xf32>
    %cst_246 = arith.constant 5.000000e-01 : f32
    %1141 = vector.broadcast %cst_246 : f32 to vector<8x64xf32>
    %1142 = arith.mulf %1141, %1138 : vector<8x64xf32>
    %1143 = math.tanh %1142 : vector<8x64xf32>
    %cst_247 = arith.constant 1.000000e+00 : f32
    %1144 = vector.broadcast %cst_247 : f32 to vector<8x64xf32>
    %1145 = arith.addf %1144, %1143 : vector<8x64xf32>
    %1146 = arith.mulf %1140, %1145 : vector<8x64xf32>
    %1147 = arith.truncf %1146 : vector<8x64xf32> to vector<8x64xbf16>
    %cst_248 = arith.constant dense<0.000000e+00> : vector<8x64xf32>
    %1148 = tpu.matmul %1147, %2, %cst_248 {dimension_numbers = #tpu.dot_dimension_numbers<[1], [0], [0], [1], [0, 0, 1, 1], [], []>} : vector<8x64xbf16>, vector<64x64xbf16>, vector<8x64xf32> -> vector<8x64xf32>
    %1149 = arith.addf %1148, %10 : vector<8x64xf32>
    %cst_249 = arith.constant 5.000000e-01 : f32
    %1150 = vector.broadcast %cst_249 : f32 to vector<8x64xf32>
    %1151 = arith.mulf %1150, %1149 : vector<8x64xf32>
    %cst_250 = arith.constant 5.000000e-01 : f32
    %1152 = vector.broadcast %cst_250 : f32 to vector<8x64xf32>
    %1153 = arith.mulf %1152, %1149 : vector<8x64xf32>
    %1154 = math.tanh %1153 : vector<8x64xf32>
    %cst_251 = arith.constant 1.000000e+00 : f32
    %1155 = vector.broadcast %cst_251 : f32 to vector<8x64xf32>
    %1156 = arith.addf %1155, %1154 : vector<8x64xf32>
    %1157 = arith.mulf %1151, %1156 : vector<8x64xf32>
    %1158 = arith.truncf %1157 : vector<8x64xf32> to vector<8x64xbf16>
    %cst_252 = arith.constant dense<0.000000e+00> : vector<8x4xf32>
    %1159 = tpu.matmul %1158, %4, %cst_252 {dimension_numbers = #tpu.dot_dimension_numbers<[1], [0], [0], [1], [0, 0, 1, 1], [], []>} : vector<8x64xbf16>, vector<64x4xbf16>, vector<8x4xf32> -> vector<8x4xf32>
    %1160 = arith.addf %1159, %13 : vector<8x4xf32>
    %1161 = vector.broadcast %1122 : f32 to vector<8x4xf32>
    %1162 = arith.mulf %1161, %1160 : vector<8x4xf32>
    %1163 = arith.addf %1111, %1162 : vector<8x4xf32>
    %1164 = vector.extract_strided_slice %1163 {offsets = [0, 0], sizes = [8, 1], strides = [1, 1]} : vector<8x4xf32> to vector<8x1xf32>
    %1165 = vector.broadcast %1164 : vector<8x1xf32> to vector<8x64xf32>
    %1166 = arith.mulf %1165, %16 : vector<8x64xf32>
    %1167 = arith.addf %7, %1166 : vector<8x64xf32>
    %1168 = vector.extract_strided_slice %1163 {offsets = [0, 1], sizes = [8, 1], strides = [1, 1]} : vector<8x4xf32> to vector<8x1xf32>
    %1169 = vector.broadcast %1168 : vector<8x1xf32> to vector<8x64xf32>
    %1170 = arith.mulf %1169, %19 : vector<8x64xf32>
    %1171 = arith.addf %1167, %1170 : vector<8x64xf32>
    %1172 = vector.extract_strided_slice %1163 {offsets = [0, 2], sizes = [8, 1], strides = [1, 1]} : vector<8x4xf32> to vector<8x1xf32>
    %1173 = vector.broadcast %1172 : vector<8x1xf32> to vector<8x64xf32>
    %1174 = arith.mulf %1173, %22 : vector<8x64xf32>
    %1175 = arith.addf %1171, %1174 : vector<8x64xf32>
    %1176 = vector.extract_strided_slice %1163 {offsets = [0, 3], sizes = [8, 1], strides = [1, 1]} : vector<8x4xf32> to vector<8x1xf32>
    %1177 = vector.broadcast %1176 : vector<8x1xf32> to vector<8x64xf32>
    %1178 = arith.mulf %1177, %25 : vector<8x64xf32>
    %1179 = arith.addf %1175, %1178 : vector<8x64xf32>
    %cst_253 = arith.constant 5.000000e-01 : f32
    %1180 = vector.broadcast %cst_253 : f32 to vector<8x64xf32>
    %1181 = arith.mulf %1180, %1179 : vector<8x64xf32>
    %cst_254 = arith.constant 5.000000e-01 : f32
    %1182 = vector.broadcast %cst_254 : f32 to vector<8x64xf32>
    %1183 = arith.mulf %1182, %1179 : vector<8x64xf32>
    %1184 = math.tanh %1183 : vector<8x64xf32>
    %cst_255 = arith.constant 1.000000e+00 : f32
    %1185 = vector.broadcast %cst_255 : f32 to vector<8x64xf32>
    %1186 = arith.addf %1185, %1184 : vector<8x64xf32>
    %1187 = arith.mulf %1181, %1186 : vector<8x64xf32>
    %1188 = arith.truncf %1187 : vector<8x64xf32> to vector<8x64xbf16>
    %cst_256 = arith.constant dense<0.000000e+00> : vector<8x64xf32>
    %1189 = tpu.matmul %1188, %2, %cst_256 {dimension_numbers = #tpu.dot_dimension_numbers<[1], [0], [0], [1], [0, 0, 1, 1], [], []>} : vector<8x64xbf16>, vector<64x64xbf16>, vector<8x64xf32> -> vector<8x64xf32>
    %1190 = arith.addf %1189, %10 : vector<8x64xf32>
    %cst_257 = arith.constant 5.000000e-01 : f32
    %1191 = vector.broadcast %cst_257 : f32 to vector<8x64xf32>
    %1192 = arith.mulf %1191, %1190 : vector<8x64xf32>
    %cst_258 = arith.constant 5.000000e-01 : f32
    %1193 = vector.broadcast %cst_258 : f32 to vector<8x64xf32>
    %1194 = arith.mulf %1193, %1190 : vector<8x64xf32>
    %1195 = math.tanh %1194 : vector<8x64xf32>
    %cst_259 = arith.constant 1.000000e+00 : f32
    %1196 = vector.broadcast %cst_259 : f32 to vector<8x64xf32>
    %1197 = arith.addf %1196, %1195 : vector<8x64xf32>
    %1198 = arith.mulf %1192, %1197 : vector<8x64xf32>
    %1199 = arith.truncf %1198 : vector<8x64xf32> to vector<8x64xbf16>
    %cst_260 = arith.constant dense<0.000000e+00> : vector<8x4xf32>
    %1200 = tpu.matmul %1199, %4, %cst_260 {dimension_numbers = #tpu.dot_dimension_numbers<[1], [0], [0], [1], [0, 0, 1, 1], [], []>} : vector<8x64xbf16>, vector<64x4xbf16>, vector<8x4xf32> -> vector<8x4xf32>
    %1201 = arith.addf %1200, %13 : vector<8x4xf32>
    %1202 = vector.broadcast %1122 : f32 to vector<8x4xf32>
    %1203 = arith.mulf %1202, %1201 : vector<8x4xf32>
    %1204 = arith.addf %1111, %1203 : vector<8x4xf32>
    %1205 = vector.extract_strided_slice %1204 {offsets = [0, 0], sizes = [8, 1], strides = [1, 1]} : vector<8x4xf32> to vector<8x1xf32>
    %1206 = vector.broadcast %1205 : vector<8x1xf32> to vector<8x64xf32>
    %1207 = arith.mulf %1206, %16 : vector<8x64xf32>
    %1208 = arith.addf %7, %1207 : vector<8x64xf32>
    %1209 = vector.extract_strided_slice %1204 {offsets = [0, 1], sizes = [8, 1], strides = [1, 1]} : vector<8x4xf32> to vector<8x1xf32>
    %1210 = vector.broadcast %1209 : vector<8x1xf32> to vector<8x64xf32>
    %1211 = arith.mulf %1210, %19 : vector<8x64xf32>
    %1212 = arith.addf %1208, %1211 : vector<8x64xf32>
    %1213 = vector.extract_strided_slice %1204 {offsets = [0, 2], sizes = [8, 1], strides = [1, 1]} : vector<8x4xf32> to vector<8x1xf32>
    %1214 = vector.broadcast %1213 : vector<8x1xf32> to vector<8x64xf32>
    %1215 = arith.mulf %1214, %22 : vector<8x64xf32>
    %1216 = arith.addf %1212, %1215 : vector<8x64xf32>
    %1217 = vector.extract_strided_slice %1204 {offsets = [0, 3], sizes = [8, 1], strides = [1, 1]} : vector<8x4xf32> to vector<8x1xf32>
    %1218 = vector.broadcast %1217 : vector<8x1xf32> to vector<8x64xf32>
    %1219 = arith.mulf %1218, %25 : vector<8x64xf32>
    %1220 = arith.addf %1216, %1219 : vector<8x64xf32>
    %cst_261 = arith.constant 5.000000e-01 : f32
    %1221 = vector.broadcast %cst_261 : f32 to vector<8x64xf32>
    %1222 = arith.mulf %1221, %1220 : vector<8x64xf32>
    %cst_262 = arith.constant 5.000000e-01 : f32
    %1223 = vector.broadcast %cst_262 : f32 to vector<8x64xf32>
    %1224 = arith.mulf %1223, %1220 : vector<8x64xf32>
    %1225 = math.tanh %1224 : vector<8x64xf32>
    %cst_263 = arith.constant 1.000000e+00 : f32
    %1226 = vector.broadcast %cst_263 : f32 to vector<8x64xf32>
    %1227 = arith.addf %1226, %1225 : vector<8x64xf32>
    %1228 = arith.mulf %1222, %1227 : vector<8x64xf32>
    %1229 = arith.truncf %1228 : vector<8x64xf32> to vector<8x64xbf16>
    %cst_264 = arith.constant dense<0.000000e+00> : vector<8x64xf32>
    %1230 = tpu.matmul %1229, %2, %cst_264 {dimension_numbers = #tpu.dot_dimension_numbers<[1], [0], [0], [1], [0, 0, 1, 1], [], []>} : vector<8x64xbf16>, vector<64x64xbf16>, vector<8x64xf32> -> vector<8x64xf32>
    %1231 = arith.addf %1230, %10 : vector<8x64xf32>
    %cst_265 = arith.constant 5.000000e-01 : f32
    %1232 = vector.broadcast %cst_265 : f32 to vector<8x64xf32>
    %1233 = arith.mulf %1232, %1231 : vector<8x64xf32>
    %cst_266 = arith.constant 5.000000e-01 : f32
    %1234 = vector.broadcast %cst_266 : f32 to vector<8x64xf32>
    %1235 = arith.mulf %1234, %1231 : vector<8x64xf32>
    %1236 = math.tanh %1235 : vector<8x64xf32>
    %cst_267 = arith.constant 1.000000e+00 : f32
    %1237 = vector.broadcast %cst_267 : f32 to vector<8x64xf32>
    %1238 = arith.addf %1237, %1236 : vector<8x64xf32>
    %1239 = arith.mulf %1233, %1238 : vector<8x64xf32>
    %1240 = arith.truncf %1239 : vector<8x64xf32> to vector<8x64xbf16>
    %cst_268 = arith.constant dense<0.000000e+00> : vector<8x4xf32>
    %1241 = tpu.matmul %1240, %4, %cst_268 {dimension_numbers = #tpu.dot_dimension_numbers<[1], [0], [0], [1], [0, 0, 1, 1], [], []>} : vector<8x64xbf16>, vector<64x4xbf16>, vector<8x4xf32> -> vector<8x4xf32>
    %1242 = arith.addf %1241, %13 : vector<8x4xf32>
    %1243 = vector.broadcast %1121 : f32 to vector<8x4xf32>
    %1244 = arith.mulf %1243, %1242 : vector<8x4xf32>
    %1245 = arith.addf %1111, %1244 : vector<8x4xf32>
    %1246 = vector.extract_strided_slice %1245 {offsets = [0, 0], sizes = [8, 1], strides = [1, 1]} : vector<8x4xf32> to vector<8x1xf32>
    %1247 = vector.broadcast %1246 : vector<8x1xf32> to vector<8x64xf32>
    %1248 = arith.mulf %1247, %16 : vector<8x64xf32>
    %1249 = arith.addf %7, %1248 : vector<8x64xf32>
    %1250 = vector.extract_strided_slice %1245 {offsets = [0, 1], sizes = [8, 1], strides = [1, 1]} : vector<8x4xf32> to vector<8x1xf32>
    %1251 = vector.broadcast %1250 : vector<8x1xf32> to vector<8x64xf32>
    %1252 = arith.mulf %1251, %19 : vector<8x64xf32>
    %1253 = arith.addf %1249, %1252 : vector<8x64xf32>
    %1254 = vector.extract_strided_slice %1245 {offsets = [0, 2], sizes = [8, 1], strides = [1, 1]} : vector<8x4xf32> to vector<8x1xf32>
    %1255 = vector.broadcast %1254 : vector<8x1xf32> to vector<8x64xf32>
    %1256 = arith.mulf %1255, %22 : vector<8x64xf32>
    %1257 = arith.addf %1253, %1256 : vector<8x64xf32>
    %1258 = vector.extract_strided_slice %1245 {offsets = [0, 3], sizes = [8, 1], strides = [1, 1]} : vector<8x4xf32> to vector<8x1xf32>
    %1259 = vector.broadcast %1258 : vector<8x1xf32> to vector<8x64xf32>
    %1260 = arith.mulf %1259, %25 : vector<8x64xf32>
    %1261 = arith.addf %1257, %1260 : vector<8x64xf32>
    %cst_269 = arith.constant 5.000000e-01 : f32
    %1262 = vector.broadcast %cst_269 : f32 to vector<8x64xf32>
    %1263 = arith.mulf %1262, %1261 : vector<8x64xf32>
    %cst_270 = arith.constant 5.000000e-01 : f32
    %1264 = vector.broadcast %cst_270 : f32 to vector<8x64xf32>
    %1265 = arith.mulf %1264, %1261 : vector<8x64xf32>
    %1266 = math.tanh %1265 : vector<8x64xf32>
    %cst_271 = arith.constant 1.000000e+00 : f32
    %1267 = vector.broadcast %cst_271 : f32 to vector<8x64xf32>
    %1268 = arith.addf %1267, %1266 : vector<8x64xf32>
    %1269 = arith.mulf %1263, %1268 : vector<8x64xf32>
    %1270 = arith.truncf %1269 : vector<8x64xf32> to vector<8x64xbf16>
    %cst_272 = arith.constant dense<0.000000e+00> : vector<8x64xf32>
    %1271 = tpu.matmul %1270, %2, %cst_272 {dimension_numbers = #tpu.dot_dimension_numbers<[1], [0], [0], [1], [0, 0, 1, 1], [], []>} : vector<8x64xbf16>, vector<64x64xbf16>, vector<8x64xf32> -> vector<8x64xf32>
    %1272 = arith.addf %1271, %10 : vector<8x64xf32>
    %cst_273 = arith.constant 5.000000e-01 : f32
    %1273 = vector.broadcast %cst_273 : f32 to vector<8x64xf32>
    %1274 = arith.mulf %1273, %1272 : vector<8x64xf32>
    %cst_274 = arith.constant 5.000000e-01 : f32
    %1275 = vector.broadcast %cst_274 : f32 to vector<8x64xf32>
    %1276 = arith.mulf %1275, %1272 : vector<8x64xf32>
    %1277 = math.tanh %1276 : vector<8x64xf32>
    %cst_275 = arith.constant 1.000000e+00 : f32
    %1278 = vector.broadcast %cst_275 : f32 to vector<8x64xf32>
    %1279 = arith.addf %1278, %1277 : vector<8x64xf32>
    %1280 = arith.mulf %1274, %1279 : vector<8x64xf32>
    %1281 = arith.truncf %1280 : vector<8x64xf32> to vector<8x64xbf16>
    %cst_276 = arith.constant dense<0.000000e+00> : vector<8x4xf32>
    %1282 = tpu.matmul %1281, %4, %cst_276 {dimension_numbers = #tpu.dot_dimension_numbers<[1], [0], [0], [1], [0, 0, 1, 1], [], []>} : vector<8x64xbf16>, vector<64x4xbf16>, vector<8x4xf32> -> vector<8x4xf32>
    %1283 = arith.addf %1282, %13 : vector<8x4xf32>
    %cst_277 = arith.constant 6.000000e+00 : f32
    %1284 = arith.divf %1121, %cst_277 : f32
    %1285 = arith.addf %1201, %1242 : vector<8x4xf32>
    %cst_278 = arith.constant 2.000000e+00 : f32
    %1286 = vector.broadcast %cst_278 : f32 to vector<8x4xf32>
    %1287 = arith.mulf %1286, %1285 : vector<8x4xf32>
    %1288 = arith.addf %1160, %1287 : vector<8x4xf32>
    %1289 = arith.addf %1288, %1283 : vector<8x4xf32>
    %1290 = vector.broadcast %1284 : f32 to vector<8x4xf32>
    %1291 = arith.mulf %1290, %1289 : vector<8x4xf32>
    %1292 = arith.addf %1111, %1291 : vector<8x4xf32>
    %1293 = arith.index_cast %c7_i32 : i32 to index
    %c0_279 = arith.constant 0 : index
    %c0_280 = arith.constant 0 : index
    %1294 = vector.load %arg9[%1293, %c0_279, %c0_280] : memref<8x8x4xf32, #tpu.memory_space<vmem>>, vector<1x8x4xf32>
    %1295 = vector.shape_cast %1294 : vector<1x8x4xf32> to vector<8x4xf32>
    %1296 = vector.shape_cast %1292 : vector<8x4xf32> to vector<1x8x4xf32>
    tpu.vector_store %arg9[%1293, %c0_279, %c0_280], %1296 {strides = array<i32>} : memref<8x8x4xf32, #tpu.memory_space<vmem>>, vector<1x8x4xf32>,
    %c7_i32_281 = arith.constant 7 : i32
    return
  }
  func.func @transform_0(%arg0: i32, %arg1: memref<8xf32, #tpu.memory_space<smem>>) -> (i32, i32) {
    %c0_i32 = arith.constant 0 : i32
    %c0_i32_0 = arith.constant 0 : i32
    return %arg0, %c0_i32 : i32, i32
  }
  func.func @transform_1(%arg0: i32, %arg1: memref<8xf32, #tpu.memory_space<smem>>) -> (i32, i32) {
    %c0_i32 = arith.constant 0 : i32
    %c0_i32_0 = arith.constant 0 : i32
    %c0_i32_1 = arith.constant 0 : i32
    return %c0_i32, %c0_i32_0 : i32, i32
  }
  func.func @transform_2(%arg0: i32, %arg1: memref<8xf32, #tpu.memory_space<smem>>) -> (i32, i32) {
    %c0_i32 = arith.constant 0 : i32
    %c0_i32_0 = arith.constant 0 : i32
    %c0_i32_1 = arith.constant 0 : i32
    return %c0_i32, %c0_i32_0 : i32, i32
  }
  func.func @transform_3(%arg0: i32, %arg1: memref<8xf32, #tpu.memory_space<smem>>) -> (i32, i32) {
    %c0_i32 = arith.constant 0 : i32
    %c0_i32_0 = arith.constant 0 : i32
    %c0_i32_1 = arith.constant 0 : i32
    return %c0_i32, %c0_i32_0 : i32, i32
  }
  func.func @transform_4(%arg0: i32, %arg1: memref<8xf32, #tpu.memory_space<smem>>) -> (i32, i32) {
    %c0_i32 = arith.constant 0 : i32
    %c0_i32_0 = arith.constant 0 : i32
    %c0_i32_1 = arith.constant 0 : i32
    return %c0_i32, %c0_i32_0 : i32, i32
  }
  func.func @transform_5(%arg0: i32, %arg1: memref<8xf32, #tpu.memory_space<smem>>) -> (i32, i32) {
    %c0_i32 = arith.constant 0 : i32
    %c0_i32_0 = arith.constant 0 : i32
    %c0_i32_1 = arith.constant 0 : i32
    return %c0_i32, %c0_i32_0 : i32, i32
  }
  func.func @transform_6(%arg0: i32, %arg1: memref<8xf32, #tpu.memory_space<smem>>) -> (i32, i32) {
    %c0_i32 = arith.constant 0 : i32
    %c0_i32_0 = arith.constant 0 : i32
    %c0_i32_1 = arith.constant 0 : i32
    return %c0_i32, %c0_i32_0 : i32, i32
  }
  func.func @transform_7(%arg0: i32, %arg1: memref<8xf32, #tpu.memory_space<smem>>) -> (i32, i32, i32) {
    %c0_i32 = arith.constant 0 : i32
    %c0_i32_0 = arith.constant 0 : i32
    %c0_i32_1 = arith.constant 0 : i32
    return %c0_i32, %arg0, %c0_i32_0 : i32, i32, i32
  }
}

</mosaic_0001>

<llo_original>
// kernel: tpu_custom_call.1
$region0: #{tpu_custom_call.1}
  #allocation0 [shape = 'u32[]', space=smem, size = 0x4, offset = 0x4, fixed_abs, tag = 'smem constant byte address 0x4 - core index']
  #allocation1 [shape = 'u32[144,128]{1,0:T(1,128)}', space=vmem, size = 0x12000, scoped, tag = 'internal scratch']
  #allocation2 [shape = 's32[1]{0}', space=sflag, size = 0x4, scoped, tag = 'scoped memory for tpu_custom_call.1']
  #allocation3 [shape = 'u8[512]{0}', space=smem, size = 0x200, scoped, tag = 'prefetched SMEM operand 0']
  %s0 = inlined_call_operand.vmem [shape: f32[8], index: 0, kind: input, shape index: {}]
  %s1 = inlined_call_operand.vmem [shape: f32[8,4], index: 1, kind: input, shape index: {}]
  %s2 = inlined_call_operand.vmem [shape: f32[4,64], index: 2, kind: input, shape index: {}]
  %s3 = inlined_call_operand.vmem [shape: f32[1,64], index: 3, kind: input, shape index: {}]
  %s4 = inlined_call_operand.vmem [shape: f32[64,64], index: 4, kind: input, shape index: {}]
  %s5 = inlined_call_operand.vmem [shape: f32[1,64], index: 5, kind: input, shape index: {}]
  %s6 = inlined_call_operand.vmem [shape: f32[64,4], index: 6, kind: input, shape index: {}]
  %s7 = inlined_call_operand.vmem [shape: f32[1,4], index: 7, kind: input, shape index: {}]
  %s8 = inlined_call_operand.vmem [shape: f32[8,8,4], index: 8, kind: output, shape index: {}]
  %s9 = sld [smem:[#allocation0]]
  $region38: #{tpu_custom_call.1} parent=0
    _
  %s11 = ssub.s32 1, %s9
  %s12 = scalar_select 0, %s11, %s9
  %s13 = sshll.u32 %s0, 4
  %s14 = int_to_ptr.vmem [resolvable:$true] %s13
  %16 = dma.vmem_to_smem %s14, 16, [#allocation3], [#allocation2]
  %17 = dma.done [#allocation2], 16
  %18 = sfence
  // Predicated region
  $region2: #{tpu_custom_call.1} parent=0 // pred_check
    _
  $region3: #{tpu_custom_call.1} parent=0 // pred_check_branch
    %20 = sbr.rel (0) target = $region5
  $region4: #{tpu_custom_call.1} parent=0 // pred_region
    _
  $region5: #{tpu_custom_call.1} parent=0 // pred_fallthru
    _
  // Predicated region
  $region6: #{tpu_custom_call.1} parent=0 // pred_check
    _
  $region7: #{tpu_custom_call.1} parent=0 // pred_check_branch
    %22 = sbr.rel (0) target = $region9
  $region8: #{tpu_custom_call.1} parent=0 // pred_region
    _
  $region9: #{tpu_custom_call.1} parent=0 // pred_fallthru
    _
  // Predicated region
  $region10: #{tpu_custom_call.1} parent=0 // pred_check
    _
  $region11: #{tpu_custom_call.1} parent=0 // pred_check_branch
    %24 = sbr.rel (0) target = $region13
  $region12: #{tpu_custom_call.1} parent=0 // pred_region
    _
  $region13: #{tpu_custom_call.1} parent=0 // pred_fallthru
    _
  // Predicated region
  $region14: #{tpu_custom_call.1} parent=0 // pred_check
    _
  $region15: #{tpu_custom_call.1} parent=0 // pred_check_branch
    %26 = sbr.rel (0) target = $region17
  $region16: #{tpu_custom_call.1} parent=0 // pred_region
    _
  $region17: #{tpu_custom_call.1} parent=0 // pred_fallthru
    _
  // Predicated region
  $region18: #{tpu_custom_call.1} parent=0 // pred_check
    _
  $region19: #{tpu_custom_call.1} parent=0 // pred_check_branch
    %28 = sbr.rel (0) target = $region21
  $region20: #{tpu_custom_call.1} parent=0 // pred_region
    _
  $region21: #{tpu_custom_call.1} parent=0 // pred_fallthru
    _
  // Predicated region
  $region22: #{tpu_custom_call.1} parent=0 // pred_check
    _
  $region23: #{tpu_custom_call.1} parent=0 // pred_check_branch
    %30 = sbr.rel (0) target = $region25
  $region24: #{tpu_custom_call.1} parent=0 // pred_region
    _
  $region25: #{tpu_custom_call.1} parent=0 // pred_fallthru
    _
  // Predicated region
  $region26: #{tpu_custom_call.1} parent=0 // pred_check
    _
  $region27: #{tpu_custom_call.1} parent=0 // pred_check_branch
    %32 = sbr.rel (0) target = $region29
  $region28: #{tpu_custom_call.1} parent=0 // pred_region
    _
  $region29: #{tpu_custom_call.1} parent=0 // pred_fallthru
    _
  %v34 = vld [vmem:[%s2] sm:$0xf]
  %v35 = vld [vmem:[%s4] sm:$0xff]
  %v36 = vld [vmem:[%s4 + $0x8] sm:$0xff]
  %v37 = vld [vmem:[%s4 + $0x10] sm:$0xff]
  %v38 = vld [vmem:[%s4 + $0x18] sm:$0xff]
  %v39 = vld [vmem:[%s4 + $0x20] sm:$0xff]
  %v40 = vld [vmem:[%s4 + $0x28] sm:$0xff]
  %v41 = vld [vmem:[%s4 + $0x30] sm:$0xff]
  %v42 = vld [vmem:[%s4 + $0x38] sm:$0xff]
  %v43 = vpack.c.bf16 %v36, %v35
  %v44 = vpack.c.bf16 %v38, %v37
  %v45 = vpack.c.bf16 %v40, %v39
  %v46 = vpack.c.bf16 %v42, %v41
  %v47 = vld [vmem:[%s6] sm:$0xff]
  %v48 = vld [vmem:[%s6 + $0x8] sm:$0xff]
  %v49 = vld [vmem:[%s6 + $0x10] sm:$0xff]
  %v50 = vld [vmem:[%s6 + $0x18] sm:$0xff]
  %v51 = vld [vmem:[%s6 + $0x20] sm:$0xff]
  %v52 = vld [vmem:[%s6 + $0x28] sm:$0xff]
  %v53 = vld [vmem:[%s6 + $0x30] sm:$0xff]
  %v54 = vld [vmem:[%s6 + $0x38] sm:$0xff]
  %v55 = vpack.c.bf16 %v48, %v47
  %v56 = vpack.c.bf16 %v50, %v49
  %v57 = vpack.c.bf16 %v52, %v51
  %v58 = vpack.c.bf16 %v54, %v53
  %v59 = vld [vmem:[%s3] sm:$0x1]
  %v61 = vlaneseq
  %v62 = vshrl.u32 %v61, 7
  %v63 = vsub.s32 0, %v62
  %v64 = vrot.slane %v59, %v63
  %v66 = vld [vmem:[%s5] sm:$0x1]
  %v68 = vlaneseq
  %v69 = vshrl.u32 %v68, 7
  %v70 = vsub.s32 0, %v69
  %v71 = vrot.slane %v66, %v70
  %v73 = vld [vmem:[%s7] sm:$0x1]
  %v75 = vlaneseq
  %v76 = vshrl.u32 %v75, 7
  %v77 = vsub.s32 0, %v76
  %v78 = vrot.slane %v73, %v77
  %v80 = vlaneseq
  %v81 = vshrl.u32 %v80, 7
  %v82 = vsub.s32 0, %v81
  %v83 = vrot.slane %v34, %v82
  %v84 = vlaneseq
  %v85 = vshrl.u32 %v84, 7
  %v86 = vsub.s32 1, %v85
  %v87 = vrot.slane %v34, %v86
  %v88 = vlaneseq
  %v89 = vshrl.u32 %v88, 7
  %v90 = vsub.s32 2, %v89
  %v91 = vrot.slane %v34, %v90
  %v92 = vlaneseq
  %v93 = vshrl.u32 %v92, 7
  %v94 = vsub.s32 3, %v93
  %v95 = vrot.slane %v34, %v94
  %v96 = vld [vmem:[%s1] sm:$0xff]
  %vm97 = vcmask 31744
  %98 = vst.msk [vmem:[%s8] sm:$0xff] %vm97, %v96
  %s99 = sld [smem:[#allocation3 + $0x1]]
  %s100 = sld [smem:[#allocation3]]
  %s101 = ssub.f32 %s99, %s100
  %s102 = smul.f32 %s101, 0.5
  %104 = vset.pattern.permute.xlu0 0
  %105 = vperm.xlu0 %104, %v96
  %v106 = vpop.permute.xlu0 %105
  %v108 = vmul.f32 %v106, %v83
  %v109 = vadd.f32 %v64, %v108
  %110 = vset.pattern.permute.xlu0 1
  %111 = vperm.xlu0 %110, %v96
  %v112 = vpop.permute.xlu0 %111
  %v114 = vmul.f32 %v112, %v87
  %v115 = vadd.f32 %v109, %v114
  %116 = vset.pattern.permute.xlu0 2
  %117 = vperm.xlu0 %116, %v96
  %v118 = vpop.permute.xlu0 %117
  %v120 = vmul.f32 %v118, %v91
  %v121 = vadd.f32 %v115, %v120
  %122 = vset.pattern.permute.xlu0 3
  %123 = vperm.xlu0 %122, %v96
  %v124 = vpop.permute.xlu0 %123
  %v126 = vmul.f32 %v124, %v95
  %v127 = vadd.f32 %v121, %v126
  %v128 = vmul.f32 %v127, 0.5
  %v129 = vtanh.pop %v128
  %v130 = vadd.f32 %v129, 1.0
  %v131 = vmul.f32 %v128, %v130
  %v132 = vpack.c.bf16 %v131, %v131
  %vm133 = vcmask 523264
  %v135 = vsel %vm133, %v132, 0
  %137 = vmatprep.subr.bf16.mxu0 0
  %138 = vmatpush1.bf16.msra.mxu0 %v43
  %139 = vmatprep.subr.bf16.mxu0 0
  %140 = vmatpush1.bf16.msra.mxu0 %v44
  %141 = vmatprep.subr.bf16.mxu0 0
  %142 = vmatpush1.bf16.msra.mxu0 %v45
  %143 = vmatprep.subr.bf16.mxu0 0
  %144 = vmatpush1.bf16.msra.mxu0 %v46
  %145 = vmatprep.subr.bf16.mxu0 0
  %146 = vmatpush1.bf16.msra.mxu0 0
  %147 = vmatprep.subr.bf16.mxu0 0
  %148 = vmatpush1.bf16.msra.mxu0 0
  %149 = vmatprep.subr.bf16.mxu0 0
  %150 = vmatpush1.bf16.msra.mxu0 0
  %151 = vmatprep.subr.bf16.mxu0 0
  %152 = vmatpush1.bf16.msra.mxu0 0
  %153 = vmatprep.subr.bf16.mxu0 0
  %154 = vmatpush1.bf16.msra.mxu0 0
  %155 = vmatprep.subr.bf16.mxu0 0
  %156 = vmatpush1.bf16.msra.mxu0 0
  %157 = vmatprep.subr.bf16.mxu0 0
  %158 = vmatpush1.bf16.msra.mxu0 0
  %159 = vmatprep.subr.bf16.mxu0 0
  %160 = vmatpush1.bf16.msra.mxu0 0
  %161 = vmatprep.subr.bf16.mxu0 0
  %162 = vmatpush1.bf16.msra.mxu0 0
  %163 = vmatprep.subr.bf16.mxu0 0
  %164 = vmatpush1.bf16.msra.mxu0 0
  %165 = vmatprep.subr.bf16.mxu0 0
  %166 = vmatpush1.bf16.msra.mxu0 0
  %167 = vmatprep.subr.bf16.mxu0 0
  %168 = vmatpush1.bf16.msra.mxu0 0
  %169 = vmatprep.mubr.bf16.mxu0 0
  %170 = vmatmul.mubr.bf16.gmra.mrb[0].mxu0 %v135
  %v171 = vpop.f32.mrb[0].mxu0
  %v172 = vadd.f32 %v71, %v171
  %v173 = vpop.f32.mrb[0].mxu0
  %v174 = vpop.f32.mrb[0].mxu0
  %v175 = vpop.f32.mrb[0].mxu0
  %176 = vdwg.mxu0
  %v177 = vmul.f32 %v172, 0.5
  %v178 = vtanh.pop %v177
  %v179 = vadd.f32 %v178, 1.0
  %v180 = vmul.f32 %v177, %v179
  %v181 = vpack.c.bf16 %v180, %v180
  %v183 = vsel %vm133, %v181, 0
  %185 = vmatprep.subr.bf16.mxu0 0
  %186 = vmatpush1.bf16.msra.mxu0 %v55
  %187 = vmatprep.subr.bf16.mxu0 0
  %188 = vmatpush1.bf16.msra.mxu0 %v56
  %189 = vmatprep.subr.bf16.mxu0 0
  %190 = vmatpush1.bf16.msra.mxu0 %v57
  %191 = vmatprep.subr.bf16.mxu0 0
  %192 = vmatpush1.bf16.msra.mxu0 %v58
  %193 = vmatprep.subr.bf16.mxu0 0
  %194 = vmatpush1.bf16.msra.mxu0 0
  %195 = vmatprep.subr.bf16.mxu0 0
  %196 = vmatpush1.bf16.msra.mxu0 0
  %197 = vmatprep.subr.bf16.mxu0 0
  %198 = vmatpush1.bf16.msra.mxu0 0
  %199 = vmatprep.subr.bf16.mxu0 0
  %200 = vmatpush1.bf16.msra.mxu0 0
  %201 = vmatprep.subr.bf16.mxu0 0
  %202 = vmatpush1.bf16.msra.mxu0 0
  %203 = vmatprep.subr.bf16.mxu0 0
  %204 = vmatpush1.bf16.msra.mxu0 0
  %205 = vmatprep.subr.bf16.mxu0 0
  %206 = vmatpush1.bf16.msra.mxu0 0
  %207 = vmatprep.subr.bf16.mxu0 0
  %208 = vmatpush1.bf16.msra.mxu0 0
  %209 = vmatprep.subr.bf16.mxu0 0
  %210 = vmatpush1.bf16.msra.mxu0 0
  %211 = vmatprep.subr.bf16.mxu0 0
  %212 = vmatpush1.bf16.msra.mxu0 0
  %213 = vmatprep.subr.bf16.mxu0 0
  %214 = vmatpush1.bf16.msra.mxu0 0
  %215 = vmatprep.subr.bf16.mxu0 0
  %216 = vmatpush1.bf16.msra.mxu0 0
  %217 = vmatprep.mubr.bf16.mxu0 0
  %218 = vmatmul.mubr.bf16.gmra.mrb[0].mxu0 %v183
  %v219 = vpop.f32.mrb[0].mxu0
  %v220 = vadd.f32 %v78, %v219
  %v221 = vpop.f32.mrb[0].mxu0
  %v222 = vpop.f32.mrb[0].mxu0
  %v223 = vpop.f32.mrb[0].mxu0
  %224 = vdwg.mxu0
  %v225 = vstv %s102
  %v226 = vmul.f32 %v225, %v220
  %v227 = vadd.f32 %v96, %v226
  %229 = vset.pattern.permute.xlu0 0
  %230 = vperm.xlu0 %229, %v227
  %v231 = vpop.permute.xlu0 %230
  %v233 = vmul.f32 %v231, %v83
  %v234 = vadd.f32 %v64, %v233
  %235 = vset.pattern.permute.xlu0 1
  %236 = vperm.xlu0 %235, %v227
  %v237 = vpop.permute.xlu0 %236
  %v239 = vmul.f32 %v237, %v87
  %v240 = vadd.f32 %v234, %v239
  %241 = vset.pattern.permute.xlu0 2
  %242 = vperm.xlu0 %241, %v227
  %v243 = vpop.permute.xlu0 %242
  %v245 = vmul.f32 %v243, %v91
  %v246 = vadd.f32 %v240, %v245
  %247 = vset.pattern.permute.xlu0 3
  %248 = vperm.xlu0 %247, %v227
  %v249 = vpop.permute.xlu0 %248
  %v251 = vmul.f32 %v249, %v95
  %v252 = vadd.f32 %v246, %v251
  %v253 = vmul.f32 %v252, 0.5
  %v254 = vtanh.pop %v253
  %v255 = vadd.f32 %v254, 1.0
  %v256 = vmul.f32 %v253, %v255
  %v257 = vpack.c.bf16 %v256, %v256
  %v259 = vsel %vm133, %v257, 0
  %261 = vmatprep.subr.bf16.mxu0 0
  %262 = vmatpush1.bf16.msra.mxu0 %v43
  %263 = vmatprep.subr.bf16.mxu0 0
  %264 = vmatpush1.bf16.msra.mxu0 %v44
  %265 = vmatprep.subr.bf16.mxu0 0
  %266 = vmatpush1.bf16.msra.mxu0 %v45
  %267 = vmatprep.subr.bf16.mxu0 0
  %268 = vmatpush1.bf16.msra.mxu0 %v46
  %269 = vmatprep.subr.bf16.mxu0 0
  %270 = vmatpush1.bf16.msra.mxu0 0
  %271 = vmatprep.subr.bf16.mxu0 0
  %272 = vmatpush1.bf16.msra.mxu0 0
  %273 = vmatprep.subr.bf16.mxu0 0
  %274 = vmatpush1.bf16.msra.mxu0 0
  %275 = vmatprep.subr.bf16.mxu0 0
  %276 = vmatpush1.bf16.msra.mxu0 0
  %277 = vmatprep.subr.bf16.mxu0 0
  %278 = vmatpush1.bf16.msra.mxu0 0
  %279 = vmatprep.subr.bf16.mxu0 0
  %280 = vmatpush1.bf16.msra.mxu0 0
  %281 = vmatprep.subr.bf16.mxu0 0
  %282 = vmatpush1.bf16.msra.mxu0 0
  %283 = vmatprep.subr.bf16.mxu0 0
  %284 = vmatpush1.bf16.msra.mxu0 0
  %285 = vmatprep.subr.bf16.mxu0 0
  %286 = vmatpush1.bf16.msra.mxu0 0
  %287 = vmatprep.subr.bf16.mxu0 0
  %288 = vmatpush1.bf16.msra.mxu0 0
  %289 = vmatprep.subr.bf16.mxu0 0
  %290 = vmatpush1.bf16.msra.mxu0 0
  %291 = vmatprep.subr.bf16.mxu0 0
  %292 = vmatpush1.bf16.msra.mxu0 0
  %293 = vmatprep.mubr.bf16.mxu0 0
  %294 = vmatmul.mubr.bf16.gmra.mrb[0].mxu0 %v259
  %v295 = vpop.f32.mrb[0].mxu0
  %v296 = vadd.f32 %v71, %v295
  %v297 = vpop.f32.mrb[0].mxu0
  %v298 = vpop.f32.mrb[0].mxu0
  %v299 = vpop.f32.mrb[0].mxu0
  %300 = vdwg.mxu0
  %v301 = vmul.f32 %v296, 0.5
  %v302 = vtanh.pop %v301
  %v303 = vadd.f32 %v302, 1.0
  %v304 = vmul.f32 %v301, %v303
  %v305 = vpack.c.bf16 %v304, %v304
  %v307 = vsel %vm133, %v305, 0
  %309 = vmatprep.subr.bf16.mxu0 0
  %310 = vmatpush1.bf16.msra.mxu0 %v55
  %311 = vmatprep.subr.bf16.mxu0 0
  %312 = vmatpush1.bf16.msra.mxu0 %v56
  %313 = vmatprep.subr.bf16.mxu0 0
  %314 = vmatpush1.bf16.msra.mxu0 %v57
  %315 = vmatprep.subr.bf16.mxu0 0
  %316 = vmatpush1.bf16.msra.mxu0 %v58
  %317 = vmatprep.subr.bf16.mxu0 0
  %318 = vmatpush1.bf16.msra.mxu0 0
  %319 = vmatprep.subr.bf16.mxu0 0
  %320 = vmatpush1.bf16.msra.mxu0 0
  %321 = vmatprep.subr.bf16.mxu0 0
  %322 = vmatpush1.bf16.msra.mxu0 0
  %323 = vmatprep.subr.bf16.mxu0 0
  %324 = vmatpush1.bf16.msra.mxu0 0
  %325 = vmatprep.subr.bf16.mxu0 0
  %326 = vmatpush1.bf16.msra.mxu0 0
  %327 = vmatprep.subr.bf16.mxu0 0
  %328 = vmatpush1.bf16.msra.mxu0 0
  %329 = vmatprep.subr.bf16.mxu0 0
  %330 = vmatpush1.bf16.msra.mxu0 0
  %331 = vmatprep.subr.bf16.mxu0 0
  %332 = vmatpush1.bf16.msra.mxu0 0
  %333 = vmatprep.subr.bf16.mxu0 0
  %334 = vmatpush1.bf16.msra.mxu0 0
  %335 = vmatprep.subr.bf16.mxu0 0
  %336 = vmatpush1.bf16.msra.mxu0 0
  %337 = vmatprep.subr.bf16.mxu0 0
  %338 = vmatpush1.bf16.msra.mxu0 0
  %339 = vmatprep.subr.bf16.mxu0 0
  %340 = vmatpush1.bf16.msra.mxu0 0
  %341 = vmatprep.mubr.bf16.mxu0 0
  %342 = vmatmul.mubr.bf16.gmra.mrb[0].mxu0 %v307
  %v343 = vpop.f32.mrb[0].mxu0
  %v344 = vadd.f32 %v78, %v343
  %v345 = vpop.f32.mrb[0].mxu0
  %v346 = vpop.f32.mrb[0].mxu0
  %v347 = vpop.f32.mrb[0].mxu0
  %348 = vdwg.mxu0
  %v349 = vmul.f32 %v225, %v344
  %v350 = vadd.f32 %v96, %v349
  %352 = vset.pattern.permute.xlu0 0
  %353 = vperm.xlu0 %352, %v350
  %v354 = vpop.permute.xlu0 %353
  %v356 = vmul.f32 %v354, %v83
  %v357 = vadd.f32 %v64, %v356
  %358 = vset.pattern.permute.xlu0 1
  %359 = vperm.xlu0 %358, %v350
  %v360 = vpop.permute.xlu0 %359
  %v362 = vmul.f32 %v360, %v87
  %v363 = vadd.f32 %v357, %v362
  %364 = vset.pattern.permute.xlu0 2
  %365 = vperm.xlu0 %364, %v350
  %v366 = vpop.permute.xlu0 %365
  %v368 = vmul.f32 %v366, %v91
  %v369 = vadd.f32 %v363, %v368
  %370 = vset.pattern.permute.xlu0 3
  %371 = vperm.xlu0 %370, %v350
  %v372 = vpop.permute.xlu0 %371
  %v374 = vmul.f32 %v372, %v95
  %v375 = vadd.f32 %v369, %v374
  %v376 = vmul.f32 %v375, 0.5
  %v377 = vtanh.pop %v376
  %v378 = vadd.f32 %v377, 1.0
  %v379 = vmul.f32 %v376, %v378
  %v380 = vpack.c.bf16 %v379, %v379
  %v382 = vsel %vm133, %v380, 0
  %384 = vmatprep.subr.bf16.mxu0 0
  %385 = vmatpush1.bf16.msra.mxu0 %v43
  %386 = vmatprep.subr.bf16.mxu0 0
  %387 = vmatpush1.bf16.msra.mxu0 %v44
  %388 = vmatprep.subr.bf16.mxu0 0
  %389 = vmatpush1.bf16.msra.mxu0 %v45
  %390 = vmatprep.subr.bf16.mxu0 0
  %391 = vmatpush1.bf16.msra.mxu0 %v46
  %392 = vmatprep.subr.bf16.mxu0 0
  %393 = vmatpush1.bf16.msra.mxu0 0
  %394 = vmatprep.subr.bf16.mxu0 0
  %395 = vmatpush1.bf16.msra.mxu0 0
  %396 = vmatprep.subr.bf16.mxu0 0
  %397 = vmatpush1.bf16.msra.mxu0 0
  %398 = vmatprep.subr.bf16.mxu0 0
  %399 = vmatpush1.bf16.msra.mxu0 0
  %400 = vmatprep.subr.bf16.mxu0 0
  %401 = vmatpush1.bf16.msra.mxu0 0
  %402 = vmatprep.subr.bf16.mxu0 0
  %403 = vmatpush1.bf16.msra.mxu0 0
  %404 = vmatprep.subr.bf16.mxu0 0
  %405 = vmatpush1.bf16.msra.mxu0 0
  %406 = vmatprep.subr.bf16.mxu0 0
  %407 = vmatpush1.bf16.msra.mxu0 0
  %408 = vmatprep.subr.bf16.mxu0 0
  %409 = vmatpush1.bf16.msra.mxu0 0
  %410 = vmatprep.subr.bf16.mxu0 0
  %411 = vmatpush1.bf16.msra.mxu0 0
  %412 = vmatprep.subr.bf16.mxu0 0
  %413 = vmatpush1.bf16.msra.mxu0 0
  %414 = vmatprep.subr.bf16.mxu0 0
  %415 = vmatpush1.bf16.msra.mxu0 0
  %416 = vmatprep.mubr.bf16.mxu0 0
  %417 = vmatmul.mubr.bf16.gmra.mrb[0].mxu0 %v382
  %v418 = vpop.f32.mrb[0].mxu0
  %v419 = vadd.f32 %v71, %v418
  %v420 = vpop.f32.mrb[0].mxu0
  %v421 = vpop.f32.mrb[0].mxu0
  %v422 = vpop.f32.mrb[0].mxu0
  %423 = vdwg.mxu0
  %v424 = vmul.f32 %v419, 0.5
  %v425 = vtanh.pop %v424
  %v426 = vadd.f32 %v425, 1.0
  %v427 = vmul.f32 %v424, %v426
  %v428 = vpack.c.bf16 %v427, %v427
  %v430 = vsel %vm133, %v428, 0
  %432 = vmatprep.subr.bf16.mxu0 0
  %433 = vmatpush1.bf16.msra.mxu0 %v55
  %434 = vmatprep.subr.bf16.mxu0 0
  %435 = vmatpush1.bf16.msra.mxu0 %v56
  %436 = vmatprep.subr.bf16.mxu0 0
  %437 = vmatpush1.bf16.msra.mxu0 %v57
  %438 = vmatprep.subr.bf16.mxu0 0
  %439 = vmatpush1.bf16.msra.mxu0 %v58
  %440 = vmatprep.subr.bf16.mxu0 0
  %441 = vmatpush1.bf16.msra.mxu0 0
  %442 = vmatprep.subr.bf16.mxu0 0
  %443 = vmatpush1.bf16.msra.mxu0 0
  %444 = vmatprep.subr.bf16.mxu0 0
  %445 = vmatpush1.bf16.msra.mxu0 0
  %446 = vmatprep.subr.bf16.mxu0 0
  %447 = vmatpush1.bf16.msra.mxu0 0
  %448 = vmatprep.subr.bf16.mxu0 0
  %449 = vmatpush1.bf16.msra.mxu0 0
  %450 = vmatprep.subr.bf16.mxu0 0
  %451 = vmatpush1.bf16.msra.mxu0 0
  %452 = vmatprep.subr.bf16.mxu0 0
  %453 = vmatpush1.bf16.msra.mxu0 0
  %454 = vmatprep.subr.bf16.mxu0 0
  %455 = vmatpush1.bf16.msra.mxu0 0
  %456 = vmatprep.subr.bf16.mxu0 0
  %457 = vmatpush1.bf16.msra.mxu0 0
  %458 = vmatprep.subr.bf16.mxu0 0
  %459 = vmatpush1.bf16.msra.mxu0 0
  %460 = vmatprep.subr.bf16.mxu0 0
  %461 = vmatpush1.bf16.msra.mxu0 0
  %462 = vmatprep.subr.bf16.mxu0 0
  %463 = vmatpush1.bf16.msra.mxu0 0
  %464 = vmatprep.mubr.bf16.mxu0 0
  %465 = vmatmul.mubr.bf16.gmra.mrb[0].mxu0 %v430
  %v466 = vpop.f32.mrb[0].mxu0
  %v467 = vadd.f32 %v78, %v466
  %v468 = vpop.f32.mrb[0].mxu0
  %v469 = vpop.f32.mrb[0].mxu0
  %v470 = vpop.f32.mrb[0].mxu0
  %471 = vdwg.mxu0
  %v472 = vstv %s101
  %v473 = vmul.f32 %v472, %v467
  %v474 = vadd.f32 %v96, %v473
  %476 = vset.pattern.permute.xlu0 0
  %477 = vperm.xlu0 %476, %v474
  %v478 = vpop.permute.xlu0 %477
  %v480 = vmul.f32 %v478, %v83
  %v481 = vadd.f32 %v64, %v480
  %482 = vset.pattern.permute.xlu0 1
  %483 = vperm.xlu0 %482, %v474
  %v484 = vpop.permute.xlu0 %483
  %v486 = vmul.f32 %v484, %v87
  %v487 = vadd.f32 %v481, %v486
  %488 = vset.pattern.permute.xlu0 2
  %489 = vperm.xlu0 %488, %v474
  %v490 = vpop.permute.xlu0 %489
  %v492 = vmul.f32 %v490, %v91
  %v493 = vadd.f32 %v487, %v492
  %494 = vset.pattern.permute.xlu0 3
  %495 = vperm.xlu0 %494, %v474
  %v496 = vpop.permute.xlu0 %495
  %v498 = vmul.f32 %v496, %v95
  %v499 = vadd.f32 %v493, %v498
  %v500 = vmul.f32 %v499, 0.5
  %v501 = vtanh.pop %v500
  %v502 = vadd.f32 %v501, 1.0
  %v503 = vmul.f32 %v500, %v502
  %v504 = vpack.c.bf16 %v503, %v503
  %v506 = vsel %vm133, %v504, 0
  %508 = vmatprep.subr.bf16.mxu0 0
  %509 = vmatpush1.bf16.msra.mxu0 %v43
  %510 = vmatprep.subr.bf16.mxu0 0
  %511 = vmatpush1.bf16.msra.mxu0 %v44
  %512 = vmatprep.subr.bf16.mxu0 0
  %513 = vmatpush1.bf16.msra.mxu0 %v45
  %514 = vmatprep.subr.bf16.mxu0 0
  %515 = vmatpush1.bf16.msra.mxu0 %v46
  %516 = vmatprep.subr.bf16.mxu0 0
  %517 = vmatpush1.bf16.msra.mxu0 0
  %518 = vmatprep.subr.bf16.mxu0 0
  %519 = vmatpush1.bf16.msra.mxu0 0
  %520 = vmatprep.subr.bf16.mxu0 0
  %521 = vmatpush1.bf16.msra.mxu0 0
  %522 = vmatprep.subr.bf16.mxu0 0
  %523 = vmatpush1.bf16.msra.mxu0 0
  %524 = vmatprep.subr.bf16.mxu0 0
  %525 = vmatpush1.bf16.msra.mxu0 0
  %526 = vmatprep.subr.bf16.mxu0 0
  %527 = vmatpush1.bf16.msra.mxu0 0
  %528 = vmatprep.subr.bf16.mxu0 0
  %529 = vmatpush1.bf16.msra.mxu0 0
  %530 = vmatprep.subr.bf16.mxu0 0
  %531 = vmatpush1.bf16.msra.mxu0 0
  %532 = vmatprep.subr.bf16.mxu0 0
  %533 = vmatpush1.bf16.msra.mxu0 0
  %534 = vmatprep.subr.bf16.mxu0 0
  %535 = vmatpush1.bf16.msra.mxu0 0
  %536 = vmatprep.subr.bf16.mxu0 0
  %537 = vmatpush1.bf16.msra.mxu0 0
  %538 = vmatprep.subr.bf16.mxu0 0
  %539 = vmatpush1.bf16.msra.mxu0 0
  %540 = vmatprep.mubr.bf16.mxu0 0
  %541 = vmatmul.mubr.bf16.gmra.mrb[0].mxu0 %v506
  %v542 = vpop.f32.mrb[0].mxu0
  %v543 = vadd.f32 %v71, %v542
  %v544 = vpop.f32.mrb[0].mxu0
  %v545 = vpop.f32.mrb[0].mxu0
  %v546 = vpop.f32.mrb[0].mxu0
  %547 = vdwg.mxu0
  %v548 = vmul.f32 %v543, 0.5
  %v549 = vtanh.pop %v548
  %v550 = vadd.f32 %v549, 1.0
  %v551 = vmul.f32 %v548, %v550
  %v552 = vpack.c.bf16 %v551, %v551
  %v554 = vsel %vm133, %v552, 0
  %556 = vmatprep.subr.bf16.mxu0 0
  %557 = vmatpush1.bf16.msra.mxu0 %v55
  %558 = vmatprep.subr.bf16.mxu0 0
  %559 = vmatpush1.bf16.msra.mxu0 %v56
  %560 = vmatprep.subr.bf16.mxu0 0
  %561 = vmatpush1.bf16.msra.mxu0 %v57
  %562 = vmatprep.subr.bf16.mxu0 0
  %563 = vmatpush1.bf16.msra.mxu0 %v58
  %564 = vmatprep.subr.bf16.mxu0 0
  %565 = vmatpush1.bf16.msra.mxu0 0
  %566 = vmatprep.subr.bf16.mxu0 0
  %567 = vmatpush1.bf16.msra.mxu0 0
  %568 = vmatprep.subr.bf16.mxu0 0
  %569 = vmatpush1.bf16.msra.mxu0 0
  %570 = vmatprep.subr.bf16.mxu0 0
  %571 = vmatpush1.bf16.msra.mxu0 0
  %572 = vmatprep.subr.bf16.mxu0 0
  %573 = vmatpush1.bf16.msra.mxu0 0
  %574 = vmatprep.subr.bf16.mxu0 0
  %575 = vmatpush1.bf16.msra.mxu0 0
  %576 = vmatprep.subr.bf16.mxu0 0
  %577 = vmatpush1.bf16.msra.mxu0 0
  %578 = vmatprep.subr.bf16.mxu0 0
  %579 = vmatpush1.bf16.msra.mxu0 0
  %580 = vmatprep.subr.bf16.mxu0 0
  %581 = vmatpush1.bf16.msra.mxu0 0
  %582 = vmatprep.subr.bf16.mxu0 0
  %583 = vmatpush1.bf16.msra.mxu0 0
  %584 = vmatprep.subr.bf16.mxu0 0
  %585 = vmatpush1.bf16.msra.mxu0 0
  %586 = vmatprep.subr.bf16.mxu0 0
  %587 = vmatpush1.bf16.msra.mxu0 0
  %588 = vmatprep.mubr.bf16.mxu0 0
  %589 = vmatmul.mubr.bf16.gmra.mrb[0].mxu0 %v554
  %v590 = vpop.f32.mrb[0].mxu0
  %v591 = vadd.f32 %v78, %v590
  %v592 = vpop.f32.mrb[0].mxu0
  %v593 = vpop.f32.mrb[0].mxu0
  %v594 = vpop.f32.mrb[0].mxu0
  %595 = vdwg.mxu0
  %v596 = vrcp.pop 6.0
  %s597 = vtos %v596
  %s598 = smul.f32 %s101, %s597
  %v599 = vadd.f32 %v344, %v467
  %v600 = vmul.f32 %v599, 2.0
  %v601 = vadd.f32 %v220, %v600
  %v602 = vadd.f32 %v601, %v591
  %v603 = vstv %s598
  %v604 = vmul.f32 %v603, %v602
  %v605 = vadd.f32 %v96, %v604
  %s606 = scalar_lea.vmem %s8, 8
  %607 = vst.msk [vmem:[%s606] sm:$0xff] %vm97, %v605
  %s608 = sld [smem:[#allocation3 + $0x2]]
  %s609 = sld [smem:[#allocation3 + $0x1]]
  %s610 = ssub.f32 %s608, %s609
  %s611 = smul.f32 %s610, 0.5
  %613 = vset.pattern.permute.xlu0 0
  %614 = vperm.xlu0 %613, %v605
  %v615 = vpop.permute.xlu0 %614
  %v617 = vmul.f32 %v615, %v83
  %v618 = vadd.f32 %v64, %v617
  %619 = vset.pattern.permute.xlu0 1
  %620 = vperm.xlu0 %619, %v605
  %v621 = vpop.permute.xlu0 %620
  %v623 = vmul.f32 %v621, %v87
  %v624 = vadd.f32 %v618, %v623
  %625 = vset.pattern.permute.xlu0 2
  %626 = vperm.xlu0 %625, %v605
  %v627 = vpop.permute.xlu0 %626
  %v629 = vmul.f32 %v627, %v91
  %v630 = vadd.f32 %v624, %v629
  %631 = vset.pattern.permute.xlu0 3
  %632 = vperm.xlu0 %631, %v605
  %v633 = vpop.permute.xlu0 %632
  %v635 = vmul.f32 %v633, %v95
  %v636 = vadd.f32 %v630, %v635
  %v637 = vmul.f32 %v636, 0.5
  %v638 = vtanh.pop %v637
  %v639 = vadd.f32 %v638, 1.0
  %v640 = vmul.f32 %v637, %v639
  %v641 = vpack.c.bf16 %v640, %v640
  %v643 = vsel %vm133, %v641, 0
  %645 = vmatprep.subr.bf16.mxu0 0
  %646 = vmatpush1.bf16.msra.mxu0 %v43
  %647 = vmatprep.subr.bf16.mxu0 0
  %648 = vmatpush1.bf16.msra.mxu0 %v44
  %649 = vmatprep.subr.bf16.mxu0 0
  %650 = vmatpush1.bf16.msra.mxu0 %v45
  %651 = vmatprep.subr.bf16.mxu0 0
  %652 = vmatpush1.bf16.msra.mxu0 %v46
  %653 = vmatprep.subr.bf16.mxu0 0
  %654 = vmatpush1.bf16.msra.mxu0 0
  %655 = vmatprep.subr.bf16.mxu0 0
  %656 = vmatpush1.bf16.msra.mxu0 0
  %657 = vmatprep.subr.bf16.mxu0 0
  %658 = vmatpush1.bf16.msra.mxu0 0
  %659 = vmatprep.subr.bf16.mxu0 0
  %660 = vmatpush1.bf16.msra.mxu0 0
  %661 = vmatprep.subr.bf16.mxu0 0
  %662 = vmatpush1.bf16.msra.mxu0 0
  %663 = vmatprep.subr.bf16.mxu0 0
  %664 = vmatpush1.bf16.msra.mxu0 0
  %665 = vmatprep.subr.bf16.mxu0 0
  %666 = vmatpush1.bf16.msra.mxu0 0
  %667 = vmatprep.subr.bf16.mxu0 0
  %668 = vmatpush1.bf16.msra.mxu0 0
  %669 = vmatprep.subr.bf16.mxu0 0
  %670 = vmatpush1.bf16.msra.mxu0 0
  %671 = vmatprep.subr.bf16.mxu0 0
  %672 = vmatpush1.bf16.msra.mxu0 0
  %673 = vmatprep.subr.bf16.mxu0 0
  %674 = vmatpush1.bf16.msra.mxu0 0
  %675 = vmatprep.subr.bf16.mxu0 0
  %676 = vmatpush1.bf16.msra.mxu0 0
  %677 = vmatprep.mubr.bf16.mxu0 0
  %678 = vmatmul.mubr.bf16.gmra.mrb[0].mxu0 %v643
  %v679 = vpop.f32.mrb[0].mxu0
  %v680 = vadd.f32 %v71, %v679
  %v681 = vpop.f32.mrb[0].mxu0
  %v682 = vpop.f32.mrb[0].mxu0
  %v683 = vpop.f32.mrb[0].mxu0
  %684 = vdwg.mxu0
  %v685 = vmul.f32 %v680, 0.5
  %v686 = vtanh.pop %v685
  %v687 = vadd.f32 %v686, 1.0
  %v688 = vmul.f32 %v685, %v687
  %v689 = vpack.c.bf16 %v688, %v688
  %v691 = vsel %vm133, %v689, 0
  %693 = vmatprep.subr.bf16.mxu0 0
  %694 = vmatpush1.bf16.msra.mxu0 %v55
  %695 = vmatprep.subr.bf16.mxu0 0
  %696 = vmatpush1.bf16.msra.mxu0 %v56
  %697 = vmatprep.subr.bf16.mxu0 0
  %698 = vmatpush1.bf16.msra.mxu0 %v57
  %699 = vmatprep.subr.bf16.mxu0 0
  %700 = vmatpush1.bf16.msra.mxu0 %v58
  %701 = vmatprep.subr.bf16.mxu0 0
  %702 = vmatpush1.bf16.msra.mxu0 0
  %703 = vmatprep.subr.bf16.mxu0 0
  %704 = vmatpush1.bf16.msra.mxu0 0
  %705 = vmatprep.subr.bf16.mxu0 0
  %706 = vmatpush1.bf16.msra.mxu0 0
  %707 = vmatprep.subr.bf16.mxu0 0
  %708 = vmatpush1.bf16.msra.mxu0 0
  %709 = vmatprep.subr.bf16.mxu0 0
  %710 = vmatpush1.bf16.msra.mxu0 0
  %711 = vmatprep.subr.bf16.mxu0 0
  %712 = vmatpush1.bf16.msra.mxu0 0
  %713 = vmatprep.subr.bf16.mxu0 0
  %714 = vmatpush1.bf16.msra.mxu0 0
  %715 = vmatprep.subr.bf16.mxu0 0
  %716 = vmatpush1.bf16.msra.mxu0 0
  %717 = vmatprep.subr.bf16.mxu0 0
  %718 = vmatpush1.bf16.msra.mxu0 0
  %719 = vmatprep.subr.bf16.mxu0 0
  %720 = vmatpush1.bf16.msra.mxu0 0
  %721 = vmatprep.subr.bf16.mxu0 0
  %722 = vmatpush1.bf16.msra.mxu0 0
  %723 = vmatprep.subr.bf16.mxu0 0
  %724 = vmatpush1.bf16.msra.mxu0 0
  %725 = vmatprep.mubr.bf16.mxu0 0
  %726 = vmatmul.mubr.bf16.gmra.mrb[0].mxu0 %v691
  %v727 = vpop.f32.mrb[0].mxu0
  %v728 = vadd.f32 %v78, %v727
  %v729 = vpop.f32.mrb[0].mxu0
  %v730 = vpop.f32.mrb[0].mxu0
  %v731 = vpop.f32.mrb[0].mxu0
  %732 = vdwg.mxu0
  %v733 = vstv %s611
  %v734 = vmul.f32 %v733, %v728
  %v735 = vadd.f32 %v605, %v734
  %737 = vset.pattern.permute.xlu0 0
  %738 = vperm.xlu0 %737, %v735
  %v739 = vpop.permute.xlu0 %738
  %v741 = vmul.f32 %v739, %v83
  %v742 = vadd.f32 %v64, %v741
  %743 = vset.pattern.permute.xlu0 1
  %744 = vperm.xlu0 %743, %v735
  %v745 = vpop.permute.xlu0 %744
  %v747 = vmul.f32 %v745, %v87
  %v748 = vadd.f32 %v742, %v747
  %749 = vset.pattern.permute.xlu0 2
  %750 = vperm.xlu0 %749, %v735
  %v751 = vpop.permute.xlu0 %750
  %v753 = vmul.f32 %v751, %v91
  %v754 = vadd.f32 %v748, %v753
  %755 = vset.pattern.permute.xlu0 3
  %756 = vperm.xlu0 %755, %v735
  %v757 = vpop.permute.xlu0 %756
  %v759 = vmul.f32 %v757, %v95
  %v760 = vadd.f32 %v754, %v759
  %v761 = vmul.f32 %v760, 0.5
  %v762 = vtanh.pop %v761
  %v763 = vadd.f32 %v762, 1.0
  %v764 = vmul.f32 %v761, %v763
  %v765 = vpack.c.bf16 %v764, %v764
  %v767 = vsel %vm133, %v765, 0
  %769 = vmatprep.subr.bf16.mxu0 0
  %770 = vmatpush1.bf16.msra.mxu0 %v43
  %771 = vmatprep.subr.bf16.mxu0 0
  %772 = vmatpush1.bf16.msra.mxu0 %v44
  %773 = vmatprep.subr.bf16.mxu0 0
  %774 = vmatpush1.bf16.msra.mxu0 %v45
  %775 = vmatprep.subr.bf16.mxu0 0
  %776 = vmatpush1.bf16.msra.mxu0 %v46
  %777 = vmatprep.subr.bf16.mxu0 0
  %778 = vmatpush1.bf16.msra.mxu0 0
  %779 = vmatprep.subr.bf16.mxu0 0
  %780 = vmatpush1.bf16.msra.mxu0 0
  %781 = vmatprep.subr.bf16.mxu0 0
  %782 = vmatpush1.bf16.msra.mxu0 0
  %783 = vmatprep.subr.bf16.mxu0 0
  %784 = vmatpush1.bf16.msra.mxu0 0
  %785 = vmatprep.subr.bf16.mxu0 0
  %786 = vmatpush1.bf16.msra.mxu0 0
  %787 = vmatprep.subr.bf16.mxu0 0
  %788 = vmatpush1.bf16.msra.mxu0 0
  %789 = vmatprep.subr.bf16.mxu0 0
  %790 = vmatpush1.bf16.msra.mxu0 0
  %791 = vmatprep.subr.bf16.mxu0 0
  %792 = vmatpush1.bf16.msra.mxu0 0
  %793 = vmatprep.subr.bf16.mxu0 0
  %794 = vmatpush1.bf16.msra.mxu0 0
  %795 = vmatprep.subr.bf16.mxu0 0
  %796 = vmatpush1.bf16.msra.mxu0 0
  %797 = vmatprep.subr.bf16.mxu0 0
  %798 = vmatpush1.bf16.msra.mxu0 0
  %799 = vmatprep.subr.bf16.mxu0 0
  %800 = vmatpush1.bf16.msra.mxu0 0
  %801 = vmatprep.mubr.bf16.mxu0 0
  %802 = vmatmul.mubr.bf16.gmra.mrb[0].mxu0 %v767
  %v803 = vpop.f32.mrb[0].mxu0
  %v804 = vadd.f32 %v71, %v803
  %v805 = vpop.f32.mrb[0].mxu0
  %v806 = vpop.f32.mrb[0].mxu0
  %v807 = vpop.f32.mrb[0].mxu0
  %808 = vdwg.mxu0
  %v809 = vmul.f32 %v804, 0.5
  %v810 = vtanh.pop %v809
  %v811 = vadd.f32 %v810, 1.0
  %v812 = vmul.f32 %v809, %v811
  %v813 = vpack.c.bf16 %v812, %v812
  %v815 = vsel %vm133, %v813, 0
  %817 = vmatprep.subr.bf16.mxu0 0
  %818 = vmatpush1.bf16.msra.mxu0 %v55
  %819 = vmatprep.subr.bf16.mxu0 0
  %820 = vmatpush1.bf16.msra.mxu0 %v56
  %821 = vmatprep.subr.bf16.mxu0 0
  %822 = vmatpush1.bf16.msra.mxu0 %v57
  %823 = vmatprep.subr.bf16.mxu0 0
  %824 = vmatpush1.bf16.msra.mxu0 %v58
  %825 = vmatprep.subr.bf16.mxu0 0
  %826 = vmatpush1.bf16.msra.mxu0 0
  %827 = vmatprep.subr.bf16.mxu0 0
  %828 = vmatpush1.bf16.msra.mxu0 0
  %829 = vmatprep.subr.bf16.mxu0 0
  %830 = vmatpush1.bf16.msra.mxu0 0
  %831 = vmatprep.subr.bf16.mxu0 0
  %832 = vmatpush1.bf16.msra.mxu0 0
  %833 = vmatprep.subr.bf16.mxu0 0
  %834 = vmatpush1.bf16.msra.mxu0 0
  %835 = vmatprep.subr.bf16.mxu0 0
  %836 = vmatpush1.bf16.msra.mxu0 0
  %837 = vmatprep.subr.bf16.mxu0 0
  %838 = vmatpush1.bf16.msra.mxu0 0
  %839 = vmatprep.subr.bf16.mxu0 0
  %840 = vmatpush1.bf16.msra.mxu0 0
  %841 = vmatprep.subr.bf16.mxu0 0
  %842 = vmatpush1.bf16.msra.mxu0 0
  %843 = vmatprep.subr.bf16.mxu0 0
  %844 = vmatpush1.bf16.msra.mxu0 0
  %845 = vmatprep.subr.bf16.mxu0 0
  %846 = vmatpush1.bf16.msra.mxu0 0
  %847 = vmatprep.subr.bf16.mxu0 0
  %848 = vmatpush1.bf16.msra.mxu0 0
  %849 = vmatprep.mubr.bf16.mxu0 0
  %850 = vmatmul.mubr.bf16.gmra.mrb[0].mxu0 %v815
  %v851 = vpop.f32.mrb[0].mxu0
  %v852 = vadd.f32 %v78, %v851
  %v853 = vpop.f32.mrb[0].mxu0
  %v854 = vpop.f32.mrb[0].mxu0
  %v855 = vpop.f32.mrb[0].mxu0
  %856 = vdwg.mxu0
  %v857 = vmul.f32 %v733, %v852
  %v858 = vadd.f32 %v605, %v857
  %860 = vset.pattern.permute.xlu0 0
  %861 = vperm.xlu0 %860, %v858
  %v862 = vpop.permute.xlu0 %861
  %v864 = vmul.f32 %v862, %v83
  %v865 = vadd.f32 %v64, %v864
  %866 = vset.pattern.permute.xlu0 1
  %867 = vperm.xlu0 %866, %v858
  %v868 = vpop.permute.xlu0 %867
  %v870 = vmul.f32 %v868, %v87
  %v871 = vadd.f32 %v865, %v870
  %872 = vset.pattern.permute.xlu0 2
  %873 = vperm.xlu0 %872, %v858
  %v874 = vpop.permute.xlu0 %873
  %v876 = vmul.f32 %v874, %v91
  %v877 = vadd.f32 %v871, %v876
  %878 = vset.pattern.permute.xlu0 3
  %879 = vperm.xlu0 %878, %v858
  %v880 = vpop.permute.xlu0 %879
  %v882 = vmul.f32 %v880, %v95
  %v883 = vadd.f32 %v877, %v882
  %v884 = vmul.f32 %v883, 0.5
  %v885 = vtanh.pop %v884
  %v886 = vadd.f32 %v885, 1.0
  %v887 = vmul.f32 %v884, %v886
  %v888 = vpack.c.bf16 %v887, %v887
  %v890 = vsel %vm133, %v888, 0
  %892 = vmatprep.subr.bf16.mxu0 0
  %893 = vmatpush1.bf16.msra.mxu0 %v43
  %894 = vmatprep.subr.bf16.mxu0 0
  %895 = vmatpush1.bf16.msra.mxu0 %v44
  %896 = vmatprep.subr.bf16.mxu0 0
  %897 = vmatpush1.bf16.msra.mxu0 %v45
  %898 = vmatprep.subr.bf16.mxu0 0
  %899 = vmatpush1.bf16.msra.mxu0 %v46
  %900 = vmatprep.subr.bf16.mxu0 0
  %901 = vmatpush1.bf16.msra.mxu0 0
  %902 = vmatprep.subr.bf16.mxu0 0
  %903 = vmatpush1.bf16.msra.mxu0 0
  %904 = vmatprep.subr.bf16.mxu0 0
  %905 = vmatpush1.bf16.msra.mxu0 0
  %906 = vmatprep.subr.bf16.mxu0 0
  %907 = vmatpush1.bf16.msra.mxu0 0
  %908 = vmatprep.subr.bf16.mxu0 0
  %909 = vmatpush1.bf16.msra.mxu0 0
  %910 = vmatprep.subr.bf16.mxu0 0
  %911 = vmatpush1.bf16.msra.mxu0 0
  %912 = vmatprep.subr.bf16.mxu0 0
  %913 = vmatpush1.bf16.msra.mxu0 0
  %914 = vmatprep.subr.bf16.mxu0 0
  %915 = vmatpush1.bf16.msra.mxu0 0
  %916 = vmatprep.subr.bf16.mxu0 0
  %917 = vmatpush1.bf16.msra.mxu0 0
  %918 = vmatprep.subr.bf16.mxu0 0
  %919 = vmatpush1.bf16.msra.mxu0 0
  %920 = vmatprep.subr.bf16.mxu0 0
  %921 = vmatpush1.bf16.msra.mxu0 0
  %922 = vmatprep.subr.bf16.mxu0 0
  %923 = vmatpush1.bf16.msra.mxu0 0
  %924 = vmatprep.mubr.bf16.mxu0 0
  %925 = vmatmul.mubr.bf16.gmra.mrb[0].mxu0 %v890
  %v926 = vpop.f32.mrb[0].mxu0
  %v927 = vadd.f32 %v71, %v926
  %v928 = vpop.f32.mrb[0].mxu0
  %v929 = vpop.f32.mrb[0].mxu0
  %v930 = vpop.f32.mrb[0].mxu0
  %931 = vdwg.mxu0
  %v932 = vmul.f32 %v927, 0.5
  %v933 = vtanh.pop %v932
  %v934 = vadd.f32 %v933, 1.0
  %v935 = vmul.f32 %v932, %v934
  %v936 = vpack.c.bf16 %v935, %v935
  %v938 = vsel %vm133, %v936, 0
  %940 = vmatprep.subr.bf16.mxu0 0
  %941 = vmatpush1.bf16.msra.mxu0 %v55
  %942 = vmatprep.subr.bf16.mxu0 0
  %943 = vmatpush1.bf16.msra.mxu0 %v56
  %944 = vmatprep.subr.bf16.mxu0 0
  %945 = vmatpush1.bf16.msra.mxu0 %v57
  %946 = vmatprep.subr.bf16.mxu0 0
  %947 = vmatpush1.bf16.msra.mxu0 %v58
  %948 = vmatprep.subr.bf16.mxu0 0
  %949 = vmatpush1.bf16.msra.mxu0 0
  %950 = vmatprep.subr.bf16.mxu0 0
  %951 = vmatpush1.bf16.msra.mxu0 0
  %952 = vmatprep.subr.bf16.mxu0 0
  %953 = vmatpush1.bf16.msra.mxu0 0
  %954 = vmatprep.subr.bf16.mxu0 0
  %955 = vmatpush1.bf16.msra.mxu0 0
  %956 = vmatprep.subr.bf16.mxu0 0
  %957 = vmatpush1.bf16.msra.mxu0 0
  %958 = vmatprep.subr.bf16.mxu0 0
  %959 = vmatpush1.bf16.msra.mxu0 0
  %960 = vmatprep.subr.bf16.mxu0 0
  %961 = vmatpush1.bf16.msra.mxu0 0
  %962 = vmatprep.subr.bf16.mxu0 0
  %963 = vmatpush1.bf16.msra.mxu0 0
  %964 = vmatprep.subr.bf16.mxu0 0
  %965 = vmatpush1.bf16.msra.mxu0 0
  %966 = vmatprep.subr.bf16.mxu0 0
  %967 = vmatpush1.bf16.msra.mxu0 0
  %968 = vmatprep.subr.bf16.mxu0 0
  %969 = vmatpush1.bf16.msra.mxu0 0
  %970 = vmatprep.subr.bf16.mxu0 0
  %971 = vmatpush1.bf16.msra.mxu0 0
  %972 = vmatprep.mubr.bf16.mxu0 0
  %973 = vmatmul.mubr.bf16.gmra.mrb[0].mxu0 %v938
  %v974 = vpop.f32.mrb[0].mxu0
  %v975 = vadd.f32 %v78, %v974
  %v976 = vpop.f32.mrb[0].mxu0
  %v977 = vpop.f32.mrb[0].mxu0
  %v978 = vpop.f32.mrb[0].mxu0
  %979 = vdwg.mxu0
  %v980 = vstv %s610
  %v981 = vmul.f32 %v980, %v975
  %v982 = vadd.f32 %v605, %v981
  %984 = vset.pattern.permute.xlu0 0
  %985 = vperm.xlu0 %984, %v982
  %v986 = vpop.permute.xlu0 %985
  %v988 = vmul.f32 %v986, %v83
  %v989 = vadd.f32 %v64, %v988
  %990 = vset.pattern.permute.xlu0 1
  %991 = vperm.xlu0 %990, %v982
  %v992 = vpop.permute.xlu0 %991
  %v994 = vmul.f32 %v992, %v87
  %v995 = vadd.f32 %v989, %v994
  %996 = vset.pattern.permute.xlu0 2
  %997 = vperm.xlu0 %996, %v982
  %v998 = vpop.permute.xlu0 %997
  %v1000 = vmul.f32 %v998, %v91
  %v1001 = vadd.f32 %v995, %v1000
  %1002 = vset.pattern.permute.xlu0 3
  %1003 = vperm.xlu0 %1002, %v982
  %v1004 = vpop.permute.xlu0 %1003
  %v1006 = vmul.f32 %v1004, %v95
  %v1007 = vadd.f32 %v1001, %v1006
  %v1008 = vmul.f32 %v1007, 0.5
  %v1009 = vtanh.pop %v1008
  %v1010 = vadd.f32 %v1009, 1.0
  %v1011 = vmul.f32 %v1008, %v1010
  %v1012 = vpack.c.bf16 %v1011, %v1011
  %v1014 = vsel %vm133, %v1012, 0
  %1016 = vmatprep.subr.bf16.mxu0 0
  %1017 = vmatpush1.bf16.msra.mxu0 %v43
  %1018 = vmatprep.subr.bf16.mxu0 0
  %1019 = vmatpush1.bf16.msra.mxu0 %v44
  %1020 = vmatprep.subr.bf16.mxu0 0
  %1021 = vmatpush1.bf16.msra.mxu0 %v45
  %1022 = vmatprep.subr.bf16.mxu0 0
  %1023 = vmatpush1.bf16.msra.mxu0 %v46
  %1024 = vmatprep.subr.bf16.mxu0 0
  %1025 = vmatpush1.bf16.msra.mxu0 0
  %1026 = vmatprep.subr.bf16.mxu0 0
  %1027 = vmatpush1.bf16.msra.mxu0 0
  %1028 = vmatprep.subr.bf16.mxu0 0
  %1029 = vmatpush1.bf16.msra.mxu0 0
  %1030 = vmatprep.subr.bf16.mxu0 0
  %1031 = vmatpush1.bf16.msra.mxu0 0
  %1032 = vmatprep.subr.bf16.mxu0 0
  %1033 = vmatpush1.bf16.msra.mxu0 0
  %1034 = vmatprep.subr.bf16.mxu0 0
  %1035 = vmatpush1.bf16.msra.mxu0 0
  %1036 = vmatprep.subr.bf16.mxu0 0
  %1037 = vmatpush1.bf16.msra.mxu0 0
  %1038 = vmatprep.subr.bf16.mxu0 0
  %1039 = vmatpush1.bf16.msra.mxu0 0
  %1040 = vmatprep.subr.bf16.mxu0 0
  %1041 = vmatpush1.bf16.msra.mxu0 0
  %1042 = vmatprep.subr.bf16.mxu0 0
  %1043 = vmatpush1.bf16.msra.mxu0 0
  %1044 = vmatprep.subr.bf16.mxu0 0
  %1045 = vmatpush1.bf16.msra.mxu0 0
  %1046 = vmatprep.subr.bf16.mxu0 0
  %1047 = vmatpush1.bf16.msra.mxu0 0
  %1048 = vmatprep.mubr.bf16.mxu0 0
  %1049 = vmatmul.mubr.bf16.gmra.mrb[0].mxu0 %v1014
  %v1050 = vpop.f32.mrb[0].mxu0
  %v1051 = vadd.f32 %v71, %v1050
  %v1052 = vpop.f32.mrb[0].mxu0
  %v1053 = vpop.f32.mrb[0].mxu0
  %v1054 = vpop.f32.mrb[0].mxu0
  %1055 = vdwg.mxu0
  %v1056 = vmul.f32 %v1051, 0.5
  %v1057 = vtanh.pop %v1056
  %v1058 = vadd.f32 %v1057, 1.0
  %v1059 = vmul.f32 %v1056, %v1058
  %v1060 = vpack.c.bf16 %v1059, %v1059
  %v1062 = vsel %vm133, %v1060, 0
  %1064 = vmatprep.subr.bf16.mxu0 0
  %1065 = vmatpush1.bf16.msra.mxu0 %v55
  %1066 = vmatprep.subr.bf16.mxu0 0
  %1067 = vmatpush1.bf16.msra.mxu0 %v56
  %1068 = vmatprep.subr.bf16.mxu0 0
  %1069 = vmatpush1.bf16.msra.mxu0 %v57
  %1070 = vmatprep.subr.bf16.mxu0 0
  %1071 = vmatpush1.bf16.msra.mxu0 %v58
  %1072 = vmatprep.subr.bf16.mxu0 0
  %1073 = vmatpush1.bf16.msra.mxu0 0
  %1074 = vmatprep.subr.bf16.mxu0 0
  %1075 = vmatpush1.bf16.msra.mxu0 0
  %1076 = vmatprep.subr.bf16.mxu0 0
  %1077 = vmatpush1.bf16.msra.mxu0 0
  %1078 = vmatprep.subr.bf16.mxu0 0
  %1079 = vmatpush1.bf16.msra.mxu0 0
  %1080 = vmatprep.subr.bf16.mxu0 0
  %1081 = vmatpush1.bf16.msra.mxu0 0
  %1082 = vmatprep.subr.bf16.mxu0 0
  %1083 = vmatpush1.bf16.msra.mxu0 0
  %1084 = vmatprep.subr.bf16.mxu0 0
  %1085 = vmatpush1.bf16.msra.mxu0 0
  %1086 = vmatprep.subr.bf16.mxu0 0
  %1087 = vmatpush1.bf16.msra.mxu0 0
  %1088 = vmatprep.subr.bf16.mxu0 0
  %1089 = vmatpush1.bf16.msra.mxu0 0
  %1090 = vmatprep.subr.bf16.mxu0 0
  %1091 = vmatpush1.bf16.msra.mxu0 0
  %1092 = vmatprep.subr.bf16.mxu0 0
  %1093 = vmatpush1.bf16.msra.mxu0 0
  %1094 = vmatprep.subr.bf16.mxu0 0
  %1095 = vmatpush1.bf16.msra.mxu0 0
  %1096 = vmatprep.mubr.bf16.mxu0 0
  %1097 = vmatmul.mubr.bf16.gmra.mrb[0].mxu0 %v1062
  %v1098 = vpop.f32.mrb[0].mxu0
  %v1099 = vadd.f32 %v78, %v1098
  %v1100 = vpop.f32.mrb[0].mxu0
  %v1101 = vpop.f32.mrb[0].mxu0
  %v1102 = vpop.f32.mrb[0].mxu0
  %1103 = vdwg.mxu0
  %v1104 = vrcp.pop 6.0
  %s1105 = vtos %v1104
  %s1106 = smul.f32 %s610, %s1105
  %v1107 = vadd.f32 %v852, %v975
  %v1108 = vmul.f32 %v1107, 2.0
  %v1109 = vadd.f32 %v728, %v1108
  %v1110 = vadd.f32 %v1109, %v1099
  %v1111 = vstv %s1106
  %v1112 = vmul.f32 %v1111, %v1110
  %v1113 = vadd.f32 %v605, %v1112
  %s1114 = scalar_lea.vmem %s8, 16
  %1115 = vst.msk [vmem:[%s1114] sm:$0xff] %vm97, %v1113
  %s1116 = sld [smem:[#allocation3 + $0x3]]
  %s1117 = sld [smem:[#allocation3 + $0x2]]
  %s1118 = ssub.f32 %s1116, %s1117
  %s1119 = smul.f32 %s1118, 0.5
  %1121 = vset.pattern.permute.xlu0 0
  %1122 = vperm.xlu0 %1121, %v1113
  %v1123 = vpop.permute.xlu0 %1122
  %v1125 = vmul.f32 %v1123, %v83
  %v1126 = vadd.f32 %v64, %v1125
  %1127 = vset.pattern.permute.xlu0 1
  %1128 = vperm.xlu0 %1127, %v1113
  %v1129 = vpop.permute.xlu0 %1128
  %v1131 = vmul.f32 %v1129, %v87
  %v1132 = vadd.f32 %v1126, %v1131
  %1133 = vset.pattern.permute.xlu0 2
  %1134 = vperm.xlu0 %1133, %v1113
  %v1135 = vpop.permute.xlu0 %1134
  %v1137 = vmul.f32 %v1135, %v91
  %v1138 = vadd.f32 %v1132, %v1137
  %1139 = vset.pattern.permute.xlu0 3
  %1140 = vperm.xlu0 %1139, %v1113
  %v1141 = vpop.permute.xlu0 %1140
  %v1143 = vmul.f32 %v1141, %v95
  %v1144 = vadd.f32 %v1138, %v1143
  %v1145 = vmul.f32 %v1144, 0.5
  %v1146 = vtanh.pop %v1145
  %v1147 = vadd.f32 %v1146, 1.0
  %v1148 = vmul.f32 %v1145, %v1147
  %v1149 = vpack.c.bf16 %v1148, %v1148
  %v1151 = vsel %vm133, %v1149, 0
  %1153 = vmatprep.subr.bf16.mxu0 0
  %1154 = vmatpush1.bf16.msra.mxu0 %v43
  %1155 = vmatprep.subr.bf16.mxu0 0
  %1156 = vmatpush1.bf16.msra.mxu0 %v44
  %1157 = vmatprep.subr.bf16.mxu0 0
  %1158 = vmatpush1.bf16.msra.mxu0 %v45
  %1159 = vmatprep.subr.bf16.mxu0 0
  %1160 = vmatpush1.bf16.msra.mxu0 %v46
  %1161 = vmatprep.subr.bf16.mxu0 0
  %1162 = vmatpush1.bf16.msra.mxu0 0
  %1163 = vmatprep.subr.bf16.mxu0 0
  %1164 = vmatpush1.bf16.msra.mxu0 0
  %1165 = vmatprep.subr.bf16.mxu0 0
  %1166 = vmatpush1.bf16.msra.mxu0 0
  %1167 = vmatprep.subr.bf16.mxu0 0
  %1168 = vmatpush1.bf16.msra.mxu0 0
  %1169 = vmatprep.subr.bf16.mxu0 0
  %1170 = vmatpush1.bf16.msra.mxu0 0
  %1171 = vmatprep.subr.bf16.mxu0 0
  %1172 = vmatpush1.bf16.msra.mxu0 0
  %1173 = vmatprep.subr.bf16.mxu0 0
  %1174 = vmatpush1.bf16.msra.mxu0 0
  %1175 = vmatprep.subr.bf16.mxu0 0
  %1176 = vmatpush1.bf16.msra.mxu0 0
  %1177 = vmatprep.subr.bf16.mxu0 0
  %1178 = vmatpush1.bf16.msra.mxu0 0
  %1179 = vmatprep.subr.bf16.mxu0 0
  %1180 = vmatpush1.bf16.msra.mxu0 0
  %1181 = vmatprep.subr.bf16.mxu0 0
  %1182 = vmatpush1.bf16.msra.mxu0 0
  %1183 = vmatprep.subr.bf16.mxu0 0
  %1184 = vmatpush1.bf16.msra.mxu0 0
  %1185 = vmatprep.mubr.bf16.mxu0 0
  %1186 = vmatmul.mubr.bf16.gmra.mrb[0].mxu0 %v1151
  %v1187 = vpop.f32.mrb[0].mxu0
  %v1188 = vadd.f32 %v71, %v1187
  %v1189 = vpop.f32.mrb[0].mxu0
  %v1190 = vpop.f32.mrb[0].mxu0
  %v1191 = vpop.f32.mrb[0].mxu0
  %1192 = vdwg.mxu0
  %v1193 = vmul.f32 %v1188, 0.5
  %v1194 = vtanh.pop %v1193
  %v1195 = vadd.f32 %v1194, 1.0
  %v1196 = vmul.f32 %v1193, %v1195
  %v1197 = vpack.c.bf16 %v1196, %v1196
  %v1199 = vsel %vm133, %v1197, 0
  %1201 = vmatprep.subr.bf16.mxu0 0
  %1202 = vmatpush1.bf16.msra.mxu0 %v55
  %1203 = vmatprep.subr.bf16.mxu0 0
  %1204 = vmatpush1.bf16.msra.mxu0 %v56
  %1205 = vmatprep.subr.bf16.mxu0 0
  %1206 = vmatpush1.bf16.msra.mxu0 %v57
  %1207 = vmatprep.subr.bf16.mxu0 0
  %1208 = vmatpush1.bf16.msra.mxu0 %v58
  %1209 = vmatprep.subr.bf16.mxu0 0
  %1210 = vmatpush1.bf16.msra.mxu0 0
  %1211 = vmatprep.subr.bf16.mxu0 0
  %1212 = vmatpush1.bf16.msra.mxu0 0
  %1213 = vmatprep.subr.bf16.mxu0 0
  %1214 = vmatpush1.bf16.msra.mxu0 0
  %1215 = vmatprep.subr.bf16.mxu0 0
  %1216 = vmatpush1.bf16.msra.mxu0 0
  %1217 = vmatprep.subr.bf16.mxu0 0
  %1218 = vmatpush1.bf16.msra.mxu0 0
  %1219 = vmatprep.subr.bf16.mxu0 0
  %1220 = vmatpush1.bf16.msra.mxu0 0
  %1221 = vmatprep.subr.bf16.mxu0 0
  %1222 = vmatpush1.bf16.msra.mxu0 0
  %1223 = vmatprep.subr.bf16.mxu0 0
  %1224 = vmatpush1.bf16.msra.mxu0 0
  %1225 = vmatprep.subr.bf16.mxu0 0
  %1226 = vmatpush1.bf16.msra.mxu0 0
  %1227 = vmatprep.subr.bf16.mxu0 0
  %1228 = vmatpush1.bf16.msra.mxu0 0
  %1229 = vmatprep.subr.bf16.mxu0 0
  %1230 = vmatpush1.bf16.msra.mxu0 0
  %1231 = vmatprep.subr.bf16.mxu0 0
  %1232 = vmatpush1.bf16.msra.mxu0 0
  %1233 = vmatprep.mubr.bf16.mxu0 0
  %1234 = vmatmul.mubr.bf16.gmra.mrb[0].mxu0 %v1199
  %v1235 = vpop.f32.mrb[0].mxu0
  %v1236 = vadd.f32 %v78, %v1235
  %v1237 = vpop.f32.mrb[0].mxu0
  %v1238 = vpop.f32.mrb[0].mxu0
  %v1239 = vpop.f32.mrb[0].mxu0
  %1240 = vdwg.mxu0
  %v1241 = vstv %s1119
  %v1242 = vmul.f32 %v1241, %v1236
  %v1243 = vadd.f32 %v1113, %v1242
  %1245 = vset.pattern.permute.xlu0 0
  %1246 = vperm.xlu0 %1245, %v1243
  %v1247 = vpop.permute.xlu0 %1246
  %v1249 = vmul.f32 %v1247, %v83
  %v1250 = vadd.f32 %v64, %v1249
  %1251 = vset.pattern.permute.xlu0 1
  %1252 = vperm.xlu0 %1251, %v1243
  %v1253 = vpop.permute.xlu0 %1252
  %v1255 = vmul.f32 %v1253, %v87
  %v1256 = vadd.f32 %v1250, %v1255
  %1257 = vset.pattern.permute.xlu0 2
  %1258 = vperm.xlu0 %1257, %v1243
  %v1259 = vpop.permute.xlu0 %1258
  %v1261 = vmul.f32 %v1259, %v91
  %v1262 = vadd.f32 %v1256, %v1261
  %1263 = vset.pattern.permute.xlu0 3
  %1264 = vperm.xlu0 %1263, %v1243
  %v1265 = vpop.permute.xlu0 %1264
  %v1267 = vmul.f32 %v1265, %v95
  %v1268 = vadd.f32 %v1262, %v1267
  %v1269 = vmul.f32 %v1268, 0.5
  %v1270 = vtanh.pop %v1269
  %v1271 = vadd.f32 %v1270, 1.0
  %v1272 = vmul.f32 %v1269, %v1271
  %v1273 = vpack.c.bf16 %v1272, %v1272
  %v1275 = vsel %vm133, %v1273, 0
  %1277 = vmatprep.subr.bf16.mxu0 0
  %1278 = vmatpush1.bf16.msra.mxu0 %v43
  %1279 = vmatprep.subr.bf16.mxu0 0
  %1280 = vmatpush1.bf16.msra.mxu0 %v44
  %1281 = vmatprep.subr.bf16.mxu0 0
  %1282 = vmatpush1.bf16.msra.mxu0 %v45
  %1283 = vmatprep.subr.bf16.mxu0 0
  %1284 = vmatpush1.bf16.msra.mxu0 %v46
  %1285 = vmatprep.subr.bf16.mxu0 0
  %1286 = vmatpush1.bf16.msra.mxu0 0
  %1287 = vmatprep.subr.bf16.mxu0 0
  %1288 = vmatpush1.bf16.msra.mxu0 0
  %1289 = vmatprep.subr.bf16.mxu0 0
  %1290 = vmatpush1.bf16.msra.mxu0 0
  %1291 = vmatprep.subr.bf16.mxu0 0
  %1292 = vmatpush1.bf16.msra.mxu0 0
  %1293 = vmatprep.subr.bf16.mxu0 0
  %1294 = vmatpush1.bf16.msra.mxu0 0
  %1295 = vmatprep.subr.bf16.mxu0 0
  %1296 = vmatpush1.bf16.msra.mxu0 0
  %1297 = vmatprep.subr.bf16.mxu0 0
  %1298 = vmatpush1.bf16.msra.mxu0 0
  %1299 = vmatprep.subr.bf16.mxu0 0
  %1300 = vmatpush1.bf16.msra.mxu0 0
  %1301 = vmatprep.subr.bf16.mxu0 0
  %1302 = vmatpush1.bf16.msra.mxu0 0
  %1303 = vmatprep.subr.bf16.mxu0 0
  %1304 = vmatpush1.bf16.msra.mxu0 0
  %1305 = vmatprep.subr.bf16.mxu0 0
  %1306 = vmatpush1.bf16.msra.mxu0 0
  %1307 = vmatprep.subr.bf16.mxu0 0
  %1308 = vmatpush1.bf16.msra.mxu0 0
  %1309 = vmatprep.mubr.bf16.mxu0 0
  %1310 = vmatmul.mubr.bf16.gmra.mrb[0].mxu0 %v1275
  %v1311 = vpop.f32.mrb[0].mxu0
  %v1312 = vadd.f32 %v71, %v1311
  %v1313 = vpop.f32.mrb[0].mxu0
  %v1314 = vpop.f32.mrb[0].mxu0
  %v1315 = vpop.f32.mrb[0].mxu0
  %1316 = vdwg.mxu0
  %v1317 = vmul.f32 %v1312, 0.5
  %v1318 = vtanh.pop %v1317
  %v1319 = vadd.f32 %v1318, 1.0
  %v1320 = vmul.f32 %v1317, %v1319
  %v1321 = vpack.c.bf16 %v1320, %v1320
  %v1323 = vsel %vm133, %v1321, 0
  %1325 = vmatprep.subr.bf16.mxu0 0
  %1326 = vmatpush1.bf16.msra.mxu0 %v55
  %1327 = vmatprep.subr.bf16.mxu0 0
  %1328 = vmatpush1.bf16.msra.mxu0 %v56
  %1329 = vmatprep.subr.bf16.mxu0 0
  %1330 = vmatpush1.bf16.msra.mxu0 %v57
  %1331 = vmatprep.subr.bf16.mxu0 0
  %1332 = vmatpush1.bf16.msra.mxu0 %v58
  %1333 = vmatprep.subr.bf16.mxu0 0
  %1334 = vmatpush1.bf16.msra.mxu0 0
  %1335 = vmatprep.subr.bf16.mxu0 0
  %1336 = vmatpush1.bf16.msra.mxu0 0
  %1337 = vmatprep.subr.bf16.mxu0 0
  %1338 = vmatpush1.bf16.msra.mxu0 0
  %1339 = vmatprep.subr.bf16.mxu0 0
  %1340 = vmatpush1.bf16.msra.mxu0 0
  %1341 = vmatprep.subr.bf16.mxu0 0
  %1342 = vmatpush1.bf16.msra.mxu0 0
  %1343 = vmatprep.subr.bf16.mxu0 0
  %1344 = vmatpush1.bf16.msra.mxu0 0
  %1345 = vmatprep.subr.bf16.mxu0 0
  %1346 = vmatpush1.bf16.msra.mxu0 0
  %1347 = vmatprep.subr.bf16.mxu0 0
  %1348 = vmatpush1.bf16.msra.mxu0 0
  %1349 = vmatprep.subr.bf16.mxu0 0
  %1350 = vmatpush1.bf16.msra.mxu0 0
  %1351 = vmatprep.subr.bf16.mxu0 0
  %1352 = vmatpush1.bf16.msra.mxu0 0
  %1353 = vmatprep.subr.bf16.mxu0 0
  %1354 = vmatpush1.bf16.msra.mxu0 0
  %1355 = vmatprep.subr.bf16.mxu0 0
  %1356 = vmatpush1.bf16.msra.mxu0 0
  %1357 = vmatprep.mubr.bf16.mxu0 0
  %1358 = vmatmul.mubr.bf16.gmra.mrb[0].mxu0 %v1323
  %v1359 = vpop.f32.mrb[0].mxu0
  %v1360 = vadd.f32 %v78, %v1359
  %v1361 = vpop.f32.mrb[0].mxu0
  %v1362 = vpop.f32.mrb[0].mxu0
  %v1363 = vpop.f32.mrb[0].mxu0
  %1364 = vdwg.mxu0
  %v1365 = vmul.f32 %v1241, %v1360
  %v1366 = vadd.f32 %v1113, %v1365
  %1368 = vset.pattern.permute.xlu0 0
  %1369 = vperm.xlu0 %1368, %v1366
  %v1370 = vpop.permute.xlu0 %1369
  %v1372 = vmul.f32 %v1370, %v83
  %v1373 = vadd.f32 %v64, %v1372
  %1374 = vset.pattern.permute.xlu0 1
  %1375 = vperm.xlu0 %1374, %v1366
  %v1376 = vpop.permute.xlu0 %1375
  %v1378 = vmul.f32 %v1376, %v87
  %v1379 = vadd.f32 %v1373, %v1378
  %1380 = vset.pattern.permute.xlu0 2
  %1381 = vperm.xlu0 %1380, %v1366
  %v1382 = vpop.permute.xlu0 %1381
  %v1384 = vmul.f32 %v1382, %v91
  %v1385 = vadd.f32 %v1379, %v1384
  %1386 = vset.pattern.permute.xlu0 3
  %1387 = vperm.xlu0 %1386, %v1366
  %v1388 = vpop.permute.xlu0 %1387
  %v1390 = vmul.f32 %v1388, %v95
  %v1391 = vadd.f32 %v1385, %v1390
  %v1392 = vmul.f32 %v1391, 0.5
  %v1393 = vtanh.pop %v1392
  %v1394 = vadd.f32 %v1393, 1.0
  %v1395 = vmul.f32 %v1392, %v1394
  %v1396 = vpack.c.bf16 %v1395, %v1395
  %v1398 = vsel %vm133, %v1396, 0
  %1400 = vmatprep.subr.bf16.mxu0 0
  %1401 = vmatpush1.bf16.msra.mxu0 %v43
  %1402 = vmatprep.subr.bf16.mxu0 0
  %1403 = vmatpush1.bf16.msra.mxu0 %v44
  %1404 = vmatprep.subr.bf16.mxu0 0
  %1405 = vmatpush1.bf16.msra.mxu0 %v45
  %1406 = vmatprep.subr.bf16.mxu0 0
  %1407 = vmatpush1.bf16.msra.mxu0 %v46
  %1408 = vmatprep.subr.bf16.mxu0 0
  %1409 = vmatpush1.bf16.msra.mxu0 0
  %1410 = vmatprep.subr.bf16.mxu0 0
  %1411 = vmatpush1.bf16.msra.mxu0 0
  %1412 = vmatprep.subr.bf16.mxu0 0
  %1413 = vmatpush1.bf16.msra.mxu0 0
  %1414 = vmatprep.subr.bf16.mxu0 0
  %1415 = vmatpush1.bf16.msra.mxu0 0
  %1416 = vmatprep.subr.bf16.mxu0 0
  %1417 = vmatpush1.bf16.msra.mxu0 0
  %1418 = vmatprep.subr.bf16.mxu0 0
  %1419 = vmatpush1.bf16.msra.mxu0 0
  %1420 = vmatprep.subr.bf16.mxu0 0
  %1421 = vmatpush1.bf16.msra.mxu0 0
  %1422 = vmatprep.subr.bf16.mxu0 0
  %1423 = vmatpush1.bf16.msra.mxu0 0
  %1424 = vmatprep.subr.bf16.mxu0 0
  %1425 = vmatpush1.bf16.msra.mxu0 0
  %1426 = vmatprep.subr.bf16.mxu0 0
  %1427 = vmatpush1.bf16.msra.mxu0 0
  %1428 = vmatprep.subr.bf16.mxu0 0
  %1429 = vmatpush1.bf16.msra.mxu0 0
  %1430 = vmatprep.subr.bf16.mxu0 0
  %1431 = vmatpush1.bf16.msra.mxu0 0
  %1432 = vmatprep.mubr.bf16.mxu0 0
  %1433 = vmatmul.mubr.bf16.gmra.mrb[0].mxu0 %v1398
  %v1434 = vpop.f32.mrb[0].mxu0
  %v1435 = vadd.f32 %v71, %v1434
  %v1436 = vpop.f32.mrb[0].mxu0
  %v1437 = vpop.f32.mrb[0].mxu0
  %v1438 = vpop.f32.mrb[0].mxu0
  %1439 = vdwg.mxu0
  %v1440 = vmul.f32 %v1435, 0.5
  %v1441 = vtanh.pop %v1440
  %v1442 = vadd.f32 %v1441, 1.0
  %v1443 = vmul.f32 %v1440, %v1442
  %v1444 = vpack.c.bf16 %v1443, %v1443
  %v1446 = vsel %vm133, %v1444, 0
  %1448 = vmatprep.subr.bf16.mxu0 0
  %1449 = vmatpush1.bf16.msra.mxu0 %v55
  %1450 = vmatprep.subr.bf16.mxu0 0
  %1451 = vmatpush1.bf16.msra.mxu0 %v56
  %1452 = vmatprep.subr.bf16.mxu0 0
  %1453 = vmatpush1.bf16.msra.mxu0 %v57
  %1454 = vmatprep.subr.bf16.mxu0 0
  %1455 = vmatpush1.bf16.msra.mxu0 %v58
  %1456 = vmatprep.subr.bf16.mxu0 0
  %1457 = vmatpush1.bf16.msra.mxu0 0
  %1458 = vmatprep.subr.bf16.mxu0 0
  %1459 = vmatpush1.bf16.msra.mxu0 0
  %1460 = vmatprep.subr.bf16.mxu0 0
  %1461 = vmatpush1.bf16.msra.mxu0 0
  %1462 = vmatprep.subr.bf16.mxu0 0
  %1463 = vmatpush1.bf16.msra.mxu0 0
  %1464 = vmatprep.subr.bf16.mxu0 0
  %1465 = vmatpush1.bf16.msra.mxu0 0
  %1466 = vmatprep.subr.bf16.mxu0 0
  %1467 = vmatpush1.bf16.msra.mxu0 0
  %1468 = vmatprep.subr.bf16.mxu0 0
  %1469 = vmatpush1.bf16.msra.mxu0 0
  %1470 = vmatprep.subr.bf16.mxu0 0
  %1471 = vmatpush1.bf16.msra.mxu0 0
  %1472 = vmatprep.subr.bf16.mxu0 0
  %1473 = vmatpush1.bf16.msra.mxu0 0
  %1474 = vmatprep.subr.bf16.mxu0 0
  %1475 = vmatpush1.bf16.msra.mxu0 0
  %1476 = vmatprep.subr.bf16.mxu0 0
  %1477 = vmatpush1.bf16.msra.mxu0 0
  %1478 = vmatprep.subr.bf16.mxu0 0
  %1479 = vmatpush1.bf16.msra.mxu0 0
  %1480 = vmatprep.mubr.bf16.mxu0 0
  %1481 = vmatmul.mubr.bf16.gmra.mrb[0].mxu0 %v1446
  %v1482 = vpop.f32.mrb[0].mxu0
  %v1483 = vadd.f32 %v78, %v1482
  %v1484 = vpop.f32.mrb[0].mxu0
  %v1485 = vpop.f32.mrb[0].mxu0
  %v1486 = vpop.f32.mrb[0].mxu0
  %1487 = vdwg.mxu0
  %v1488 = vstv %s1118
  %v1489 = vmul.f32 %v1488, %v1483
  %v1490 = vadd.f32 %v1113, %v1489
  %1492 = vset.pattern.permute.xlu0 0
  %1493 = vperm.xlu0 %1492, %v1490
  %v1494 = vpop.permute.xlu0 %1493
  %v1496 = vmul.f32 %v1494, %v83
  %v1497 = vadd.f32 %v64, %v1496
  %1498 = vset.pattern.permute.xlu0 1
  %1499 = vperm.xlu0 %1498, %v1490
  %v1500 = vpop.permute.xlu0 %1499
  %v1502 = vmul.f32 %v1500, %v87
  %v1503 = vadd.f32 %v1497, %v1502
  %1504 = vset.pattern.permute.xlu0 2
  %1505 = vperm.xlu0 %1504, %v1490
  %v1506 = vpop.permute.xlu0 %1505
  %v1508 = vmul.f32 %v1506, %v91
  %v1509 = vadd.f32 %v1503, %v1508
  %1510 = vset.pattern.permute.xlu0 3
  %1511 = vperm.xlu0 %1510, %v1490
  %v1512 = vpop.permute.xlu0 %1511
  %v1514 = vmul.f32 %v1512, %v95
  %v1515 = vadd.f32 %v1509, %v1514
  %v1516 = vmul.f32 %v1515, 0.5
  %v1517 = vtanh.pop %v1516
  %v1518 = vadd.f32 %v1517, 1.0
  %v1519 = vmul.f32 %v1516, %v1518
  %v1520 = vpack.c.bf16 %v1519, %v1519
  %v1522 = vsel %vm133, %v1520, 0
  %1524 = vmatprep.subr.bf16.mxu0 0
  %1525 = vmatpush1.bf16.msra.mxu0 %v43
  %1526 = vmatprep.subr.bf16.mxu0 0
  %1527 = vmatpush1.bf16.msra.mxu0 %v44
  %1528 = vmatprep.subr.bf16.mxu0 0
  %1529 = vmatpush1.bf16.msra.mxu0 %v45
  %1530 = vmatprep.subr.bf16.mxu0 0
  %1531 = vmatpush1.bf16.msra.mxu0 %v46
  %1532 = vmatprep.subr.bf16.mxu0 0
  %1533 = vmatpush1.bf16.msra.mxu0 0
  %1534 = vmatprep.subr.bf16.mxu0 0
  %1535 = vmatpush1.bf16.msra.mxu0 0
  %1536 = vmatprep.subr.bf16.mxu0 0
  %1537 = vmatpush1.bf16.msra.mxu0 0
  %1538 = vmatprep.subr.bf16.mxu0 0
  %1539 = vmatpush1.bf16.msra.mxu0 0
  %1540 = vmatprep.subr.bf16.mxu0 0
  %1541 = vmatpush1.bf16.msra.mxu0 0
  %1542 = vmatprep.subr.bf16.mxu0 0
  %1543 = vmatpush1.bf16.msra.mxu0 0
  %1544 = vmatprep.subr.bf16.mxu0 0
  %1545 = vmatpush1.bf16.msra.mxu0 0
  %1546 = vmatprep.subr.bf16.mxu0 0
  %1547 = vmatpush1.bf16.msra.mxu0 0
  %1548 = vmatprep.subr.bf16.mxu0 0
  %1549 = vmatpush1.bf16.msra.mxu0 0
  %1550 = vmatprep.subr.bf16.mxu0 0
  %1551 = vmatpush1.bf16.msra.mxu0 0
  %1552 = vmatprep.subr.bf16.mxu0 0
  %1553 = vmatpush1.bf16.msra.mxu0 0
  %1554 = vmatprep.subr.bf16.mxu0 0
  %1555 = vmatpush1.bf16.msra.mxu0 0
  %1556 = vmatprep.mubr.bf16.mxu0 0
  %1557 = vmatmul.mubr.bf16.gmra.mrb[0].mxu0 %v1522
  %v1558 = vpop.f32.mrb[0].mxu0
  %v1559 = vadd.f32 %v71, %v1558
  %v1560 = vpop.f32.mrb[0].mxu0
  %v1561 = vpop.f32.mrb[0].mxu0
  %v1562 = vpop.f32.mrb[0].mxu0
  %1563 = vdwg.mxu0
  %v1564 = vmul.f32 %v1559, 0.5
  %v1565 = vtanh.pop %v1564
  %v1566 = vadd.f32 %v1565, 1.0
  %v1567 = vmul.f32 %v1564, %v1566
  %v1568 = vpack.c.bf16 %v1567, %v1567
  %v1570 = vsel %vm133, %v1568, 0
  %1572 = vmatprep.subr.bf16.mxu0 0
  %1573 = vmatpush1.bf16.msra.mxu0 %v55
  %1574 = vmatprep.subr.bf16.mxu0 0
  %1575 = vmatpush1.bf16.msra.mxu0 %v56
  %1576 = vmatprep.subr.bf16.mxu0 0
  %1577 = vmatpush1.bf16.msra.mxu0 %v57
  %1578 = vmatprep.subr.bf16.mxu0 0
  %1579 = vmatpush1.bf16.msra.mxu0 %v58
  %1580 = vmatprep.subr.bf16.mxu0 0
  %1581 = vmatpush1.bf16.msra.mxu0 0
  %1582 = vmatprep.subr.bf16.mxu0 0
  %1583 = vmatpush1.bf16.msra.mxu0 0
  %1584 = vmatprep.subr.bf16.mxu0 0
  %1585 = vmatpush1.bf16.msra.mxu0 0
  %1586 = vmatprep.subr.bf16.mxu0 0
  %1587 = vmatpush1.bf16.msra.mxu0 0
  %1588 = vmatprep.subr.bf16.mxu0 0
  %1589 = vmatpush1.bf16.msra.mxu0 0
  %1590 = vmatprep.subr.bf16.mxu0 0
  %1591 = vmatpush1.bf16.msra.mxu0 0
  %1592 = vmatprep.subr.bf16.mxu0 0
  %1593 = vmatpush1.bf16.msra.mxu0 0
  %1594 = vmatprep.subr.bf16.mxu0 0
  %1595 = vmatpush1.bf16.msra.mxu0 0
  %1596 = vmatprep.subr.bf16.mxu0 0
  %1597 = vmatpush1.bf16.msra.mxu0 0
  %1598 = vmatprep.subr.bf16.mxu0 0
  %1599 = vmatpush1.bf16.msra.mxu0 0
  %1600 = vmatprep.subr.bf16.mxu0 0
  %1601 = vmatpush1.bf16.msra.mxu0 0
  %1602 = vmatprep.subr.bf16.mxu0 0
  %1603 = vmatpush1.bf16.msra.mxu0 0
  %1604 = vmatprep.mubr.bf16.mxu0 0
  %1605 = vmatmul.mubr.bf16.gmra.mrb[0].mxu0 %v1570
  %v1606 = vpop.f32.mrb[0].mxu0
  %v1607 = vadd.f32 %v78, %v1606
  %v1608 = vpop.f32.mrb[0].mxu0
  %v1609 = vpop.f32.mrb[0].mxu0
  %v1610 = vpop.f32.mrb[0].mxu0
  %1611 = vdwg.mxu0
  %v1612 = vrcp.pop 6.0
  %s1613 = vtos %v1612
  %s1614 = smul.f32 %s1118, %s1613
  %v1615 = vadd.f32 %v1360, %v1483
  %v1616 = vmul.f32 %v1615, 2.0
  %v1617 = vadd.f32 %v1236, %v1616
  %v1618 = vadd.f32 %v1617, %v1607
  %v1619 = vstv %s1614
  %v1620 = vmul.f32 %v1619, %v1618
  %v1621 = vadd.f32 %v1113, %v1620
  %s1622 = scalar_lea.vmem %s8, 24
  %1623 = vst.msk [vmem:[%s1622] sm:$0xff] %vm97, %v1621
  %s1624 = sld [smem:[#allocation3 + $0x4]]
  %s1625 = sld [smem:[#allocation3 + $0x3]]
  %s1626 = ssub.f32 %s1624, %s1625
  %s1627 = smul.f32 %s1626, 0.5
  %1629 = vset.pattern.permute.xlu0 0
  %1630 = vperm.xlu0 %1629, %v1621
  %v1631 = vpop.permute.xlu0 %1630
  %v1633 = vmul.f32 %v1631, %v83
  %v1634 = vadd.f32 %v64, %v1633
  %1635 = vset.pattern.permute.xlu0 1
  %1636 = vperm.xlu0 %1635, %v1621
  %v1637 = vpop.permute.xlu0 %1636
  %v1639 = vmul.f32 %v1637, %v87
  %v1640 = vadd.f32 %v1634, %v1639
  %1641 = vset.pattern.permute.xlu0 2
  %1642 = vperm.xlu0 %1641, %v1621
  %v1643 = vpop.permute.xlu0 %1642
  %v1645 = vmul.f32 %v1643, %v91
  %v1646 = vadd.f32 %v1640, %v1645
  %1647 = vset.pattern.permute.xlu0 3
  %1648 = vperm.xlu0 %1647, %v1621
  %v1649 = vpop.permute.xlu0 %1648
  %v1651 = vmul.f32 %v1649, %v95
  %v1652 = vadd.f32 %v1646, %v1651
  %v1653 = vmul.f32 %v1652, 0.5
  %v1654 = vtanh.pop %v1653
  %v1655 = vadd.f32 %v1654, 1.0
  %v1656 = vmul.f32 %v1653, %v1655
  %v1657 = vpack.c.bf16 %v1656, %v1656
  %v1659 = vsel %vm133, %v1657, 0
  %1661 = vmatprep.subr.bf16.mxu0 0
  %1662 = vmatpush1.bf16.msra.mxu0 %v43
  %1663 = vmatprep.subr.bf16.mxu0 0
  %1664 = vmatpush1.bf16.msra.mxu0 %v44
  %1665 = vmatprep.subr.bf16.mxu0 0
  %1666 = vmatpush1.bf16.msra.mxu0 %v45
  %1667 = vmatprep.subr.bf16.mxu0 0
  %1668 = vmatpush1.bf16.msra.mxu0 %v46
  %1669 = vmatprep.subr.bf16.mxu0 0
  %1670 = vmatpush1.bf16.msra.mxu0 0
  %1671 = vmatprep.subr.bf16.mxu0 0
  %1672 = vmatpush1.bf16.msra.mxu0 0
  %1673 = vmatprep.subr.bf16.mxu0 0
  %1674 = vmatpush1.bf16.msra.mxu0 0
  %1675 = vmatprep.subr.bf16.mxu0 0
  %1676 = vmatpush1.bf16.msra.mxu0 0
  %1677 = vmatprep.subr.bf16.mxu0 0
  %1678 = vmatpush1.bf16.msra.mxu0 0
  %1679 = vmatprep.subr.bf16.mxu0 0
  %1680 = vmatpush1.bf16.msra.mxu0 0
  %1681 = vmatprep.subr.bf16.mxu0 0
  %1682 = vmatpush1.bf16.msra.mxu0 0
  %1683 = vmatprep.subr.bf16.mxu0 0
  %1684 = vmatpush1.bf16.msra.mxu0 0
  %1685 = vmatprep.subr.bf16.mxu0 0
  %1686 = vmatpush1.bf16.msra.mxu0 0
  %1687 = vmatprep.subr.bf16.mxu0 0
  %1688 = vmatpush1.bf16.msra.mxu0 0
  %1689 = vmatprep.subr.bf16.mxu0 0
  %1690 = vmatpush1.bf16.msra.mxu0 0
  %1691 = vmatprep.subr.bf16.mxu0 0
  %1692 = vmatpush1.bf16.msra.mxu0 0
  %1693 = vmatprep.mubr.bf16.mxu0 0
  %1694 = vmatmul.mubr.bf16.gmra.mrb[0].mxu0 %v1659
  %v1695 = vpop.f32.mrb[0].mxu0
  %v1696 = vadd.f32 %v71, %v1695
  %v1697 = vpop.f32.mrb[0].mxu0
  %v1698 = vpop.f32.mrb[0].mxu0
  %v1699 = vpop.f32.mrb[0].mxu0
  %1700 = vdwg.mxu0
  %v1701 = vmul.f32 %v1696, 0.5
  %v1702 = vtanh.pop %v1701
  %v1703 = vadd.f32 %v1702, 1.0
  %v1704 = vmul.f32 %v1701, %v1703
  %v1705 = vpack.c.bf16 %v1704, %v1704
  %v1707 = vsel %vm133, %v1705, 0
  %1709 = vmatprep.subr.bf16.mxu0 0
  %1710 = vmatpush1.bf16.msra.mxu0 %v55
  %1711 = vmatprep.subr.bf16.mxu0 0
  %1712 = vmatpush1.bf16.msra.mxu0 %v56
  %1713 = vmatprep.subr.bf16.mxu0 0
  %1714 = vmatpush1.bf16.msra.mxu0 %v57
  %1715 = vmatprep.subr.bf16.mxu0 0
  %1716 = vmatpush1.bf16.msra.mxu0 %v58
  %1717 = vmatprep.subr.bf16.mxu0 0
  %1718 = vmatpush1.bf16.msra.mxu0 0
  %1719 = vmatprep.subr.bf16.mxu0 0
  %1720 = vmatpush1.bf16.msra.mxu0 0
  %1721 = vmatprep.subr.bf16.mxu0 0
  %1722 = vmatpush1.bf16.msra.mxu0 0
  %1723 = vmatprep.subr.bf16.mxu0 0
  %1724 = vmatpush1.bf16.msra.mxu0 0
  %1725 = vmatprep.subr.bf16.mxu0 0
  %1726 = vmatpush1.bf16.msra.mxu0 0
  %1727 = vmatprep.subr.bf16.mxu0 0
  %1728 = vmatpush1.bf16.msra.mxu0 0
  %1729 = vmatprep.subr.bf16.mxu0 0
  %1730 = vmatpush1.bf16.msra.mxu0 0
  %1731 = vmatprep.subr.bf16.mxu0 0
  %1732 = vmatpush1.bf16.msra.mxu0 0
  %1733 = vmatprep.subr.bf16.mxu0 0
  %1734 = vmatpush1.bf16.msra.mxu0 0
  %1735 = vmatprep.subr.bf16.mxu0 0
  %1736 = vmatpush1.bf16.msra.mxu0 0
  %1737 = vmatprep.subr.bf16.mxu0 0
  %1738 = vmatpush1.bf16.msra.mxu0 0
  %1739 = vmatprep.subr.bf16.mxu0 0
  %1740 = vmatpush1.bf16.msra.mxu0 0
  %1741 = vmatprep.mubr.bf16.mxu0 0
  %1742 = vmatmul.mubr.bf16.gmra.mrb[0].mxu0 %v1707
  %v1743 = vpop.f32.mrb[0].mxu0
  %v1744 = vadd.f32 %v78, %v1743
  %v1745 = vpop.f32.mrb[0].mxu0
  %v1746 = vpop.f32.mrb[0].mxu0
  %v1747 = vpop.f32.mrb[0].mxu0
  %1748 = vdwg.mxu0
  %v1749 = vstv %s1627
  %v1750 = vmul.f32 %v1749, %v1744
  %v1751 = vadd.f32 %v1621, %v1750
  %1753 = vset.pattern.permute.xlu0 0
  %1754 = vperm.xlu0 %1753, %v1751
  %v1755 = vpop.permute.xlu0 %1754
  %v1757 = vmul.f32 %v1755, %v83
  %v1758 = vadd.f32 %v64, %v1757
  %1759 = vset.pattern.permute.xlu0 1
  %1760 = vperm.xlu0 %1759, %v1751
  %v1761 = vpop.permute.xlu0 %1760
  %v1763 = vmul.f32 %v1761, %v87
  %v1764 = vadd.f32 %v1758, %v1763
  %1765 = vset.pattern.permute.xlu0 2
  %1766 = vperm.xlu0 %1765, %v1751
  %v1767 = vpop.permute.xlu0 %1766
  %v1769 = vmul.f32 %v1767, %v91
  %v1770 = vadd.f32 %v1764, %v1769
  %1771 = vset.pattern.permute.xlu0 3
  %1772 = vperm.xlu0 %1771, %v1751
  %v1773 = vpop.permute.xlu0 %1772
  %v1775 = vmul.f32 %v1773, %v95
  %v1776 = vadd.f32 %v1770, %v1775
  %v1777 = vmul.f32 %v1776, 0.5
  %v1778 = vtanh.pop %v1777
  %v1779 = vadd.f32 %v1778, 1.0
  %v1780 = vmul.f32 %v1777, %v1779
  %v1781 = vpack.c.bf16 %v1780, %v1780
  %v1783 = vsel %vm133, %v1781, 0
  %1785 = vmatprep.subr.bf16.mxu0 0
  %1786 = vmatpush1.bf16.msra.mxu0 %v43
  %1787 = vmatprep.subr.bf16.mxu0 0
  %1788 = vmatpush1.bf16.msra.mxu0 %v44
  %1789 = vmatprep.subr.bf16.mxu0 0
  %1790 = vmatpush1.bf16.msra.mxu0 %v45
  %1791 = vmatprep.subr.bf16.mxu0 0
  %1792 = vmatpush1.bf16.msra.mxu0 %v46
  %1793 = vmatprep.subr.bf16.mxu0 0
  %1794 = vmatpush1.bf16.msra.mxu0 0
  %1795 = vmatprep.subr.bf16.mxu0 0
  %1796 = vmatpush1.bf16.msra.mxu0 0
  %1797 = vmatprep.subr.bf16.mxu0 0
  %1798 = vmatpush1.bf16.msra.mxu0 0
  %1799 = vmatprep.subr.bf16.mxu0 0
  %1800 = vmatpush1.bf16.msra.mxu0 0
  %1801 = vmatprep.subr.bf16.mxu0 0
  %1802 = vmatpush1.bf16.msra.mxu0 0
  %1803 = vmatprep.subr.bf16.mxu0 0
  %1804 = vmatpush1.bf16.msra.mxu0 0
  %1805 = vmatprep.subr.bf16.mxu0 0
  %1806 = vmatpush1.bf16.msra.mxu0 0
  %1807 = vmatprep.subr.bf16.mxu0 0
  %1808 = vmatpush1.bf16.msra.mxu0 0
  %1809 = vmatprep.subr.bf16.mxu0 0
  %1810 = vmatpush1.bf16.msra.mxu0 0
  %1811 = vmatprep.subr.bf16.mxu0 0
  %1812 = vmatpush1.bf16.msra.mxu0 0
  %1813 = vmatprep.subr.bf16.mxu0 0
  %1814 = vmatpush1.bf16.msra.mxu0 0
  %1815 = vmatprep.subr.bf16.mxu0 0
  %1816 = vmatpush1.bf16.msra.mxu0 0
  %1817 = vmatprep.mubr.bf16.mxu0 0
  %1818 = vmatmul.mubr.bf16.gmra.mrb[0].mxu0 %v1783
  %v1819 = vpop.f32.mrb[0].mxu0
  %v1820 = vadd.f32 %v71, %v1819
  %v1821 = vpop.f32.mrb[0].mxu0
  %v1822 = vpop.f32.mrb[0].mxu0
  %v1823 = vpop.f32.mrb[0].mxu0
  %1824 = vdwg.mxu0
  %v1825 = vmul.f32 %v1820, 0.5
  %v1826 = vtanh.pop %v1825
  %v1827 = vadd.f32 %v1826, 1.0
  %v1828 = vmul.f32 %v1825, %v1827
  %v1829 = vpack.c.bf16 %v1828, %v1828
  %v1831 = vsel %vm133, %v1829, 0
  %1833 = vmatprep.subr.bf16.mxu0 0
  %1834 = vmatpush1.bf16.msra.mxu0 %v55
  %1835 = vmatprep.subr.bf16.mxu0 0
  %1836 = vmatpush1.bf16.msra.mxu0 %v56
  %1837 = vmatprep.subr.bf16.mxu0 0
  %1838 = vmatpush1.bf16.msra.mxu0 %v57
  %1839 = vmatprep.subr.bf16.mxu0 0
  %1840 = vmatpush1.bf16.msra.mxu0 %v58
  %1841 = vmatprep.subr.bf16.mxu0 0
  %1842 = vmatpush1.bf16.msra.mxu0 0
  %1843 = vmatprep.subr.bf16.mxu0 0
  %1844 = vmatpush1.bf16.msra.mxu0 0
  %1845 = vmatprep.subr.bf16.mxu0 0
  %1846 = vmatpush1.bf16.msra.mxu0 0
  %1847 = vmatprep.subr.bf16.mxu0 0
  %1848 = vmatpush1.bf16.msra.mxu0 0
  %1849 = vmatprep.subr.bf16.mxu0 0
  %1850 = vmatpush1.bf16.msra.mxu0 0
  %1851 = vmatprep.subr.bf16.mxu0 0
  %1852 = vmatpush1.bf16.msra.mxu0 0
  %1853 = vmatprep.subr.bf16.mxu0 0
  %1854 = vmatpush1.bf16.msra.mxu0 0
  %1855 = vmatprep.subr.bf16.mxu0 0
  %1856 = vmatpush1.bf16.msra.mxu0 0
  %1857 = vmatprep.subr.bf16.mxu0 0
  %1858 = vmatpush1.bf16.msra.mxu0 0
  %1859 = vmatprep.subr.bf16.mxu0 0
  %1860 = vmatpush1.bf16.msra.mxu0 0
  %1861 = vmatprep.subr.bf16.mxu0 0
  %1862 = vmatpush1.bf16.msra.mxu0 0
  %1863 = vmatprep.subr.bf16.mxu0 0
  %1864 = vmatpush1.bf16.msra.mxu0 0
  %1865 = vmatprep.mubr.bf16.mxu0 0
  %1866 = vmatmul.mubr.bf16.gmra.mrb[0].mxu0 %v1831
  %v1867 = vpop.f32.mrb[0].mxu0
  %v1868 = vadd.f32 %v78, %v1867
  %v1869 = vpop.f32.mrb[0].mxu0
  %v1870 = vpop.f32.mrb[0].mxu0
  %v1871 = vpop.f32.mrb[0].mxu0
  %1872 = vdwg.mxu0
  %v1873 = vmul.f32 %v1749, %v1868
  %v1874 = vadd.f32 %v1621, %v1873
  %1876 = vset.pattern.permute.xlu0 0
  %1877 = vperm.xlu0 %1876, %v1874
  %v1878 = vpop.permute.xlu0 %1877
  %v1880 = vmul.f32 %v1878, %v83
  %v1881 = vadd.f32 %v64, %v1880
  %1882 = vset.pattern.permute.xlu0 1
  %1883 = vperm.xlu0 %1882, %v1874
  %v1884 = vpop.permute.xlu0 %1883
  %v1886 = vmul.f32 %v1884, %v87
  %v1887 = vadd.f32 %v1881, %v1886
  %1888 = vset.pattern.permute.xlu0 2
  %1889 = vperm.xlu0 %1888, %v1874
  %v1890 = vpop.permute.xlu0 %1889
  %v1892 = vmul.f32 %v1890, %v91
  %v1893 = vadd.f32 %v1887, %v1892
  %1894 = vset.pattern.permute.xlu0 3
  %1895 = vperm.xlu0 %1894, %v1874
  %v1896 = vpop.permute.xlu0 %1895
  %v1898 = vmul.f32 %v1896, %v95
  %v1899 = vadd.f32 %v1893, %v1898
  %v1900 = vmul.f32 %v1899, 0.5
  %v1901 = vtanh.pop %v1900
  %v1902 = vadd.f32 %v1901, 1.0
  %v1903 = vmul.f32 %v1900, %v1902
  %v1904 = vpack.c.bf16 %v1903, %v1903
  %v1906 = vsel %vm133, %v1904, 0
  %1908 = vmatprep.subr.bf16.mxu0 0
  %1909 = vmatpush1.bf16.msra.mxu0 %v43
  %1910 = vmatprep.subr.bf16.mxu0 0
  %1911 = vmatpush1.bf16.msra.mxu0 %v44
  %1912 = vmatprep.subr.bf16.mxu0 0
  %1913 = vmatpush1.bf16.msra.mxu0 %v45
  %1914 = vmatprep.subr.bf16.mxu0 0
  %1915 = vmatpush1.bf16.msra.mxu0 %v46
  %1916 = vmatprep.subr.bf16.mxu0 0
  %1917 = vmatpush1.bf16.msra.mxu0 0
  %1918 = vmatprep.subr.bf16.mxu0 0
  %1919 = vmatpush1.bf16.msra.mxu0 0
  %1920 = vmatprep.subr.bf16.mxu0 0
  %1921 = vmatpush1.bf16.msra.mxu0 0
  %1922 = vmatprep.subr.bf16.mxu0 0
  %1923 = vmatpush1.bf16.msra.mxu0 0
  %1924 = vmatprep.subr.bf16.mxu0 0
  %1925 = vmatpush1.bf16.msra.mxu0 0
  %1926 = vmatprep.subr.bf16.mxu0 0
  %1927 = vmatpush1.bf16.msra.mxu0 0
  %1928 = vmatprep.subr.bf16.mxu0 0
  %1929 = vmatpush1.bf16.msra.mxu0 0
  %1930 = vmatprep.subr.bf16.mxu0 0
  %1931 = vmatpush1.bf16.msra.mxu0 0
  %1932 = vmatprep.subr.bf16.mxu0 0
  %1933 = vmatpush1.bf16.msra.mxu0 0
  %1934 = vmatprep.subr.bf16.mxu0 0
  %1935 = vmatpush1.bf16.msra.mxu0 0
  %1936 = vmatprep.subr.bf16.mxu0 0
  %1937 = vmatpush1.bf16.msra.mxu0 0
  %1938 = vmatprep.subr.bf16.mxu0 0
  %1939 = vmatpush1.bf16.msra.mxu0 0
  %1940 = vmatprep.mubr.bf16.mxu0 0
  %1941 = vmatmul.mubr.bf16.gmra.mrb[0].mxu0 %v1906
  %v1942 = vpop.f32.mrb[0].mxu0
  %v1943 = vadd.f32 %v71, %v1942
  %v1944 = vpop.f32.mrb[0].mxu0
  %v1945 = vpop.f32.mrb[0].mxu0
  %v1946 = vpop.f32.mrb[0].mxu0
  %1947 = vdwg.mxu0
  %v1948 = vmul.f32 %v1943, 0.5
  %v1949 = vtanh.pop %v1948
  %v1950 = vadd.f32 %v1949, 1.0
  %v1951 = vmul.f32 %v1948, %v1950
  %v1952 = vpack.c.bf16 %v1951, %v1951
  %v1954 = vsel %vm133, %v1952, 0
  %1956 = vmatprep.subr.bf16.mxu0 0
  %1957 = vmatpush1.bf16.msra.mxu0 %v55
  %1958 = vmatprep.subr.bf16.mxu0 0
  %1959 = vmatpush1.bf16.msra.mxu0 %v56
  %1960 = vmatprep.subr.bf16.mxu0 0
  %1961 = vmatpush1.bf16.msra.mxu0 %v57
  %1962 = vmatprep.subr.bf16.mxu0 0
  %1963 = vmatpush1.bf16.msra.mxu0 %v58
  %1964 = vmatprep.subr.bf16.mxu0 0
  %1965 = vmatpush1.bf16.msra.mxu0 0
  %1966 = vmatprep.subr.bf16.mxu0 0
  %1967 = vmatpush1.bf16.msra.mxu0 0
  %1968 = vmatprep.subr.bf16.mxu0 0
  %1969 = vmatpush1.bf16.msra.mxu0 0
  %1970 = vmatprep.subr.bf16.mxu0 0
  %1971 = vmatpush1.bf16.msra.mxu0 0
  %1972 = vmatprep.subr.bf16.mxu0 0
  %1973 = vmatpush1.bf16.msra.mxu0 0
  %1974 = vmatprep.subr.bf16.mxu0 0
  %1975 = vmatpush1.bf16.msra.mxu0 0
  %1976 = vmatprep.subr.bf16.mxu0 0
  %1977 = vmatpush1.bf16.msra.mxu0 0
  %1978 = vmatprep.subr.bf16.mxu0 0
  %1979 = vmatpush1.bf16.msra.mxu0 0
  %1980 = vmatprep.subr.bf16.mxu0 0
  %1981 = vmatpush1.bf16.msra.mxu0 0
  %1982 = vmatprep.subr.bf16.mxu0 0
  %1983 = vmatpush1.bf16.msra.mxu0 0
  %1984 = vmatprep.subr.bf16.mxu0 0
  %1985 = vmatpush1.bf16.msra.mxu0 0
  %1986 = vmatprep.subr.bf16.mxu0 0
  %1987 = vmatpush1.bf16.msra.mxu0 0
  %1988 = vmatprep.mubr.bf16.mxu0 0
  %1989 = vmatmul.mubr.bf16.gmra.mrb[0].mxu0 %v1954
  %v1990 = vpop.f32.mrb[0].mxu0
  %v1991 = vadd.f32 %v78, %v1990
  %v1992 = vpop.f32.mrb[0].mxu0
  %v1993 = vpop.f32.mrb[0].mxu0
  %v1994 = vpop.f32.mrb[0].mxu0
  %1995 = vdwg.mxu0
  %v1996 = vstv %s1626
  %v1997 = vmul.f32 %v1996, %v1991
  %v1998 = vadd.f32 %v1621, %v1997
  %2000 = vset.pattern.permute.xlu0 0
  %2001 = vperm.xlu0 %2000, %v1998
  %v2002 = vpop.permute.xlu0 %2001
  %v2004 = vmul.f32 %v2002, %v83
  %v2005 = vadd.f32 %v64, %v2004
  %2006 = vset.pattern.permute.xlu0 1
  %2007 = vperm.xlu0 %2006, %v1998
  %v2008 = vpop.permute.xlu0 %2007
  %v2010 = vmul.f32 %v2008, %v87
  %v2011 = vadd.f32 %v2005, %v2010
  %2012 = vset.pattern.permute.xlu0 2
  %2013 = vperm.xlu0 %2012, %v1998
  %v2014 = vpop.permute.xlu0 %2013
  %v2016 = vmul.f32 %v2014, %v91
  %v2017 = vadd.f32 %v2011, %v2016
  %2018 = vset.pattern.permute.xlu0 3
  %2019 = vperm.xlu0 %2018, %v1998
  %v2020 = vpop.permute.xlu0 %2019
  %v2022 = vmul.f32 %v2020, %v95
  %v2023 = vadd.f32 %v2017, %v2022
  %v2024 = vmul.f32 %v2023, 0.5
  %v2025 = vtanh.pop %v2024
  %v2026 = vadd.f32 %v2025, 1.0
  %v2027 = vmul.f32 %v2024, %v2026
  %v2028 = vpack.c.bf16 %v2027, %v2027
  %v2030 = vsel %vm133, %v2028, 0
  %2032 = vmatprep.subr.bf16.mxu0 0
  %2033 = vmatpush1.bf16.msra.mxu0 %v43
  %2034 = vmatprep.subr.bf16.mxu0 0
  %2035 = vmatpush1.bf16.msra.mxu0 %v44
  %2036 = vmatprep.subr.bf16.mxu0 0
  %2037 = vmatpush1.bf16.msra.mxu0 %v45
  %2038 = vmatprep.subr.bf16.mxu0 0
  %2039 = vmatpush1.bf16.msra.mxu0 %v46
  %2040 = vmatprep.subr.bf16.mxu0 0
  %2041 = vmatpush1.bf16.msra.mxu0 0
  %2042 = vmatprep.subr.bf16.mxu0 0
  %2043 = vmatpush1.bf16.msra.mxu0 0
  %2044 = vmatprep.subr.bf16.mxu0 0
  %2045 = vmatpush1.bf16.msra.mxu0 0
  %2046 = vmatprep.subr.bf16.mxu0 0
  %2047 = vmatpush1.bf16.msra.mxu0 0
  %2048 = vmatprep.subr.bf16.mxu0 0
  %2049 = vmatpush1.bf16.msra.mxu0 0
  %2050 = vmatprep.subr.bf16.mxu0 0
  %2051 = vmatpush1.bf16.msra.mxu0 0
  %2052 = vmatprep.subr.bf16.mxu0 0
  %2053 = vmatpush1.bf16.msra.mxu0 0
  %2054 = vmatprep.subr.bf16.mxu0 0
  %2055 = vmatpush1.bf16.msra.mxu0 0
  %2056 = vmatprep.subr.bf16.mxu0 0
  %2057 = vmatpush1.bf16.msra.mxu0 0
  %2058 = vmatprep.subr.bf16.mxu0 0
  %2059 = vmatpush1.bf16.msra.mxu0 0
  %2060 = vmatprep.subr.bf16.mxu0 0
  %2061 = vmatpush1.bf16.msra.mxu0 0
  %2062 = vmatprep.subr.bf16.mxu0 0
  %2063 = vmatpush1.bf16.msra.mxu0 0
  %2064 = vmatprep.mubr.bf16.mxu0 0
  %2065 = vmatmul.mubr.bf16.gmra.mrb[0].mxu0 %v2030
  %v2066 = vpop.f32.mrb[0].mxu0
  %v2067 = vadd.f32 %v71, %v2066
  %v2068 = vpop.f32.mrb[0].mxu0
  %v2069 = vpop.f32.mrb[0].mxu0
  %v2070 = vpop.f32.mrb[0].mxu0
  %2071 = vdwg.mxu0
  %v2072 = vmul.f32 %v2067, 0.5
  %v2073 = vtanh.pop %v2072
  %v2074 = vadd.f32 %v2073, 1.0
  %v2075 = vmul.f32 %v2072, %v2074
  %v2076 = vpack.c.bf16 %v2075, %v2075
  %v2078 = vsel %vm133, %v2076, 0
  %2080 = vmatprep.subr.bf16.mxu0 0
  %2081 = vmatpush1.bf16.msra.mxu0 %v55
  %2082 = vmatprep.subr.bf16.mxu0 0
  %2083 = vmatpush1.bf16.msra.mxu0 %v56
  %2084 = vmatprep.subr.bf16.mxu0 0
  %2085 = vmatpush1.bf16.msra.mxu0 %v57
  %2086 = vmatprep.subr.bf16.mxu0 0
  %2087 = vmatpush1.bf16.msra.mxu0 %v58
  %2088 = vmatprep.subr.bf16.mxu0 0
  %2089 = vmatpush1.bf16.msra.mxu0 0
  %2090 = vmatprep.subr.bf16.mxu0 0
  %2091 = vmatpush1.bf16.msra.mxu0 0
  %2092 = vmatprep.subr.bf16.mxu0 0
  %2093 = vmatpush1.bf16.msra.mxu0 0
  %2094 = vmatprep.subr.bf16.mxu0 0
  %2095 = vmatpush1.bf16.msra.mxu0 0
  %2096 = vmatprep.subr.bf16.mxu0 0
  %2097 = vmatpush1.bf16.msra.mxu0 0
  %2098 = vmatprep.subr.bf16.mxu0 0
  %2099 = vmatpush1.bf16.msra.mxu0 0
  %2100 = vmatprep.subr.bf16.mxu0 0
  %2101 = vmatpush1.bf16.msra.mxu0 0
  %2102 = vmatprep.subr.bf16.mxu0 0
  %2103 = vmatpush1.bf16.msra.mxu0 0
  %2104 = vmatprep.subr.bf16.mxu0 0
  %2105 = vmatpush1.bf16.msra.mxu0 0
  %2106 = vmatprep.subr.bf16.mxu0 0
  %2107 = vmatpush1.bf16.msra.mxu0 0
  %2108 = vmatprep.subr.bf16.mxu0 0
  %2109 = vmatpush1.bf16.msra.mxu0 0
  %2110 = vmatprep.subr.bf16.mxu0 0
  %2111 = vmatpush1.bf16.msra.mxu0 0
  %2112 = vmatprep.mubr.bf16.mxu0 0
  %2113 = vmatmul.mubr.bf16.gmra.mrb[0].mxu0 %v2078
  %v2114 = vpop.f32.mrb[0].mxu0
  %v2115 = vadd.f32 %v78, %v2114
  %v2116 = vpop.f32.mrb[0].mxu0
  %v2117 = vpop.f32.mrb[0].mxu0
  %v2118 = vpop.f32.mrb[0].mxu0
  %2119 = vdwg.mxu0
  %v2120 = vrcp.pop 6.0
  %s2121 = vtos %v2120
  %s2122 = smul.f32 %s1626, %s2121
  %v2123 = vadd.f32 %v1868, %v1991
  %v2124 = vmul.f32 %v2123, 2.0
  %v2125 = vadd.f32 %v1744, %v2124
  %v2126 = vadd.f32 %v2125, %v2115
  %v2127 = vstv %s2122
  %v2128 = vmul.f32 %v2127, %v2126
  %v2129 = vadd.f32 %v1621, %v2128
  %s2130 = scalar_lea.vmem %s8, 32
  %2131 = vst.msk [vmem:[%s2130] sm:$0xff] %vm97, %v2129
  %s2132 = sld [smem:[#allocation3 + $0x5]]
  %s2133 = sld [smem:[#allocation3 + $0x4]]
  %s2134 = ssub.f32 %s2132, %s2133
  %s2135 = smul.f32 %s2134, 0.5
  %2137 = vset.pattern.permute.xlu0 0
  %2138 = vperm.xlu0 %2137, %v2129
  %v2139 = vpop.permute.xlu0 %2138
  %v2141 = vmul.f32 %v2139, %v83
  %v2142 = vadd.f32 %v64, %v2141
  %2143 = vset.pattern.permute.xlu0 1
  %2144 = vperm.xlu0 %2143, %v2129
  %v2145 = vpop.permute.xlu0 %2144
  %v2147 = vmul.f32 %v2145, %v87
  %v2148 = vadd.f32 %v2142, %v2147
  %2149 = vset.pattern.permute.xlu0 2
  %2150 = vperm.xlu0 %2149, %v2129
  %v2151 = vpop.permute.xlu0 %2150
  %v2153 = vmul.f32 %v2151, %v91
  %v2154 = vadd.f32 %v2148, %v2153
  %2155 = vset.pattern.permute.xlu0 3
  %2156 = vperm.xlu0 %2155, %v2129
  %v2157 = vpop.permute.xlu0 %2156
  %v2159 = vmul.f32 %v2157, %v95
  %v2160 = vadd.f32 %v2154, %v2159
  %v2161 = vmul.f32 %v2160, 0.5
  %v2162 = vtanh.pop %v2161
  %v2163 = vadd.f32 %v2162, 1.0
  %v2164 = vmul.f32 %v2161, %v2163
  %v2165 = vpack.c.bf16 %v2164, %v2164
  %v2167 = vsel %vm133, %v2165, 0
  %2169 = vmatprep.subr.bf16.mxu0 0
  %2170 = vmatpush1.bf16.msra.mxu0 %v43
  %2171 = vmatprep.subr.bf16.mxu0 0
  %2172 = vmatpush1.bf16.msra.mxu0 %v44
  %2173 = vmatprep.subr.bf16.mxu0 0
  %2174 = vmatpush1.bf16.msra.mxu0 %v45
  %2175 = vmatprep.subr.bf16.mxu0 0
  %2176 = vmatpush1.bf16.msra.mxu0 %v46
  %2177 = vmatprep.subr.bf16.mxu0 0
  %2178 = vmatpush1.bf16.msra.mxu0 0
  %2179 = vmatprep.subr.bf16.mxu0 0
  %2180 = vmatpush1.bf16.msra.mxu0 0
  %2181 = vmatprep.subr.bf16.mxu0 0
  %2182 = vmatpush1.bf16.msra.mxu0 0
  %2183 = vmatprep.subr.bf16.mxu0 0
  %2184 = vmatpush1.bf16.msra.mxu0 0
  %2185 = vmatprep.subr.bf16.mxu0 0
  %2186 = vmatpush1.bf16.msra.mxu0 0
  %2187 = vmatprep.subr.bf16.mxu0 0
  %2188 = vmatpush1.bf16.msra.mxu0 0
  %2189 = vmatprep.subr.bf16.mxu0 0
  %2190 = vmatpush1.bf16.msra.mxu0 0
  %2191 = vmatprep.subr.bf16.mxu0 0
  %2192 = vmatpush1.bf16.msra.mxu0 0
  %2193 = vmatprep.subr.bf16.mxu0 0
  %2194 = vmatpush1.bf16.msra.mxu0 0
  %2195 = vmatprep.subr.bf16.mxu0 0
  %2196 = vmatpush1.bf16.msra.mxu0 0
  %2197 = vmatprep.subr.bf16.mxu0 0
  %2198 = vmatpush1.bf16.msra.mxu0 0
  %2199 = vmatprep.subr.bf16.mxu0 0
  %2200 = vmatpush1.bf16.msra.mxu0 0
  %2201 = vmatprep.mubr.bf16.mxu0 0
  %2202 = vmatmul.mubr.bf16.gmra.mrb[0].mxu0 %v2167
  %v2203 = vpop.f32.mrb[0].mxu0
  %v2204 = vadd.f32 %v71, %v2203
  %v2205 = vpop.f32.mrb[0].mxu0
  %v2206 = vpop.f32.mrb[0].mxu0
  %v2207 = vpop.f32.mrb[0].mxu0
  %2208 = vdwg.mxu0
  %v2209 = vmul.f32 %v2204, 0.5
  %v2210 = vtanh.pop %v2209
  %v2211 = vadd.f32 %v2210, 1.0
  %v2212 = vmul.f32 %v2209, %v2211
  %v2213 = vpack.c.bf16 %v2212, %v2212
  %v2215 = vsel %vm133, %v2213, 0
  %2217 = vmatprep.subr.bf16.mxu0 0
  %2218 = vmatpush1.bf16.msra.mxu0 %v55
  %2219 = vmatprep.subr.bf16.mxu0 0
  %2220 = vmatpush1.bf16.msra.mxu0 %v56
  %2221 = vmatprep.subr.bf16.mxu0 0
  %2222 = vmatpush1.bf16.msra.mxu0 %v57
  %2223 = vmatprep.subr.bf16.mxu0 0
  %2224 = vmatpush1.bf16.msra.mxu0 %v58
  %2225 = vmatprep.subr.bf16.mxu0 0
  %2226 = vmatpush1.bf16.msra.mxu0 0
  %2227 = vmatprep.subr.bf16.mxu0 0
  %2228 = vmatpush1.bf16.msra.mxu0 0
  %2229 = vmatprep.subr.bf16.mxu0 0
  %2230 = vmatpush1.bf16.msra.mxu0 0
  %2231 = vmatprep.subr.bf16.mxu0 0
  %2232 = vmatpush1.bf16.msra.mxu0 0
  %2233 = vmatprep.subr.bf16.mxu0 0
  %2234 = vmatpush1.bf16.msra.mxu0 0
  %2235 = vmatprep.subr.bf16.mxu0 0
  %2236 = vmatpush1.bf16.msra.mxu0 0
  %2237 = vmatprep.subr.bf16.mxu0 0
  %2238 = vmatpush1.bf16.msra.mxu0 0
  %2239 = vmatprep.subr.bf16.mxu0 0
  %2240 = vmatpush1.bf16.msra.mxu0 0
  %2241 = vmatprep.subr.bf16.mxu0 0
  %2242 = vmatpush1.bf16.msra.mxu0 0
  %2243 = vmatprep.subr.bf16.mxu0 0
  %2244 = vmatpush1.bf16.msra.mxu0 0
  %2245 = vmatprep.subr.bf16.mxu0 0
  %2246 = vmatpush1.bf16.msra.mxu0 0
  %2247 = vmatprep.subr.bf16.mxu0 0
  %2248 = vmatpush1.bf16.msra.mxu0 0
  %2249 = vmatprep.mubr.bf16.mxu0 0
  %2250 = vmatmul.mubr.bf16.gmra.mrb[0].mxu0 %v2215
  %v2251 = vpop.f32.mrb[0].mxu0
  %v2252 = vadd.f32 %v78, %v2251
  %v2253 = vpop.f32.mrb[0].mxu0
  %v2254 = vpop.f32.mrb[0].mxu0
  %v2255 = vpop.f32.mrb[0].mxu0
  %2256 = vdwg.mxu0
  %v2257 = vstv %s2135
  %v2258 = vmul.f32 %v2257, %v2252
  %v2259 = vadd.f32 %v2129, %v2258
  %2261 = vset.pattern.permute.xlu0 0
  %2262 = vperm.xlu0 %2261, %v2259
  %v2263 = vpop.permute.xlu0 %2262
  %v2265 = vmul.f32 %v2263, %v83
  %v2266 = vadd.f32 %v64, %v2265
  %2267 = vset.pattern.permute.xlu0 1
  %2268 = vperm.xlu0 %2267, %v2259
  %v2269 = vpop.permute.xlu0 %2268
  %v2271 = vmul.f32 %v2269, %v87
  %v2272 = vadd.f32 %v2266, %v2271
  %2273 = vset.pattern.permute.xlu0 2
  %2274 = vperm.xlu0 %2273, %v2259
  %v2275 = vpop.permute.xlu0 %2274
  %v2277 = vmul.f32 %v2275, %v91
  %v2278 = vadd.f32 %v2272, %v2277
  %2279 = vset.pattern.permute.xlu0 3
  %2280 = vperm.xlu0 %2279, %v2259
  %v2281 = vpop.permute.xlu0 %2280
  %v2283 = vmul.f32 %v2281, %v95
  %v2284 = vadd.f32 %v2278, %v2283
  %v2285 = vmul.f32 %v2284, 0.5
  %v2286 = vtanh.pop %v2285
  %v2287 = vadd.f32 %v2286, 1.0
  %v2288 = vmul.f32 %v2285, %v2287
  %v2289 = vpack.c.bf16 %v2288, %v2288
  %v2291 = vsel %vm133, %v2289, 0
  %2293 = vmatprep.subr.bf16.mxu0 0
  %2294 = vmatpush1.bf16.msra.mxu0 %v43
  %2295 = vmatprep.subr.bf16.mxu0 0
  %2296 = vmatpush1.bf16.msra.mxu0 %v44
  %2297 = vmatprep.subr.bf16.mxu0 0
  %2298 = vmatpush1.bf16.msra.mxu0 %v45
  %2299 = vmatprep.subr.bf16.mxu0 0
  %2300 = vmatpush1.bf16.msra.mxu0 %v46
  %2301 = vmatprep.subr.bf16.mxu0 0
  %2302 = vmatpush1.bf16.msra.mxu0 0
  %2303 = vmatprep.subr.bf16.mxu0 0
  %2304 = vmatpush1.bf16.msra.mxu0 0
  %2305 = vmatprep.subr.bf16.mxu0 0
  %2306 = vmatpush1.bf16.msra.mxu0 0
  %2307 = vmatprep.subr.bf16.mxu0 0
  %2308 = vmatpush1.bf16.msra.mxu0 0
  %2309 = vmatprep.subr.bf16.mxu0 0
  %2310 = vmatpush1.bf16.msra.mxu0 0
  %2311 = vmatprep.subr.bf16.mxu0 0
  %2312 = vmatpush1.bf16.msra.mxu0 0
  %2313 = vmatprep.subr.bf16.mxu0 0
  %2314 = vmatpush1.bf16.msra.mxu0 0
  %2315 = vmatprep.subr.bf16.mxu0 0
  %2316 = vmatpush1.bf16.msra.mxu0 0
  %2317 = vmatprep.subr.bf16.mxu0 0
  %2318 = vmatpush1.bf16.msra.mxu0 0
  %2319 = vmatprep.subr.bf16.mxu0 0
  %2320 = vmatpush1.bf16.msra.mxu0 0
  %2321 = vmatprep.subr.bf16.mxu0 0
  %2322 = vmatpush1.bf16.msra.mxu0 0
  %2323 = vmatprep.subr.bf16.mxu0 0
  %2324 = vmatpush1.bf16.msra.mxu0 0
  %2325 = vmatprep.mubr.bf16.mxu0 0
  %2326 = vmatmul.mubr.bf16.gmra.mrb[0].mxu0 %v2291
  %v2327 = vpop.f32.mrb[0].mxu0
  %v2328 = vadd.f32 %v71, %v2327
  %v2329 = vpop.f32.mrb[0].mxu0
  %v2330 = vpop.f32.mrb[0].mxu0
  %v2331 = vpop.f32.mrb[0].mxu0
  %2332 = vdwg.mxu0
  %v2333 = vmul.f32 %v2328, 0.5
  %v2334 = vtanh.pop %v2333
  %v2335 = vadd.f32 %v2334, 1.0
  %v2336 = vmul.f32 %v2333, %v2335
  %v2337 = vpack.c.bf16 %v2336, %v2336
  %v2339 = vsel %vm133, %v2337, 0
  %2341 = vmatprep.subr.bf16.mxu0 0
  %2342 = vmatpush1.bf16.msra.mxu0 %v55
  %2343 = vmatprep.subr.bf16.mxu0 0
  %2344 = vmatpush1.bf16.msra.mxu0 %v56
  %2345 = vmatprep.subr.bf16.mxu0 0
  %2346 = vmatpush1.bf16.msra.mxu0 %v57
  %2347 = vmatprep.subr.bf16.mxu0 0
  %2348 = vmatpush1.bf16.msra.mxu0 %v58
  %2349 = vmatprep.subr.bf16.mxu0 0
  %2350 = vmatpush1.bf16.msra.mxu0 0
  %2351 = vmatprep.subr.bf16.mxu0 0
  %2352 = vmatpush1.bf16.msra.mxu0 0
  %2353 = vmatprep.subr.bf16.mxu0 0
  %2354 = vmatpush1.bf16.msra.mxu0 0
  %2355 = vmatprep.subr.bf16.mxu0 0
  %2356 = vmatpush1.bf16.msra.mxu0 0
  %2357 = vmatprep.subr.bf16.mxu0 0
  %2358 = vmatpush1.bf16.msra.mxu0 0
  %2359 = vmatprep.subr.bf16.mxu0 0
  %2360 = vmatpush1.bf16.msra.mxu0 0
  %2361 = vmatprep.subr.bf16.mxu0 0
  %2362 = vmatpush1.bf16.msra.mxu0 0
  %2363 = vmatprep.subr.bf16.mxu0 0
  %2364 = vmatpush1.bf16.msra.mxu0 0
  %2365 = vmatprep.subr.bf16.mxu0 0
  %2366 = vmatpush1.bf16.msra.mxu0 0
  %2367 = vmatprep.subr.bf16.mxu0 0
  %2368 = vmatpush1.bf16.msra.mxu0 0
  %2369 = vmatprep.subr.bf16.mxu0 0
  %2370 = vmatpush1.bf16.msra.mxu0 0
  %2371 = vmatprep.subr.bf16.mxu0 0
  %2372 = vmatpush1.bf16.msra.mxu0 0
  %2373 = vmatprep.mubr.bf16.mxu0 0
  %2374 = vmatmul.mubr.bf16.gmra.mrb[0].mxu0 %v2339
  %v2375 = vpop.f32.mrb[0].mxu0
  %v2376 = vadd.f32 %v78, %v2375
  %v2377 = vpop.f32.mrb[0].mxu0
  %v2378 = vpop.f32.mrb[0].mxu0
  %v2379 = vpop.f32.mrb[0].mxu0
  %2380 = vdwg.mxu0
  %v2381 = vmul.f32 %v2257, %v2376
  %v2382 = vadd.f32 %v2129, %v2381
  %2384 = vset.pattern.permute.xlu0 0
  %2385 = vperm.xlu0 %2384, %v2382
  %v2386 = vpop.permute.xlu0 %2385
  %v2388 = vmul.f32 %v2386, %v83
  %v2389 = vadd.f32 %v64, %v2388
  %2390 = vset.pattern.permute.xlu0 1
  %2391 = vperm.xlu0 %2390, %v2382
  %v2392 = vpop.permute.xlu0 %2391
  %v2394 = vmul.f32 %v2392, %v87
  %v2395 = vadd.f32 %v2389, %v2394
  %2396 = vset.pattern.permute.xlu0 2
  %2397 = vperm.xlu0 %2396, %v2382
  %v2398 = vpop.permute.xlu0 %2397
  %v2400 = vmul.f32 %v2398, %v91
  %v2401 = vadd.f32 %v2395, %v2400
  %2402 = vset.pattern.permute.xlu0 3
  %2403 = vperm.xlu0 %2402, %v2382
  %v2404 = vpop.permute.xlu0 %2403
  %v2406 = vmul.f32 %v2404, %v95
  %v2407 = vadd.f32 %v2401, %v2406
  %v2408 = vmul.f32 %v2407, 0.5
  %v2409 = vtanh.pop %v2408
  %v2410 = vadd.f32 %v2409, 1.0
  %v2411 = vmul.f32 %v2408, %v2410
  %v2412 = vpack.c.bf16 %v2411, %v2411
  %v2414 = vsel %vm133, %v2412, 0
  %2416 = vmatprep.subr.bf16.mxu0 0
  %2417 = vmatpush1.bf16.msra.mxu0 %v43
  %2418 = vmatprep.subr.bf16.mxu0 0
  %2419 = vmatpush1.bf16.msra.mxu0 %v44
  %2420 = vmatprep.subr.bf16.mxu0 0
  %2421 = vmatpush1.bf16.msra.mxu0 %v45
  %2422 = vmatprep.subr.bf16.mxu0 0
  %2423 = vmatpush1.bf16.msra.mxu0 %v46
  %2424 = vmatprep.subr.bf16.mxu0 0
  %2425 = vmatpush1.bf16.msra.mxu0 0
  %2426 = vmatprep.subr.bf16.mxu0 0
  %2427 = vmatpush1.bf16.msra.mxu0 0
  %2428 = vmatprep.subr.bf16.mxu0 0
  %2429 = vmatpush1.bf16.msra.mxu0 0
  %2430 = vmatprep.subr.bf16.mxu0 0
  %2431 = vmatpush1.bf16.msra.mxu0 0
  %2432 = vmatprep.subr.bf16.mxu0 0
  %2433 = vmatpush1.bf16.msra.mxu0 0
  %2434 = vmatprep.subr.bf16.mxu0 0
  %2435 = vmatpush1.bf16.msra.mxu0 0
  %2436 = vmatprep.subr.bf16.mxu0 0
  %2437 = vmatpush1.bf16.msra.mxu0 0
  %2438 = vmatprep.subr.bf16.mxu0 0
  %2439 = vmatpush1.bf16.msra.mxu0 0
  %2440 = vmatprep.subr.bf16.mxu0 0
  %2441 = vmatpush1.bf16.msra.mxu0 0
  %2442 = vmatprep.subr.bf16.mxu0 0
  %2443 = vmatpush1.bf16.msra.mxu0 0
  %2444 = vmatprep.subr.bf16.mxu0 0
  %2445 = vmatpush1.bf16.msra.mxu0 0
  %2446 = vmatprep.subr.bf16.mxu0 0
  %2447 = vmatpush1.bf16.msra.mxu0 0
  %2448 = vmatprep.mubr.bf16.mxu0 0
  %2449 = vmatmul.mubr.bf16.gmra.mrb[0].mxu0 %v2414
  %v2450 = vpop.f32.mrb[0].mxu0
  %v2451 = vadd.f32 %v71, %v2450
  %v2452 = vpop.f32.mrb[0].mxu0
  %v2453 = vpop.f32.mrb[0].mxu0
  %v2454 = vpop.f32.mrb[0].mxu0
  %2455 = vdwg.mxu0
  %v2456 = vmul.f32 %v2451, 0.5
  %v2457 = vtanh.pop %v2456
  %v2458 = vadd.f32 %v2457, 1.0
  %v2459 = vmul.f32 %v2456, %v2458
  %v2460 = vpack.c.bf16 %v2459, %v2459
  %v2462 = vsel %vm133, %v2460, 0
  %2464 = vmatprep.subr.bf16.mxu0 0
  %2465 = vmatpush1.bf16.msra.mxu0 %v55
  %2466 = vmatprep.subr.bf16.mxu0 0
  %2467 = vmatpush1.bf16.msra.mxu0 %v56
  %2468 = vmatprep.subr.bf16.mxu0 0
  %2469 = vmatpush1.bf16.msra.mxu0 %v57
  %2470 = vmatprep.subr.bf16.mxu0 0
  %2471 = vmatpush1.bf16.msra.mxu0 %v58
  %2472 = vmatprep.subr.bf16.mxu0 0
  %2473 = vmatpush1.bf16.msra.mxu0 0
  %2474 = vmatprep.subr.bf16.mxu0 0
  %2475 = vmatpush1.bf16.msra.mxu0 0
  %2476 = vmatprep.subr.bf16.mxu0 0
  %2477 = vmatpush1.bf16.msra.mxu0 0
  %2478 = vmatprep.subr.bf16.mxu0 0
  %2479 = vmatpush1.bf16.msra.mxu0 0
  %2480 = vmatprep.subr.bf16.mxu0 0
  %2481 = vmatpush1.bf16.msra.mxu0 0
  %2482 = vmatprep.subr.bf16.mxu0 0
  %2483 = vmatpush1.bf16.msra.mxu0 0
  %2484 = vmatprep.subr.bf16.mxu0 0
  %2485 = vmatpush1.bf16.msra.mxu0 0
  %2486 = vmatprep.subr.bf16.mxu0 0
  %2487 = vmatpush1.bf16.msra.mxu0 0
  %2488 = vmatprep.subr.bf16.mxu0 0
  %2489 = vmatpush1.bf16.msra.mxu0 0
  %2490 = vmatprep.subr.bf16.mxu0 0
  %2491 = vmatpush1.bf16.msra.mxu0 0
  %2492 = vmatprep.subr.bf16.mxu0 0
  %2493 = vmatpush1.bf16.msra.mxu0 0
  %2494 = vmatprep.subr.bf16.mxu0 0
  %2495 = vmatpush1.bf16.msra.mxu0 0
  %2496 = vmatprep.mubr.bf16.mxu0 0
  %2497 = vmatmul.mubr.bf16.gmra.mrb[0].mxu0 %v2462
  %v2498 = vpop.f32.mrb[0].mxu0
  %v2499 = vadd.f32 %v78, %v2498
  %v2500 = vpop.f32.mrb[0].mxu0
  %v2501 = vpop.f32.mrb[0].mxu0
  %v2502 = vpop.f32.mrb[0].mxu0
  %2503 = vdwg.mxu0
  %v2504 = vstv %s2134
  %v2505 = vmul.f32 %v2504, %v2499
  %v2506 = vadd.f32 %v2129, %v2505
  %2508 = vset.pattern.permute.xlu0 0
  %2509 = vperm.xlu0 %2508, %v2506
  %v2510 = vpop.permute.xlu0 %2509
  %v2512 = vmul.f32 %v2510, %v83
  %v2513 = vadd.f32 %v64, %v2512
  %2514 = vset.pattern.permute.xlu0 1
  %2515 = vperm.xlu0 %2514, %v2506
  %v2516 = vpop.permute.xlu0 %2515
  %v2518 = vmul.f32 %v2516, %v87
  %v2519 = vadd.f32 %v2513, %v2518
  %2520 = vset.pattern.permute.xlu0 2
  %2521 = vperm.xlu0 %2520, %v2506
  %v2522 = vpop.permute.xlu0 %2521
  %v2524 = vmul.f32 %v2522, %v91
  %v2525 = vadd.f32 %v2519, %v2524
  %2526 = vset.pattern.permute.xlu0 3
  %2527 = vperm.xlu0 %2526, %v2506
  %v2528 = vpop.permute.xlu0 %2527
  %v2530 = vmul.f32 %v2528, %v95
  %v2531 = vadd.f32 %v2525, %v2530
  %v2532 = vmul.f32 %v2531, 0.5
  %v2533 = vtanh.pop %v2532
  %v2534 = vadd.f32 %v2533, 1.0
  %v2535 = vmul.f32 %v2532, %v2534
  %v2536 = vpack.c.bf16 %v2535, %v2535
  %v2538 = vsel %vm133, %v2536, 0
  %2540 = vmatprep.subr.bf16.mxu0 0
  %2541 = vmatpush1.bf16.msra.mxu0 %v43
  %2542 = vmatprep.subr.bf16.mxu0 0
  %2543 = vmatpush1.bf16.msra.mxu0 %v44
  %2544 = vmatprep.subr.bf16.mxu0 0
  %2545 = vmatpush1.bf16.msra.mxu0 %v45
  %2546 = vmatprep.subr.bf16.mxu0 0
  %2547 = vmatpush1.bf16.msra.mxu0 %v46
  %2548 = vmatprep.subr.bf16.mxu0 0
  %2549 = vmatpush1.bf16.msra.mxu0 0
  %2550 = vmatprep.subr.bf16.mxu0 0
  %2551 = vmatpush1.bf16.msra.mxu0 0
  %2552 = vmatprep.subr.bf16.mxu0 0
  %2553 = vmatpush1.bf16.msra.mxu0 0
  %2554 = vmatprep.subr.bf16.mxu0 0
  %2555 = vmatpush1.bf16.msra.mxu0 0
  %2556 = vmatprep.subr.bf16.mxu0 0
  %2557 = vmatpush1.bf16.msra.mxu0 0
  %2558 = vmatprep.subr.bf16.mxu0 0
  %2559 = vmatpush1.bf16.msra.mxu0 0
  %2560 = vmatprep.subr.bf16.mxu0 0
  %2561 = vmatpush1.bf16.msra.mxu0 0
  %2562 = vmatprep.subr.bf16.mxu0 0
  %2563 = vmatpush1.bf16.msra.mxu0 0
  %2564 = vmatprep.subr.bf16.mxu0 0
  %2565 = vmatpush1.bf16.msra.mxu0 0
  %2566 = vmatprep.subr.bf16.mxu0 0
  %2567 = vmatpush1.bf16.msra.mxu0 0
  %2568 = vmatprep.subr.bf16.mxu0 0
  %2569 = vmatpush1.bf16.msra.mxu0 0
  %2570 = vmatprep.subr.bf16.mxu0 0
  %2571 = vmatpush1.bf16.msra.mxu0 0
  %2572 = vmatprep.mubr.bf16.mxu0 0
  %2573 = vmatmul.mubr.bf16.gmra.mrb[0].mxu0 %v2538
  %v2574 = vpop.f32.mrb[0].mxu0
  %v2575 = vadd.f32 %v71, %v2574
  %v2576 = vpop.f32.mrb[0].mxu0
  %v2577 = vpop.f32.mrb[0].mxu0
  %v2578 = vpop.f32.mrb[0].mxu0
  %2579 = vdwg.mxu0
  %v2580 = vmul.f32 %v2575, 0.5
  %v2581 = vtanh.pop %v2580
  %v2582 = vadd.f32 %v2581, 1.0
  %v2583 = vmul.f32 %v2580, %v2582
  %v2584 = vpack.c.bf16 %v2583, %v2583
  %v2586 = vsel %vm133, %v2584, 0
  %2588 = vmatprep.subr.bf16.mxu0 0
  %2589 = vmatpush1.bf16.msra.mxu0 %v55
  %2590 = vmatprep.subr.bf16.mxu0 0
  %2591 = vmatpush1.bf16.msra.mxu0 %v56
  %2592 = vmatprep.subr.bf16.mxu0 0
  %2593 = vmatpush1.bf16.msra.mxu0 %v57
  %2594 = vmatprep.subr.bf16.mxu0 0
  %2595 = vmatpush1.bf16.msra.mxu0 %v58
  %2596 = vmatprep.subr.bf16.mxu0 0
  %2597 = vmatpush1.bf16.msra.mxu0 0
  %2598 = vmatprep.subr.bf16.mxu0 0
  %2599 = vmatpush1.bf16.msra.mxu0 0
  %2600 = vmatprep.subr.bf16.mxu0 0
  %2601 = vmatpush1.bf16.msra.mxu0 0
  %2602 = vmatprep.subr.bf16.mxu0 0
  %2603 = vmatpush1.bf16.msra.mxu0 0
  %2604 = vmatprep.subr.bf16.mxu0 0
  %2605 = vmatpush1.bf16.msra.mxu0 0
  %2606 = vmatprep.subr.bf16.mxu0 0
  %2607 = vmatpush1.bf16.msra.mxu0 0
  %2608 = vmatprep.subr.bf16.mxu0 0
  %2609 = vmatpush1.bf16.msra.mxu0 0
  %2610 = vmatprep.subr.bf16.mxu0 0
  %2611 = vmatpush1.bf16.msra.mxu0 0
  %2612 = vmatprep.subr.bf16.mxu0 0
  %2613 = vmatpush1.bf16.msra.mxu0 0
  %2614 = vmatprep.subr.bf16.mxu0 0
  %2615 = vmatpush1.bf16.msra.mxu0 0
  %2616 = vmatprep.subr.bf16.mxu0 0
  %2617 = vmatpush1.bf16.msra.mxu0 0
  %2618 = vmatprep.subr.bf16.mxu0 0
  %2619 = vmatpush1.bf16.msra.mxu0 0
  %2620 = vmatprep.mubr.bf16.mxu0 0
  %2621 = vmatmul.mubr.bf16.gmra.mrb[0].mxu0 %v2586
  %v2622 = vpop.f32.mrb[0].mxu0
  %v2623 = vadd.f32 %v78, %v2622
  %v2624 = vpop.f32.mrb[0].mxu0
  %v2625 = vpop.f32.mrb[0].mxu0
  %v2626 = vpop.f32.mrb[0].mxu0
  %2627 = vdwg.mxu0
  %v2628 = vrcp.pop 6.0
  %s2629 = vtos %v2628
  %s2630 = smul.f32 %s2134, %s2629
  %v2631 = vadd.f32 %v2376, %v2499
  %v2632 = vmul.f32 %v2631, 2.0
  %v2633 = vadd.f32 %v2252, %v2632
  %v2634 = vadd.f32 %v2633, %v2623
  %v2635 = vstv %s2630
  %v2636 = vmul.f32 %v2635, %v2634
  %v2637 = vadd.f32 %v2129, %v2636
  %s2638 = scalar_lea.vmem %s8, 40
  %2639 = vst.msk [vmem:[%s2638] sm:$0xff] %vm97, %v2637
  %s2640 = sld [smem:[#allocation3 + $0x6]]
  %s2641 = sld [smem:[#allocation3 + $0x5]]
  %s2642 = ssub.f32 %s2640, %s2641
  %s2643 = smul.f32 %s2642, 0.5
  %2645 = vset.pattern.permute.xlu0 0
  %2646 = vperm.xlu0 %2645, %v2637
  %v2647 = vpop.permute.xlu0 %2646
  %v2649 = vmul.f32 %v2647, %v83
  %v2650 = vadd.f32 %v64, %v2649
  %2651 = vset.pattern.permute.xlu0 1
  %2652 = vperm.xlu0 %2651, %v2637
  %v2653 = vpop.permute.xlu0 %2652
  %v2655 = vmul.f32 %v2653, %v87
  %v2656 = vadd.f32 %v2650, %v2655
  %2657 = vset.pattern.permute.xlu0 2
  %2658 = vperm.xlu0 %2657, %v2637
  %v2659 = vpop.permute.xlu0 %2658
  %v2661 = vmul.f32 %v2659, %v91
  %v2662 = vadd.f32 %v2656, %v2661
  %2663 = vset.pattern.permute.xlu0 3
  %2664 = vperm.xlu0 %2663, %v2637
  %v2665 = vpop.permute.xlu0 %2664
  %v2667 = vmul.f32 %v2665, %v95
  %v2668 = vadd.f32 %v2662, %v2667
  %v2669 = vmul.f32 %v2668, 0.5
  %v2670 = vtanh.pop %v2669
  %v2671 = vadd.f32 %v2670, 1.0
  %v2672 = vmul.f32 %v2669, %v2671
  %v2673 = vpack.c.bf16 %v2672, %v2672
  %v2675 = vsel %vm133, %v2673, 0
  %2677 = vmatprep.subr.bf16.mxu0 0
  %2678 = vmatpush1.bf16.msra.mxu0 %v43
  %2679 = vmatprep.subr.bf16.mxu0 0
  %2680 = vmatpush1.bf16.msra.mxu0 %v44
  %2681 = vmatprep.subr.bf16.mxu0 0
  %2682 = vmatpush1.bf16.msra.mxu0 %v45
  %2683 = vmatprep.subr.bf16.mxu0 0
  %2684 = vmatpush1.bf16.msra.mxu0 %v46
  %2685 = vmatprep.subr.bf16.mxu0 0
  %2686 = vmatpush1.bf16.msra.mxu0 0
  %2687 = vmatprep.subr.bf16.mxu0 0
  %2688 = vmatpush1.bf16.msra.mxu0 0
  %2689 = vmatprep.subr.bf16.mxu0 0
  %2690 = vmatpush1.bf16.msra.mxu0 0
  %2691 = vmatprep.subr.bf16.mxu0 0
  %2692 = vmatpush1.bf16.msra.mxu0 0
  %2693 = vmatprep.subr.bf16.mxu0 0
  %2694 = vmatpush1.bf16.msra.mxu0 0
  %2695 = vmatprep.subr.bf16.mxu0 0
  %2696 = vmatpush1.bf16.msra.mxu0 0
  %2697 = vmatprep.subr.bf16.mxu0 0
  %2698 = vmatpush1.bf16.msra.mxu0 0
  %2699 = vmatprep.subr.bf16.mxu0 0
  %2700 = vmatpush1.bf16.msra.mxu0 0
  %2701 = vmatprep.subr.bf16.mxu0 0
  %2702 = vmatpush1.bf16.msra.mxu0 0
  %2703 = vmatprep.subr.bf16.mxu0 0
  %2704 = vmatpush1.bf16.msra.mxu0 0
  %2705 = vmatprep.subr.bf16.mxu0 0
  %2706 = vmatpush1.bf16.msra.mxu0 0
  %2707 = vmatprep.subr.bf16.mxu0 0
  %2708 = vmatpush1.bf16.msra.mxu0 0
  %2709 = vmatprep.mubr.bf16.mxu0 0
  %2710 = vmatmul.mubr.bf16.gmra.mrb[0].mxu0 %v2675
  %v2711 = vpop.f32.mrb[0].mxu0
  %v2712 = vadd.f32 %v71, %v2711
  %v2713 = vpop.f32.mrb[0].mxu0
  %v2714 = vpop.f32.mrb[0].mxu0
  %v2715 = vpop.f32.mrb[0].mxu0
  %2716 = vdwg.mxu0
  %v2717 = vmul.f32 %v2712, 0.5
  %v2718 = vtanh.pop %v2717
  %v2719 = vadd.f32 %v2718, 1.0
  %v2720 = vmul.f32 %v2717, %v2719
  %v2721 = vpack.c.bf16 %v2720, %v2720
  %v2723 = vsel %vm133, %v2721, 0
  %2725 = vmatprep.subr.bf16.mxu0 0
  %2726 = vmatpush1.bf16.msra.mxu0 %v55
  %2727 = vmatprep.subr.bf16.mxu0 0
  %2728 = vmatpush1.bf16.msra.mxu0 %v56
  %2729 = vmatprep.subr.bf16.mxu0 0
  %2730 = vmatpush1.bf16.msra.mxu0 %v57
  %2731 = vmatprep.subr.bf16.mxu0 0
  %2732 = vmatpush1.bf16.msra.mxu0 %v58
  %2733 = vmatprep.subr.bf16.mxu0 0
  %2734 = vmatpush1.bf16.msra.mxu0 0
  %2735 = vmatprep.subr.bf16.mxu0 0
  %2736 = vmatpush1.bf16.msra.mxu0 0
  %2737 = vmatprep.subr.bf16.mxu0 0
  %2738 = vmatpush1.bf16.msra.mxu0 0
  %2739 = vmatprep.subr.bf16.mxu0 0
  %2740 = vmatpush1.bf16.msra.mxu0 0
  %2741 = vmatprep.subr.bf16.mxu0 0
  %2742 = vmatpush1.bf16.msra.mxu0 0
  %2743 = vmatprep.subr.bf16.mxu0 0
  %2744 = vmatpush1.bf16.msra.mxu0 0
  %2745 = vmatprep.subr.bf16.mxu0 0
  %2746 = vmatpush1.bf16.msra.mxu0 0
  %2747 = vmatprep.subr.bf16.mxu0 0
  %2748 = vmatpush1.bf16.msra.mxu0 0
  %2749 = vmatprep.subr.bf16.mxu0 0
  %2750 = vmatpush1.bf16.msra.mxu0 0
  %2751 = vmatprep.subr.bf16.mxu0 0
  %2752 = vmatpush1.bf16.msra.mxu0 0
  %2753 = vmatprep.subr.bf16.mxu0 0
  %2754 = vmatpush1.bf16.msra.mxu0 0
  %2755 = vmatprep.subr.bf16.mxu0 0
  %2756 = vmatpush1.bf16.msra.mxu0 0
  %2757 = vmatprep.mubr.bf16.mxu0 0
  %2758 = vmatmul.mubr.bf16.gmra.mrb[0].mxu0 %v2723
  %v2759 = vpop.f32.mrb[0].mxu0
  %v2760 = vadd.f32 %v78, %v2759
  %v2761 = vpop.f32.mrb[0].mxu0
  %v2762 = vpop.f32.mrb[0].mxu0
  %v2763 = vpop.f32.mrb[0].mxu0
  %2764 = vdwg.mxu0
  %v2765 = vstv %s2643
  %v2766 = vmul.f32 %v2765, %v2760
  %v2767 = vadd.f32 %v2637, %v2766
  %2769 = vset.pattern.permute.xlu0 0
  %2770 = vperm.xlu0 %2769, %v2767
  %v2771 = vpop.permute.xlu0 %2770
  %v2773 = vmul.f32 %v2771, %v83
  %v2774 = vadd.f32 %v64, %v2773
  %2775 = vset.pattern.permute.xlu0 1
  %2776 = vperm.xlu0 %2775, %v2767
  %v2777 = vpop.permute.xlu0 %2776
  %v2779 = vmul.f32 %v2777, %v87
  %v2780 = vadd.f32 %v2774, %v2779
  %2781 = vset.pattern.permute.xlu0 2
  %2782 = vperm.xlu0 %2781, %v2767
  %v2783 = vpop.permute.xlu0 %2782
  %v2785 = vmul.f32 %v2783, %v91
  %v2786 = vadd.f32 %v2780, %v2785
  %2787 = vset.pattern.permute.xlu0 3
  %2788 = vperm.xlu0 %2787, %v2767
  %v2789 = vpop.permute.xlu0 %2788
  %v2791 = vmul.f32 %v2789, %v95
  %v2792 = vadd.f32 %v2786, %v2791
  %v2793 = vmul.f32 %v2792, 0.5
  %v2794 = vtanh.pop %v2793
  %v2795 = vadd.f32 %v2794, 1.0
  %v2796 = vmul.f32 %v2793, %v2795
  %v2797 = vpack.c.bf16 %v2796, %v2796
  %v2799 = vsel %vm133, %v2797, 0
  %2801 = vmatprep.subr.bf16.mxu0 0
  %2802 = vmatpush1.bf16.msra.mxu0 %v43
  %2803 = vmatprep.subr.bf16.mxu0 0
  %2804 = vmatpush1.bf16.msra.mxu0 %v44
  %2805 = vmatprep.subr.bf16.mxu0 0
  %2806 = vmatpush1.bf16.msra.mxu0 %v45
  %2807 = vmatprep.subr.bf16.mxu0 0
  %2808 = vmatpush1.bf16.msra.mxu0 %v46
  %2809 = vmatprep.subr.bf16.mxu0 0
  %2810 = vmatpush1.bf16.msra.mxu0 0
  %2811 = vmatprep.subr.bf16.mxu0 0
  %2812 = vmatpush1.bf16.msra.mxu0 0
  %2813 = vmatprep.subr.bf16.mxu0 0
  %2814 = vmatpush1.bf16.msra.mxu0 0
  %2815 = vmatprep.subr.bf16.mxu0 0
  %2816 = vmatpush1.bf16.msra.mxu0 0
  %2817 = vmatprep.subr.bf16.mxu0 0
  %2818 = vmatpush1.bf16.msra.mxu0 0
  %2819 = vmatprep.subr.bf16.mxu0 0
  %2820 = vmatpush1.bf16.msra.mxu0 0
  %2821 = vmatprep.subr.bf16.mxu0 0
  %2822 = vmatpush1.bf16.msra.mxu0 0
  %2823 = vmatprep.subr.bf16.mxu0 0
  %2824 = vmatpush1.bf16.msra.mxu0 0
  %2825 = vmatprep.subr.bf16.mxu0 0
  %2826 = vmatpush1.bf16.msra.mxu0 0
  %2827 = vmatprep.subr.bf16.mxu0 0
  %2828 = vmatpush1.bf16.msra.mxu0 0
  %2829 = vmatprep.subr.bf16.mxu0 0
  %2830 = vmatpush1.bf16.msra.mxu0 0
  %2831 = vmatprep.subr.bf16.mxu0 0
  %2832 = vmatpush1.bf16.msra.mxu0 0
  %2833 = vmatprep.mubr.bf16.mxu0 0
  %2834 = vmatmul.mubr.bf16.gmra.mrb[0].mxu0 %v2799
  %v2835 = vpop.f32.mrb[0].mxu0
  %v2836 = vadd.f32 %v71, %v2835
  %v2837 = vpop.f32.mrb[0].mxu0
  %v2838 = vpop.f32.mrb[0].mxu0
  %v2839 = vpop.f32.mrb[0].mxu0
  %2840 = vdwg.mxu0
  %v2841 = vmul.f32 %v2836, 0.5
  %v2842 = vtanh.pop %v2841
  %v2843 = vadd.f32 %v2842, 1.0
  %v2844 = vmul.f32 %v2841, %v2843
  %v2845 = vpack.c.bf16 %v2844, %v2844
  %v2847 = vsel %vm133, %v2845, 0
  %2849 = vmatprep.subr.bf16.mxu0 0
  %2850 = vmatpush1.bf16.msra.mxu0 %v55
  %2851 = vmatprep.subr.bf16.mxu0 0
  %2852 = vmatpush1.bf16.msra.mxu0 %v56
  %2853 = vmatprep.subr.bf16.mxu0 0
  %2854 = vmatpush1.bf16.msra.mxu0 %v57
  %2855 = vmatprep.subr.bf16.mxu0 0
  %2856 = vmatpush1.bf16.msra.mxu0 %v58
  %2857 = vmatprep.subr.bf16.mxu0 0
  %2858 = vmatpush1.bf16.msra.mxu0 0
  %2859 = vmatprep.subr.bf16.mxu0 0
  %2860 = vmatpush1.bf16.msra.mxu0 0
  %2861 = vmatprep.subr.bf16.mxu0 0
  %2862 = vmatpush1.bf16.msra.mxu0 0
  %2863 = vmatprep.subr.bf16.mxu0 0
  %2864 = vmatpush1.bf16.msra.mxu0 0
  %2865 = vmatprep.subr.bf16.mxu0 0
  %2866 = vmatpush1.bf16.msra.mxu0 0
  %2867 = vmatprep.subr.bf16.mxu0 0
  %2868 = vmatpush1.bf16.msra.mxu0 0
  %2869 = vmatprep.subr.bf16.mxu0 0
  %2870 = vmatpush1.bf16.msra.mxu0 0
  %2871 = vmatprep.subr.bf16.mxu0 0
  %2872 = vmatpush1.bf16.msra.mxu0 0
  %2873 = vmatprep.subr.bf16.mxu0 0
  %2874 = vmatpush1.bf16.msra.mxu0 0
  %2875 = vmatprep.subr.bf16.mxu0 0
  %2876 = vmatpush1.bf16.msra.mxu0 0
  %2877 = vmatprep.subr.bf16.mxu0 0
  %2878 = vmatpush1.bf16.msra.mxu0 0
  %2879 = vmatprep.subr.bf16.mxu0 0
  %2880 = vmatpush1.bf16.msra.mxu0 0
  %2881 = vmatprep.mubr.bf16.mxu0 0
  %2882 = vmatmul.mubr.bf16.gmra.mrb[0].mxu0 %v2847
  %v2883 = vpop.f32.mrb[0].mxu0
  %v2884 = vadd.f32 %v78, %v2883
  %v2885 = vpop.f32.mrb[0].mxu0
  %v2886 = vpop.f32.mrb[0].mxu0
  %v2887 = vpop.f32.mrb[0].mxu0
  %2888 = vdwg.mxu0
  %v2889 = vmul.f32 %v2765, %v2884
  %v2890 = vadd.f32 %v2637, %v2889
  %2892 = vset.pattern.permute.xlu0 0
  %2893 = vperm.xlu0 %2892, %v2890
  %v2894 = vpop.permute.xlu0 %2893
  %v2896 = vmul.f32 %v2894, %v83
  %v2897 = vadd.f32 %v64, %v2896
  %2898 = vset.pattern.permute.xlu0 1
  %2899 = vperm.xlu0 %2898, %v2890
  %v2900 = vpop.permute.xlu0 %2899
  %v2902 = vmul.f32 %v2900, %v87
  %v2903 = vadd.f32 %v2897, %v2902
  %2904 = vset.pattern.permute.xlu0 2
  %2905 = vperm.xlu0 %2904, %v2890
  %v2906 = vpop.permute.xlu0 %2905
  %v2908 = vmul.f32 %v2906, %v91
  %v2909 = vadd.f32 %v2903, %v2908
  %2910 = vset.pattern.permute.xlu0 3
  %2911 = vperm.xlu0 %2910, %v2890
  %v2912 = vpop.permute.xlu0 %2911
  %v2914 = vmul.f32 %v2912, %v95
  %v2915 = vadd.f32 %v2909, %v2914
  %v2916 = vmul.f32 %v2915, 0.5
  %v2917 = vtanh.pop %v2916
  %v2918 = vadd.f32 %v2917, 1.0
  %v2919 = vmul.f32 %v2916, %v2918
  %v2920 = vpack.c.bf16 %v2919, %v2919
  %v2922 = vsel %vm133, %v2920, 0
  %2924 = vmatprep.subr.bf16.mxu0 0
  %2925 = vmatpush1.bf16.msra.mxu0 %v43
  %2926 = vmatprep.subr.bf16.mxu0 0
  %2927 = vmatpush1.bf16.msra.mxu0 %v44
  %2928 = vmatprep.subr.bf16.mxu0 0
  %2929 = vmatpush1.bf16.msra.mxu0 %v45
  %2930 = vmatprep.subr.bf16.mxu0 0
  %2931 = vmatpush1.bf16.msra.mxu0 %v46
  %2932 = vmatprep.subr.bf16.mxu0 0
  %2933 = vmatpush1.bf16.msra.mxu0 0
  %2934 = vmatprep.subr.bf16.mxu0 0
  %2935 = vmatpush1.bf16.msra.mxu0 0
  %2936 = vmatprep.subr.bf16.mxu0 0
  %2937 = vmatpush1.bf16.msra.mxu0 0
  %2938 = vmatprep.subr.bf16.mxu0 0
  %2939 = vmatpush1.bf16.msra.mxu0 0
  %2940 = vmatprep.subr.bf16.mxu0 0
  %2941 = vmatpush1.bf16.msra.mxu0 0
  %2942 = vmatprep.subr.bf16.mxu0 0
  %2943 = vmatpush1.bf16.msra.mxu0 0
  %2944 = vmatprep.subr.bf16.mxu0 0
  %2945 = vmatpush1.bf16.msra.mxu0 0
  %2946 = vmatprep.subr.bf16.mxu0 0
  %2947 = vmatpush1.bf16.msra.mxu0 0
  %2948 = vmatprep.subr.bf16.mxu0 0
  %2949 = vmatpush1.bf16.msra.mxu0 0
  %2950 = vmatprep.subr.bf16.mxu0 0
  %2951 = vmatpush1.bf16.msra.mxu0 0
  %2952 = vmatprep.subr.bf16.mxu0 0
  %2953 = vmatpush1.bf16.msra.mxu0 0
  %2954 = vmatprep.subr.bf16.mxu0 0
  %2955 = vmatpush1.bf16.msra.mxu0 0
  %2956 = vmatprep.mubr.bf16.mxu0 0
  %2957 = vmatmul.mubr.bf16.gmra.mrb[0].mxu0 %v2922
  %v2958 = vpop.f32.mrb[0].mxu0
  %v2959 = vadd.f32 %v71, %v2958
  %v2960 = vpop.f32.mrb[0].mxu0
  %v2961 = vpop.f32.mrb[0].mxu0
  %v2962 = vpop.f32.mrb[0].mxu0
  %2963 = vdwg.mxu0
  %v2964 = vmul.f32 %v2959, 0.5
  %v2965 = vtanh.pop %v2964
  %v2966 = vadd.f32 %v2965, 1.0
  %v2967 = vmul.f32 %v2964, %v2966
  %v2968 = vpack.c.bf16 %v2967, %v2967
  %v2970 = vsel %vm133, %v2968, 0
  %2972 = vmatprep.subr.bf16.mxu0 0
  %2973 = vmatpush1.bf16.msra.mxu0 %v55
  %2974 = vmatprep.subr.bf16.mxu0 0
  %2975 = vmatpush1.bf16.msra.mxu0 %v56
  %2976 = vmatprep.subr.bf16.mxu0 0
  %2977 = vmatpush1.bf16.msra.mxu0 %v57
  %2978 = vmatprep.subr.bf16.mxu0 0
  %2979 = vmatpush1.bf16.msra.mxu0 %v58
  %2980 = vmatprep.subr.bf16.mxu0 0
  %2981 = vmatpush1.bf16.msra.mxu0 0
  %2982 = vmatprep.subr.bf16.mxu0 0
  %2983 = vmatpush1.bf16.msra.mxu0 0
  %2984 = vmatprep.subr.bf16.mxu0 0
  %2985 = vmatpush1.bf16.msra.mxu0 0
  %2986 = vmatprep.subr.bf16.mxu0 0
  %2987 = vmatpush1.bf16.msra.mxu0 0
  %2988 = vmatprep.subr.bf16.mxu0 0
  %2989 = vmatpush1.bf16.msra.mxu0 0
  %2990 = vmatprep.subr.bf16.mxu0 0
  %2991 = vmatpush1.bf16.msra.mxu0 0
  %2992 = vmatprep.subr.bf16.mxu0 0
  %2993 = vmatpush1.bf16.msra.mxu0 0
  %2994 = vmatprep.subr.bf16.mxu0 0
  %2995 = vmatpush1.bf16.msra.mxu0 0
  %2996 = vmatprep.subr.bf16.mxu0 0
  %2997 = vmatpush1.bf16.msra.mxu0 0
  %2998 = vmatprep.subr.bf16.mxu0 0
  %2999 = vmatpush1.bf16.msra.mxu0 0
  %3000 = vmatprep.subr.bf16.mxu0 0
  %3001 = vmatpush1.bf16.msra.mxu0 0
  %3002 = vmatprep.subr.bf16.mxu0 0
  %3003 = vmatpush1.bf16.msra.mxu0 0
  %3004 = vmatprep.mubr.bf16.mxu0 0
  %3005 = vmatmul.mubr.bf16.gmra.mrb[0].mxu0 %v2970
  %v3006 = vpop.f32.mrb[0].mxu0
  %v3007 = vadd.f32 %v78, %v3006
  %v3008 = vpop.f32.mrb[0].mxu0
  %v3009 = vpop.f32.mrb[0].mxu0
  %v3010 = vpop.f32.mrb[0].mxu0
  %3011 = vdwg.mxu0
  %v3012 = vstv %s2642
  %v3013 = vmul.f32 %v3012, %v3007
  %v3014 = vadd.f32 %v2637, %v3013
  %3016 = vset.pattern.permute.xlu0 0
  %3017 = vperm.xlu0 %3016, %v3014
  %v3018 = vpop.permute.xlu0 %3017
  %v3020 = vmul.f32 %v3018, %v83
  %v3021 = vadd.f32 %v64, %v3020
  %3022 = vset.pattern.permute.xlu0 1
  %3023 = vperm.xlu0 %3022, %v3014
  %v3024 = vpop.permute.xlu0 %3023
  %v3026 = vmul.f32 %v3024, %v87
  %v3027 = vadd.f32 %v3021, %v3026
  %3028 = vset.pattern.permute.xlu0 2
  %3029 = vperm.xlu0 %3028, %v3014
  %v3030 = vpop.permute.xlu0 %3029
  %v3032 = vmul.f32 %v3030, %v91
  %v3033 = vadd.f32 %v3027, %v3032
  %3034 = vset.pattern.permute.xlu0 3
  %3035 = vperm.xlu0 %3034, %v3014
  %v3036 = vpop.permute.xlu0 %3035
  %v3038 = vmul.f32 %v3036, %v95
  %v3039 = vadd.f32 %v3033, %v3038
  %v3040 = vmul.f32 %v3039, 0.5
  %v3041 = vtanh.pop %v3040
  %v3042 = vadd.f32 %v3041, 1.0
  %v3043 = vmul.f32 %v3040, %v3042
  %v3044 = vpack.c.bf16 %v3043, %v3043
  %v3046 = vsel %vm133, %v3044, 0
  %3048 = vmatprep.subr.bf16.mxu0 0
  %3049 = vmatpush1.bf16.msra.mxu0 %v43
  %3050 = vmatprep.subr.bf16.mxu0 0
  %3051 = vmatpush1.bf16.msra.mxu0 %v44
  %3052 = vmatprep.subr.bf16.mxu0 0
  %3053 = vmatpush1.bf16.msra.mxu0 %v45
  %3054 = vmatprep.subr.bf16.mxu0 0
  %3055 = vmatpush1.bf16.msra.mxu0 %v46
  %3056 = vmatprep.subr.bf16.mxu0 0
  %3057 = vmatpush1.bf16.msra.mxu0 0
  %3058 = vmatprep.subr.bf16.mxu0 0
  %3059 = vmatpush1.bf16.msra.mxu0 0
  %3060 = vmatprep.subr.bf16.mxu0 0
  %3061 = vmatpush1.bf16.msra.mxu0 0
  %3062 = vmatprep.subr.bf16.mxu0 0
  %3063 = vmatpush1.bf16.msra.mxu0 0
  %3064 = vmatprep.subr.bf16.mxu0 0
  %3065 = vmatpush1.bf16.msra.mxu0 0
  %3066 = vmatprep.subr.bf16.mxu0 0
  %3067 = vmatpush1.bf16.msra.mxu0 0
  %3068 = vmatprep.subr.bf16.mxu0 0
  %3069 = vmatpush1.bf16.msra.mxu0 0
  %3070 = vmatprep.subr.bf16.mxu0 0
  %3071 = vmatpush1.bf16.msra.mxu0 0
  %3072 = vmatprep.subr.bf16.mxu0 0
  %3073 = vmatpush1.bf16.msra.mxu0 0
  %3074 = vmatprep.subr.bf16.mxu0 0
  %3075 = vmatpush1.bf16.msra.mxu0 0
  %3076 = vmatprep.subr.bf16.mxu0 0
  %3077 = vmatpush1.bf16.msra.mxu0 0
  %3078 = vmatprep.subr.bf16.mxu0 0
  %3079 = vmatpush1.bf16.msra.mxu0 0
  %3080 = vmatprep.mubr.bf16.mxu0 0
  %3081 = vmatmul.mubr.bf16.gmra.mrb[0].mxu0 %v3046
  %v3082 = vpop.f32.mrb[0].mxu0
  %v3083 = vadd.f32 %v71, %v3082
  %v3084 = vpop.f32.mrb[0].mxu0
  %v3085 = vpop.f32.mrb[0].mxu0
  %v3086 = vpop.f32.mrb[0].mxu0
  %3087 = vdwg.mxu0
  %v3088 = vmul.f32 %v3083, 0.5
  %v3089 = vtanh.pop %v3088
  %v3090 = vadd.f32 %v3089, 1.0
  %v3091 = vmul.f32 %v3088, %v3090
  %v3092 = vpack.c.bf16 %v3091, %v3091
  %v3094 = vsel %vm133, %v3092, 0
  %3096 = vmatprep.subr.bf16.mxu0 0
  %3097 = vmatpush1.bf16.msra.mxu0 %v55
  %3098 = vmatprep.subr.bf16.mxu0 0
  %3099 = vmatpush1.bf16.msra.mxu0 %v56
  %3100 = vmatprep.subr.bf16.mxu0 0
  %3101 = vmatpush1.bf16.msra.mxu0 %v57
  %3102 = vmatprep.subr.bf16.mxu0 0
  %3103 = vmatpush1.bf16.msra.mxu0 %v58
  %3104 = vmatprep.subr.bf16.mxu0 0
  %3105 = vmatpush1.bf16.msra.mxu0 0
  %3106 = vmatprep.subr.bf16.mxu0 0
  %3107 = vmatpush1.bf16.msra.mxu0 0
  %3108 = vmatprep.subr.bf16.mxu0 0
  %3109 = vmatpush1.bf16.msra.mxu0 0
  %3110 = vmatprep.subr.bf16.mxu0 0
  %3111 = vmatpush1.bf16.msra.mxu0 0
  %3112 = vmatprep.subr.bf16.mxu0 0
  %3113 = vmatpush1.bf16.msra.mxu0 0
  %3114 = vmatprep.subr.bf16.mxu0 0
  %3115 = vmatpush1.bf16.msra.mxu0 0
  %3116 = vmatprep.subr.bf16.mxu0 0
  %3117 = vmatpush1.bf16.msra.mxu0 0
  %3118 = vmatprep.subr.bf16.mxu0 0
  %3119 = vmatpush1.bf16.msra.mxu0 0
  %3120 = vmatprep.subr.bf16.mxu0 0
  %3121 = vmatpush1.bf16.msra.mxu0 0
  %3122 = vmatprep.subr.bf16.mxu0 0
  %3123 = vmatpush1.bf16.msra.mxu0 0
  %3124 = vmatprep.subr.bf16.mxu0 0
  %3125 = vmatpush1.bf16.msra.mxu0 0
  %3126 = vmatprep.subr.bf16.mxu0 0
  %3127 = vmatpush1.bf16.msra.mxu0 0
  %3128 = vmatprep.mubr.bf16.mxu0 0
  %3129 = vmatmul.mubr.bf16.gmra.mrb[0].mxu0 %v3094
  %v3130 = vpop.f32.mrb[0].mxu0
  %v3131 = vadd.f32 %v78, %v3130
  %v3132 = vpop.f32.mrb[0].mxu0
  %v3133 = vpop.f32.mrb[0].mxu0
  %v3134 = vpop.f32.mrb[0].mxu0
  %3135 = vdwg.mxu0
  %v3136 = vrcp.pop 6.0
  %s3137 = vtos %v3136
  %s3138 = smul.f32 %s2642, %s3137
  %v3139 = vadd.f32 %v2884, %v3007
  %v3140 = vmul.f32 %v3139, 2.0
  %v3141 = vadd.f32 %v2760, %v3140
  %v3142 = vadd.f32 %v3141, %v3131
  %v3143 = vstv %s3138
  %v3144 = vmul.f32 %v3143, %v3142
  %v3145 = vadd.f32 %v2637, %v3144
  %s3146 = scalar_lea.vmem %s8, 48
  %3147 = vst.msk [vmem:[%s3146] sm:$0xff] %vm97, %v3145
  %s3148 = sld [smem:[#allocation3 + $0x7]]
  %s3149 = sld [smem:[#allocation3 + $0x6]]
  %s3150 = ssub.f32 %s3148, %s3149
  %s3151 = smul.f32 %s3150, 0.5
  %3153 = vset.pattern.permute.xlu0 0
  %3154 = vperm.xlu0 %3153, %v3145
  %v3155 = vpop.permute.xlu0 %3154
  %v3157 = vmul.f32 %v3155, %v83
  %v3158 = vadd.f32 %v64, %v3157
  %3159 = vset.pattern.permute.xlu0 1
  %3160 = vperm.xlu0 %3159, %v3145
  %v3161 = vpop.permute.xlu0 %3160
  %v3163 = vmul.f32 %v3161, %v87
  %v3164 = vadd.f32 %v3158, %v3163
  %3165 = vset.pattern.permute.xlu0 2
  %3166 = vperm.xlu0 %3165, %v3145
  %v3167 = vpop.permute.xlu0 %3166
  %v3169 = vmul.f32 %v3167, %v91
  %v3170 = vadd.f32 %v3164, %v3169
  %3171 = vset.pattern.permute.xlu0 3
  %3172 = vperm.xlu0 %3171, %v3145
  %v3173 = vpop.permute.xlu0 %3172
  %v3175 = vmul.f32 %v3173, %v95
  %v3176 = vadd.f32 %v3170, %v3175
  %v3177 = vmul.f32 %v3176, 0.5
  %v3178 = vtanh.pop %v3177
  %v3179 = vadd.f32 %v3178, 1.0
  %v3180 = vmul.f32 %v3177, %v3179
  %v3181 = vpack.c.bf16 %v3180, %v3180
  %v3183 = vsel %vm133, %v3181, 0
  %3185 = vmatprep.subr.bf16.mxu0 0
  %3186 = vmatpush1.bf16.msra.mxu0 %v43
  %3187 = vmatprep.subr.bf16.mxu0 0
  %3188 = vmatpush1.bf16.msra.mxu0 %v44
  %3189 = vmatprep.subr.bf16.mxu0 0
  %3190 = vmatpush1.bf16.msra.mxu0 %v45
  %3191 = vmatprep.subr.bf16.mxu0 0
  %3192 = vmatpush1.bf16.msra.mxu0 %v46
  %3193 = vmatprep.subr.bf16.mxu0 0
  %3194 = vmatpush1.bf16.msra.mxu0 0
  %3195 = vmatprep.subr.bf16.mxu0 0
  %3196 = vmatpush1.bf16.msra.mxu0 0
  %3197 = vmatprep.subr.bf16.mxu0 0
  %3198 = vmatpush1.bf16.msra.mxu0 0
  %3199 = vmatprep.subr.bf16.mxu0 0
  %3200 = vmatpush1.bf16.msra.mxu0 0
  %3201 = vmatprep.subr.bf16.mxu0 0
  %3202 = vmatpush1.bf16.msra.mxu0 0
  %3203 = vmatprep.subr.bf16.mxu0 0
  %3204 = vmatpush1.bf16.msra.mxu0 0
  %3205 = vmatprep.subr.bf16.mxu0 0
  %3206 = vmatpush1.bf16.msra.mxu0 0
  %3207 = vmatprep.subr.bf16.mxu0 0
  %3208 = vmatpush1.bf16.msra.mxu0 0
  %3209 = vmatprep.subr.bf16.mxu0 0
  %3210 = vmatpush1.bf16.msra.mxu0 0
  %3211 = vmatprep.subr.bf16.mxu0 0
  %3212 = vmatpush1.bf16.msra.mxu0 0
  %3213 = vmatprep.subr.bf16.mxu0 0
  %3214 = vmatpush1.bf16.msra.mxu0 0
  %3215 = vmatprep.subr.bf16.mxu0 0
  %3216 = vmatpush1.bf16.msra.mxu0 0
  %3217 = vmatprep.mubr.bf16.mxu0 0
  %3218 = vmatmul.mubr.bf16.gmra.mrb[0].mxu0 %v3183
  %v3219 = vpop.f32.mrb[0].mxu0
  %v3220 = vadd.f32 %v71, %v3219
  %v3221 = vpop.f32.mrb[0].mxu0
  %v3222 = vpop.f32.mrb[0].mxu0
  %v3223 = vpop.f32.mrb[0].mxu0
  %3224 = vdwg.mxu0
  %v3225 = vmul.f32 %v3220, 0.5
  %v3226 = vtanh.pop %v3225
  %v3227 = vadd.f32 %v3226, 1.0
  %v3228 = vmul.f32 %v3225, %v3227
  %v3229 = vpack.c.bf16 %v3228, %v3228
  %v3231 = vsel %vm133, %v3229, 0
  %3233 = vmatprep.subr.bf16.mxu0 0
  %3234 = vmatpush1.bf16.msra.mxu0 %v55
  %3235 = vmatprep.subr.bf16.mxu0 0
  %3236 = vmatpush1.bf16.msra.mxu0 %v56
  %3237 = vmatprep.subr.bf16.mxu0 0
  %3238 = vmatpush1.bf16.msra.mxu0 %v57
  %3239 = vmatprep.subr.bf16.mxu0 0
  %3240 = vmatpush1.bf16.msra.mxu0 %v58
  %3241 = vmatprep.subr.bf16.mxu0 0
  %3242 = vmatpush1.bf16.msra.mxu0 0
  %3243 = vmatprep.subr.bf16.mxu0 0
  %3244 = vmatpush1.bf16.msra.mxu0 0
  %3245 = vmatprep.subr.bf16.mxu0 0
  %3246 = vmatpush1.bf16.msra.mxu0 0
  %3247 = vmatprep.subr.bf16.mxu0 0
  %3248 = vmatpush1.bf16.msra.mxu0 0
  %3249 = vmatprep.subr.bf16.mxu0 0
  %3250 = vmatpush1.bf16.msra.mxu0 0
  %3251 = vmatprep.subr.bf16.mxu0 0
  %3252 = vmatpush1.bf16.msra.mxu0 0
  %3253 = vmatprep.subr.bf16.mxu0 0
  %3254 = vmatpush1.bf16.msra.mxu0 0
  %3255 = vmatprep.subr.bf16.mxu0 0
  %3256 = vmatpush1.bf16.msra.mxu0 0
  %3257 = vmatprep.subr.bf16.mxu0 0
  %3258 = vmatpush1.bf16.msra.mxu0 0
  %3259 = vmatprep.subr.bf16.mxu0 0
  %3260 = vmatpush1.bf16.msra.mxu0 0
  %3261 = vmatprep.subr.bf16.mxu0 0
  %3262 = vmatpush1.bf16.msra.mxu0 0
  %3263 = vmatprep.subr.bf16.mxu0 0
  %3264 = vmatpush1.bf16.msra.mxu0 0
  %3265 = vmatprep.mubr.bf16.mxu0 0
  %3266 = vmatmul.mubr.bf16.gmra.mrb[0].mxu0 %v3231
  %v3267 = vpop.f32.mrb[0].mxu0
  %v3268 = vadd.f32 %v78, %v3267
  %v3269 = vpop.f32.mrb[0].mxu0
  %v3270 = vpop.f32.mrb[0].mxu0
  %v3271 = vpop.f32.mrb[0].mxu0
  %3272 = vdwg.mxu0
  %v3273 = vstv %s3151
  %v3274 = vmul.f32 %v3273, %v3268
  %v3275 = vadd.f32 %v3145, %v3274
  %3277 = vset.pattern.permute.xlu0 0
  %3278 = vperm.xlu0 %3277, %v3275
  %v3279 = vpop.permute.xlu0 %3278
  %v3281 = vmul.f32 %v3279, %v83
  %v3282 = vadd.f32 %v64, %v3281
  %3283 = vset.pattern.permute.xlu0 1
  %3284 = vperm.xlu0 %3283, %v3275
  %v3285 = vpop.permute.xlu0 %3284
  %v3287 = vmul.f32 %v3285, %v87
  %v3288 = vadd.f32 %v3282, %v3287
  %3289 = vset.pattern.permute.xlu0 2
  %3290 = vperm.xlu0 %3289, %v3275
  %v3291 = vpop.permute.xlu0 %3290
  %v3293 = vmul.f32 %v3291, %v91
  %v3294 = vadd.f32 %v3288, %v3293
  %3295 = vset.pattern.permute.xlu0 3
  %3296 = vperm.xlu0 %3295, %v3275
  %v3297 = vpop.permute.xlu0 %3296
  %v3299 = vmul.f32 %v3297, %v95
  %v3300 = vadd.f32 %v3294, %v3299
  %v3301 = vmul.f32 %v3300, 0.5
  %v3302 = vtanh.pop %v3301
  %v3303 = vadd.f32 %v3302, 1.0
  %v3304 = vmul.f32 %v3301, %v3303
  %v3305 = vpack.c.bf16 %v3304, %v3304
  %v3307 = vsel %vm133, %v3305, 0
  %3309 = vmatprep.subr.bf16.mxu0 0
  %3310 = vmatpush1.bf16.msra.mxu0 %v43
  %3311 = vmatprep.subr.bf16.mxu0 0
  %3312 = vmatpush1.bf16.msra.mxu0 %v44
  %3313 = vmatprep.subr.bf16.mxu0 0
  %3314 = vmatpush1.bf16.msra.mxu0 %v45
  %3315 = vmatprep.subr.bf16.mxu0 0
  %3316 = vmatpush1.bf16.msra.mxu0 %v46
  %3317 = vmatprep.subr.bf16.mxu0 0
  %3318 = vmatpush1.bf16.msra.mxu0 0
  %3319 = vmatprep.subr.bf16.mxu0 0
  %3320 = vmatpush1.bf16.msra.mxu0 0
  %3321 = vmatprep.subr.bf16.mxu0 0
  %3322 = vmatpush1.bf16.msra.mxu0 0
  %3323 = vmatprep.subr.bf16.mxu0 0
  %3324 = vmatpush1.bf16.msra.mxu0 0
  %3325 = vmatprep.subr.bf16.mxu0 0
  %3326 = vmatpush1.bf16.msra.mxu0 0
  %3327 = vmatprep.subr.bf16.mxu0 0
  %3328 = vmatpush1.bf16.msra.mxu0 0
  %3329 = vmatprep.subr.bf16.mxu0 0
  %3330 = vmatpush1.bf16.msra.mxu0 0
  %3331 = vmatprep.subr.bf16.mxu0 0
  %3332 = vmatpush1.bf16.msra.mxu0 0
  %3333 = vmatprep.subr.bf16.mxu0 0
  %3334 = vmatpush1.bf16.msra.mxu0 0
  %3335 = vmatprep.subr.bf16.mxu0 0
  %3336 = vmatpush1.bf16.msra.mxu0 0
  %3337 = vmatprep.subr.bf16.mxu0 0
  %3338 = vmatpush1.bf16.msra.mxu0 0
  %3339 = vmatprep.subr.bf16.mxu0 0
  %3340 = vmatpush1.bf16.msra.mxu0 0
  %3341 = vmatprep.mubr.bf16.mxu0 0
  %3342 = vmatmul.mubr.bf16.gmra.mrb[0].mxu0 %v3307
  %v3343 = vpop.f32.mrb[0].mxu0
  %v3344 = vadd.f32 %v71, %v3343
  %v3345 = vpop.f32.mrb[0].mxu0
  %v3346 = vpop.f32.mrb[0].mxu0
  %v3347 = vpop.f32.mrb[0].mxu0
  %3348 = vdwg.mxu0
  %v3349 = vmul.f32 %v3344, 0.5
  %v3350 = vtanh.pop %v3349
  %v3351 = vadd.f32 %v3350, 1.0
  %v3352 = vmul.f32 %v3349, %v3351
  %v3353 = vpack.c.bf16 %v3352, %v3352
  %v3355 = vsel %vm133, %v3353, 0
  %3357 = vmatprep.subr.bf16.mxu0 0
  %3358 = vmatpush1.bf16.msra.mxu0 %v55
  %3359 = vmatprep.subr.bf16.mxu0 0
  %3360 = vmatpush1.bf16.msra.mxu0 %v56
  %3361 = vmatprep.subr.bf16.mxu0 0
  %3362 = vmatpush1.bf16.msra.mxu0 %v57
  %3363 = vmatprep.subr.bf16.mxu0 0
  %3364 = vmatpush1.bf16.msra.mxu0 %v58
  %3365 = vmatprep.subr.bf16.mxu0 0
  %3366 = vmatpush1.bf16.msra.mxu0 0
  %3367 = vmatprep.subr.bf16.mxu0 0
  %3368 = vmatpush1.bf16.msra.mxu0 0
  %3369 = vmatprep.subr.bf16.mxu0 0
  %3370 = vmatpush1.bf16.msra.mxu0 0
  %3371 = vmatprep.subr.bf16.mxu0 0
  %3372 = vmatpush1.bf16.msra.mxu0 0
  %3373 = vmatprep.subr.bf16.mxu0 0
  %3374 = vmatpush1.bf16.msra.mxu0 0
  %3375 = vmatprep.subr.bf16.mxu0 0
  %3376 = vmatpush1.bf16.msra.mxu0 0
  %3377 = vmatprep.subr.bf16.mxu0 0
  %3378 = vmatpush1.bf16.msra.mxu0 0
  %3379 = vmatprep.subr.bf16.mxu0 0
  %3380 = vmatpush1.bf16.msra.mxu0 0
  %3381 = vmatprep.subr.bf16.mxu0 0
  %3382 = vmatpush1.bf16.msra.mxu0 0
  %3383 = vmatprep.subr.bf16.mxu0 0
  %3384 = vmatpush1.bf16.msra.mxu0 0
  %3385 = vmatprep.subr.bf16.mxu0 0
  %3386 = vmatpush1.bf16.msra.mxu0 0
  %3387 = vmatprep.subr.bf16.mxu0 0
  %3388 = vmatpush1.bf16.msra.mxu0 0
  %3389 = vmatprep.mubr.bf16.mxu0 0
  %3390 = vmatmul.mubr.bf16.gmra.mrb[0].mxu0 %v3355
  %v3391 = vpop.f32.mrb[0].mxu0
  %v3392 = vadd.f32 %v78, %v3391
  %v3393 = vpop.f32.mrb[0].mxu0
  %v3394 = vpop.f32.mrb[0].mxu0
  %v3395 = vpop.f32.mrb[0].mxu0
  %3396 = vdwg.mxu0
  %v3397 = vmul.f32 %v3273, %v3392
  %v3398 = vadd.f32 %v3145, %v3397
  %3400 = vset.pattern.permute.xlu0 0
  %3401 = vperm.xlu0 %3400, %v3398
  %v3402 = vpop.permute.xlu0 %3401
  %v3404 = vmul.f32 %v3402, %v83
  %v3405 = vadd.f32 %v64, %v3404
  %3406 = vset.pattern.permute.xlu0 1
  %3407 = vperm.xlu0 %3406, %v3398
  %v3408 = vpop.permute.xlu0 %3407
  %v3410 = vmul.f32 %v3408, %v87
  %v3411 = vadd.f32 %v3405, %v3410
  %3412 = vset.pattern.permute.xlu0 2
  %3413 = vperm.xlu0 %3412, %v3398
  %v3414 = vpop.permute.xlu0 %3413
  %v3416 = vmul.f32 %v3414, %v91
  %v3417 = vadd.f32 %v3411, %v3416
  %3418 = vset.pattern.permute.xlu0 3
  %3419 = vperm.xlu0 %3418, %v3398
  %v3420 = vpop.permute.xlu0 %3419
  %v3422 = vmul.f32 %v3420, %v95
  %v3423 = vadd.f32 %v3417, %v3422
  %v3424 = vmul.f32 %v3423, 0.5
  %v3425 = vtanh.pop %v3424
  %v3426 = vadd.f32 %v3425, 1.0
  %v3427 = vmul.f32 %v3424, %v3426
  %v3428 = vpack.c.bf16 %v3427, %v3427
  %v3430 = vsel %vm133, %v3428, 0
  %3432 = vmatprep.subr.bf16.mxu0 0
  %3433 = vmatpush1.bf16.msra.mxu0 %v43
  %3434 = vmatprep.subr.bf16.mxu0 0
  %3435 = vmatpush1.bf16.msra.mxu0 %v44
  %3436 = vmatprep.subr.bf16.mxu0 0
  %3437 = vmatpush1.bf16.msra.mxu0 %v45
  %3438 = vmatprep.subr.bf16.mxu0 0
  %3439 = vmatpush1.bf16.msra.mxu0 %v46
  %3440 = vmatprep.subr.bf16.mxu0 0
  %3441 = vmatpush1.bf16.msra.mxu0 0
  %3442 = vmatprep.subr.bf16.mxu0 0
  %3443 = vmatpush1.bf16.msra.mxu0 0
  %3444 = vmatprep.subr.bf16.mxu0 0
  %3445 = vmatpush1.bf16.msra.mxu0 0
  %3446 = vmatprep.subr.bf16.mxu0 0
  %3447 = vmatpush1.bf16.msra.mxu0 0
  %3448 = vmatprep.subr.bf16.mxu0 0
  %3449 = vmatpush1.bf16.msra.mxu0 0
  %3450 = vmatprep.subr.bf16.mxu0 0
  %3451 = vmatpush1.bf16.msra.mxu0 0
  %3452 = vmatprep.subr.bf16.mxu0 0
  %3453 = vmatpush1.bf16.msra.mxu0 0
  %3454 = vmatprep.subr.bf16.mxu0 0
  %3455 = vmatpush1.bf16.msra.mxu0 0
  %3456 = vmatprep.subr.bf16.mxu0 0
  %3457 = vmatpush1.bf16.msra.mxu0 0
  %3458 = vmatprep.subr.bf16.mxu0 0
  %3459 = vmatpush1.bf16.msra.mxu0 0
  %3460 = vmatprep.subr.bf16.mxu0 0
  %3461 = vmatpush1.bf16.msra.mxu0 0
  %3462 = vmatprep.subr.bf16.mxu0 0
  %3463 = vmatpush1.bf16.msra.mxu0 0
  %3464 = vmatprep.mubr.bf16.mxu0 0
  %3465 = vmatmul.mubr.bf16.gmra.mrb[0].mxu0 %v3430
  %v3466 = vpop.f32.mrb[0].mxu0
  %v3467 = vadd.f32 %v71, %v3466
  %v3468 = vpop.f32.mrb[0].mxu0
  %v3469 = vpop.f32.mrb[0].mxu0
  %v3470 = vpop.f32.mrb[0].mxu0
  %3471 = vdwg.mxu0
  %v3472 = vmul.f32 %v3467, 0.5
  %v3473 = vtanh.pop %v3472
  %v3474 = vadd.f32 %v3473, 1.0
  %v3475 = vmul.f32 %v3472, %v3474
  %v3476 = vpack.c.bf16 %v3475, %v3475
  %v3478 = vsel %vm133, %v3476, 0
  %3480 = vmatprep.subr.bf16.mxu0 0
  %3481 = vmatpush1.bf16.msra.mxu0 %v55
  %3482 = vmatprep.subr.bf16.mxu0 0
  %3483 = vmatpush1.bf16.msra.mxu0 %v56
  %3484 = vmatprep.subr.bf16.mxu0 0
  %3485 = vmatpush1.bf16.msra.mxu0 %v57
  %3486 = vmatprep.subr.bf16.mxu0 0
  %3487 = vmatpush1.bf16.msra.mxu0 %v58
  %3488 = vmatprep.subr.bf16.mxu0 0
  %3489 = vmatpush1.bf16.msra.mxu0 0
  %3490 = vmatprep.subr.bf16.mxu0 0
  %3491 = vmatpush1.bf16.msra.mxu0 0
  %3492 = vmatprep.subr.bf16.mxu0 0
  %3493 = vmatpush1.bf16.msra.mxu0 0
  %3494 = vmatprep.subr.bf16.mxu0 0
  %3495 = vmatpush1.bf16.msra.mxu0 0
  %3496 = vmatprep.subr.bf16.mxu0 0
  %3497 = vmatpush1.bf16.msra.mxu0 0
  %3498 = vmatprep.subr.bf16.mxu0 0
  %3499 = vmatpush1.bf16.msra.mxu0 0
  %3500 = vmatprep.subr.bf16.mxu0 0
  %3501 = vmatpush1.bf16.msra.mxu0 0
  %3502 = vmatprep.subr.bf16.mxu0 0
  %3503 = vmatpush1.bf16.msra.mxu0 0
  %3504 = vmatprep.subr.bf16.mxu0 0
  %3505 = vmatpush1.bf16.msra.mxu0 0
  %3506 = vmatprep.subr.bf16.mxu0 0
  %3507 = vmatpush1.bf16.msra.mxu0 0
  %3508 = vmatprep.subr.bf16.mxu0 0
  %3509 = vmatpush1.bf16.msra.mxu0 0
  %3510 = vmatprep.subr.bf16.mxu0 0
  %3511 = vmatpush1.bf16.msra.mxu0 0
  %3512 = vmatprep.mubr.bf16.mxu0 0
  %3513 = vmatmul.mubr.bf16.gmra.mrb[0].mxu0 %v3478
  %v3514 = vpop.f32.mrb[0].mxu0
  %v3515 = vadd.f32 %v78, %v3514
  %v3516 = vpop.f32.mrb[0].mxu0
  %v3517 = vpop.f32.mrb[0].mxu0
  %v3518 = vpop.f32.mrb[0].mxu0
  %3519 = vdwg.mxu0
  %v3520 = vstv %s3150
  %v3521 = vmul.f32 %v3520, %v3515
  %v3522 = vadd.f32 %v3145, %v3521
  %3524 = vset.pattern.permute.xlu0 0
  %3525 = vperm.xlu0 %3524, %v3522
  %v3526 = vpop.permute.xlu0 %3525
  %v3528 = vmul.f32 %v3526, %v83
  %v3529 = vadd.f32 %v64, %v3528
  %3530 = vset.pattern.permute.xlu0 1
  %3531 = vperm.xlu0 %3530, %v3522
  %v3532 = vpop.permute.xlu0 %3531
  %v3534 = vmul.f32 %v3532, %v87
  %v3535 = vadd.f32 %v3529, %v3534
  %3536 = vset.pattern.permute.xlu0 2
  %3537 = vperm.xlu0 %3536, %v3522
  %v3538 = vpop.permute.xlu0 %3537
  %v3540 = vmul.f32 %v3538, %v91
  %v3541 = vadd.f32 %v3535, %v3540
  %3542 = vset.pattern.permute.xlu0 3
  %3543 = vperm.xlu0 %3542, %v3522
  %v3544 = vpop.permute.xlu0 %3543
  %v3546 = vmul.f32 %v3544, %v95
  %v3547 = vadd.f32 %v3541, %v3546
  %v3548 = vmul.f32 %v3547, 0.5
  %v3549 = vtanh.pop %v3548
  %v3550 = vadd.f32 %v3549, 1.0
  %v3551 = vmul.f32 %v3548, %v3550
  %v3552 = vpack.c.bf16 %v3551, %v3551
  %v3554 = vsel %vm133, %v3552, 0
  %3556 = vmatprep.subr.bf16.mxu0 0
  %3557 = vmatpush1.bf16.msra.mxu0 %v43
  %3558 = vmatprep.subr.bf16.mxu0 0
  %3559 = vmatpush1.bf16.msra.mxu0 %v44
  %3560 = vmatprep.subr.bf16.mxu0 0
  %3561 = vmatpush1.bf16.msra.mxu0 %v45
  %3562 = vmatprep.subr.bf16.mxu0 0
  %3563 = vmatpush1.bf16.msra.mxu0 %v46
  %3564 = vmatprep.subr.bf16.mxu0 0
  %3565 = vmatpush1.bf16.msra.mxu0 0
  %3566 = vmatprep.subr.bf16.mxu0 0
  %3567 = vmatpush1.bf16.msra.mxu0 0
  %3568 = vmatprep.subr.bf16.mxu0 0
  %3569 = vmatpush1.bf16.msra.mxu0 0
  %3570 = vmatprep.subr.bf16.mxu0 0
  %3571 = vmatpush1.bf16.msra.mxu0 0
  %3572 = vmatprep.subr.bf16.mxu0 0
  %3573 = vmatpush1.bf16.msra.mxu0 0
  %3574 = vmatprep.subr.bf16.mxu0 0
  %3575 = vmatpush1.bf16.msra.mxu0 0
  %3576 = vmatprep.subr.bf16.mxu0 0
  %3577 = vmatpush1.bf16.msra.mxu0 0
  %3578 = vmatprep.subr.bf16.mxu0 0
  %3579 = vmatpush1.bf16.msra.mxu0 0
  %3580 = vmatprep.subr.bf16.mxu0 0
  %3581 = vmatpush1.bf16.msra.mxu0 0
  %3582 = vmatprep.subr.bf16.mxu0 0
  %3583 = vmatpush1.bf16.msra.mxu0 0
  %3584 = vmatprep.subr.bf16.mxu0 0
  %3585 = vmatpush1.bf16.msra.mxu0 0
  %3586 = vmatprep.subr.bf16.mxu0 0
  %3587 = vmatpush1.bf16.msra.mxu0 0
  %3588 = vmatprep.mubr.bf16.mxu0 0
  %3589 = vmatmul.mubr.bf16.gmra.mrb[0].mxu0 %v3554
  %v3590 = vpop.f32.mrb[0].mxu0
  %v3591 = vadd.f32 %v71, %v3590
  %v3592 = vpop.f32.mrb[0].mxu0
  %v3593 = vpop.f32.mrb[0].mxu0
  %v3594 = vpop.f32.mrb[0].mxu0
  %3595 = vdwg.mxu0
  %v3596 = vmul.f32 %v3591, 0.5
  %v3597 = vtanh.pop %v3596
  %v3598 = vadd.f32 %v3597, 1.0
  %v3599 = vmul.f32 %v3596, %v3598
  %v3600 = vpack.c.bf16 %v3599, %v3599
  %v3602 = vsel %vm133, %v3600, 0
  %3604 = vmatprep.subr.bf16.mxu0 0
  %3605 = vmatpush1.bf16.msra.mxu0 %v55
  %3606 = vmatprep.subr.bf16.mxu0 0
  %3607 = vmatpush1.bf16.msra.mxu0 %v56
  %3608 = vmatprep.subr.bf16.mxu0 0
  %3609 = vmatpush1.bf16.msra.mxu0 %v57
  %3610 = vmatprep.subr.bf16.mxu0 0
  %3611 = vmatpush1.bf16.msra.mxu0 %v58
  %3612 = vmatprep.subr.bf16.mxu0 0
  %3613 = vmatpush1.bf16.msra.mxu0 0
  %3614 = vmatprep.subr.bf16.mxu0 0
  %3615 = vmatpush1.bf16.msra.mxu0 0
  %3616 = vmatprep.subr.bf16.mxu0 0
  %3617 = vmatpush1.bf16.msra.mxu0 0
  %3618 = vmatprep.subr.bf16.mxu0 0
  %3619 = vmatpush1.bf16.msra.mxu0 0
  %3620 = vmatprep.subr.bf16.mxu0 0
  %3621 = vmatpush1.bf16.msra.mxu0 0
  %3622 = vmatprep.subr.bf16.mxu0 0
  %3623 = vmatpush1.bf16.msra.mxu0 0
  %3624 = vmatprep.subr.bf16.mxu0 0
  %3625 = vmatpush1.bf16.msra.mxu0 0
  %3626 = vmatprep.subr.bf16.mxu0 0
  %3627 = vmatpush1.bf16.msra.mxu0 0
  %3628 = vmatprep.subr.bf16.mxu0 0
  %3629 = vmatpush1.bf16.msra.mxu0 0
  %3630 = vmatprep.subr.bf16.mxu0 0
  %3631 = vmatpush1.bf16.msra.mxu0 0
  %3632 = vmatprep.subr.bf16.mxu0 0
  %3633 = vmatpush1.bf16.msra.mxu0 0
  %3634 = vmatprep.subr.bf16.mxu0 0
  %3635 = vmatpush1.bf16.msra.mxu0 0
  %3636 = vmatprep.mubr.bf16.mxu0 0
  %3637 = vmatmul.mubr.bf16.gmra.mrb[0].mxu0 %v3602
  %v3638 = vpop.f32.mrb[0].mxu0
  %v3639 = vadd.f32 %v78, %v3638
  %v3640 = vpop.f32.mrb[0].mxu0
  %v3641 = vpop.f32.mrb[0].mxu0
  %v3642 = vpop.f32.mrb[0].mxu0
  %3643 = vdwg.mxu0
  %v3644 = vrcp.pop 6.0
  %s3645 = vtos %v3644
  %s3646 = smul.f32 %s3150, %s3645
  %v3647 = vadd.f32 %v3392, %v3515
  %v3648 = vmul.f32 %v3647, 2.0
  %v3649 = vadd.f32 %v3268, %v3648
  %v3650 = vadd.f32 %v3649, %v3639
  %v3651 = vstv %s3646
  %v3652 = vmul.f32 %v3651, %v3650
  %v3653 = vadd.f32 %v3145, %v3652
  %s3654 = scalar_lea.vmem %s8, 56
  %3655 = vst.msk [vmem:[%s3654] sm:$0xff] %vm97, %v3653
  // Predicated region
  $region30: #{tpu_custom_call.1} parent=0 // pred_check
    _
  $region31: #{tpu_custom_call.1} parent=0 // pred_check_branch
    %3657 = sbr.rel (0) target = $region33
  $region32: #{tpu_custom_call.1} parent=0 // pred_region
    _
  $region33: #{tpu_custom_call.1} parent=0 // pred_fallthru
    _
  // Predicated region
  $region34: #{tpu_custom_call.1} parent=0 // pred_check
    _
  $region35: #{tpu_custom_call.1} parent=0 // pred_check_branch
    %3659 = sbr.rel (0) target = $region37
  $region36: #{tpu_custom_call.1} parent=0 // pred_region
    _
  $region37: #{tpu_custom_call.1} parent=0 // pred_fallthru
    _

</llo_original>
